<compile_context>
chip_gen: v7x
topology: tpu7x:2x2x1
jax: 0.10.0
libtpu: 0.0.40
codegen_flags: <defaults>
</compile_context>

<pallas_src>
import functools
import math

import jax
import jax.numpy as jnp
from jax.experimental import pallas as pl
from jax.experimental.pallas import tpu as pltpu

NUM_HEADS = 4
APPNP_K = 10
APPNP_ALPHA = 0.1
FAVOR_EPS = 1e-4
LANE = 128  # pad class dim to this for lane-dense MXU passes / unmasked stores


def _elu(x):
    # F.elu(alpha=1); clamp exp arg so the unselected branch never overflows.
    return jnp.where(x > 0, x, jnp.exp(jnp.minimum(x, 0.0)) - 1.0)


def _full_spec(shape):
    nd = len(shape)
    return pl.BlockSpec(shape, lambda i, _n=nd: (0,) * _n)


# ----------------------------------------------------------------------------
# Fused kernel
# ----------------------------------------------------------------------------
def fused_block_kernel(x_ref, a_ref, wqkvg_ref, bqkvg_ref, bigp_ref, bigd_ref,
                       mask2_ref, w2_ref, b2_ref, logp_ref, h_ref, *,
                       num_heads, head_dim, nb_features, num_classes,
                       k_steps, alpha):
    f32 = jnp.float32
    bf16 = jnp.bfloat16
    emb = num_heads * head_dim
    m_feat = nb_features
    hm = num_heads * m_feat
    ratio = float(m_feat) ** -0.5
    neg = jnp.float32(-1e30)

    # ---- fused q|k|v|ones|lin1 projection: one lane-dense [N,F]@[F,5E] matmul ----
    # column layout of the packed weight: [ q | k | v | ones | g1 ]
    x = x_ref[...]                                                       # [N, F] bf16
    qkvg = jnp.dot(x, wqkvg_ref[...], preferred_element_type=f32) + bqkvg_ref[...]

    qk = qkvg[:, :2 * emb]                                               # [N, 2E]
    v_aug = qkvg[:, 2 * emb:4 * emb]                                     # [N, 2E] = [v | 1]
    g1 = qkvg[:, 4 * emb:5 * emb]                                        # [N, E]

    # ---- FAVOR+ random-feature maps (block-diag weights over the q|k half, K=2E) ----
    pj = jnp.dot(qk.astype(bf16), bigp_ref[...], preferred_element_type=f32)          # [N,2HM]
    dg = jnp.dot((qk * qk).astype(bf16), bigd_ref[...], preferred_element_type=f32)   # [N,2HM]
    qd, kd = pj[:, :hm], pj[:, hm:]
    q_diag, k_diag = dg[:, :hm], dg[:, hm:]

    # per-head stabilizers (reference-exact): q uses per-row max over its M lanes,
    # k uses the global max of its whole [N, M] block (hoisted column-max).
    lane = jax.lax.broadcasted_iota(jnp.int32, (1, hm), 1)
    kd_colmax = jnp.max(kd, axis=0, keepdims=True)                       # [1, HM]
    stab_q = jnp.zeros(qd.shape, f32)
    stab_k = jnp.zeros((1, hm), f32)
    for hd in range(num_heads):
        sel = jnp.logical_and(lane >= hd * m_feat, lane < (hd + 1) * m_feat)
        qmax_h = jnp.max(jnp.where(sel, qd, neg), axis=1, keepdims=True)  # [N,1]
        kmax_h = jnp.max(jnp.where(sel, kd_colmax, neg))                  # scalar
        stab_q = stab_q + jnp.where(sel, qmax_h, 0.0)
        stab_k = stab_k + jnp.where(sel, kmax_h, 0.0)

    qp = ratio * (jnp.exp(qd - q_diag - stab_q) + FAVOR_EPS)             # [N, HM]
    kp = ratio * (jnp.exp(kd - k_diag - stab_k) + FAVOR_EPS)             # [N, HM]

    # ---- non-causal linear attention: ctx and k_cum from ONE matmul, then one
    #      fused out|den matmul (head-match mask keeps the block-diagonal). ----
    qp_b = qp.astype(bf16)
    ctxden = jax.lax.dot_general(kp.astype(bf16), v_aug.astype(bf16),
                                 (((0,), (0,)), ((), ())),
                                 preferred_element_type=f32)             # [HM, 2E] = [ctx | k_cum]
    rhs = (ctxden * mask2_ref[...]).astype(bf16)                         # [HM, 2E]
    od = jnp.dot(qp_b, rhs, preferred_element_type=f32)                  # [N, 2E] = [out | den]
    out, den = od[:, :emb], od[:, emb:]
    trans = out * pl.reciprocal(den, approx=True)

    # ---- concat((g1, trans)) -> ELU -> lin2 (class dim padded to lane width) ----
    w2 = w2_ref[...]                                                     # [2E, CPAD] bf16
    acc = jnp.dot(_elu(g1).astype(bf16), w2[:emb, :], preferred_element_type=f32)
    acc = acc + jnp.dot(_elu(trans).astype(bf16), w2[emb:, :],
                        preferred_element_type=f32)
    z = _elu(acc + b2_ref[...])                                          # [N, CPAD]; pad cols == 0

    # ---- APPNP(K, alpha): bf16 operands / f32 accumulation, two steps per iter ----
    a = a_ref[...]                                                       # [N, N] bf16
    a2 = jnp.dot(a, a, preferred_element_type=f32).astype(bf16)
    z_b = z.astype(bf16)
    c = (alpha * (1.0 - alpha)) * jnp.dot(a, z_b, preferred_element_type=f32) + alpha * z
    beta2 = (1.0 - alpha) ** 2
    h = z
    for _ in range(k_steps // 2):
        h = beta2 * jnp.dot(a2, h.astype(bf16), preferred_element_type=f32) + c
    if k_steps % 2:
        h = (1.0 - alpha) * jnp.dot(a, h.astype(bf16), preferred_element_type=f32) + alpha * z

    # ---- log_softmax over the real classes only (padded lanes masked out) ----
    col = jax.lax.broadcasted_iota(jnp.int32, h.shape, 1)
    valid = col < num_classes
    hmasked = jnp.where(valid, h, neg)
    mrow = jnp.max(hmasked, axis=1, keepdims=True)
    lse = jnp.log(jnp.sum(jnp.exp(hmasked - mrow), axis=1, keepdims=True)) + mrow
    logp_ref[...] = jnp.where(valid, h - lse, 0.0)
    h_ref[...] = h


# ----------------------------------------------------------------------------
# One-time host-side weight packing (NOT on the per-call path)
# ----------------------------------------------------------------------------
def pack_params(p, *, num_heads=NUM_HEADS):
    f32, bf16 = jnp.float32, jnp.bfloat16
    num_features = p["wq"].shape[0]
    emb = p["wq"].shape[1]
    dh = emb // num_heads
    m_feat = p["proj"].shape[0]
    hm = num_heads * m_feat
    n_classes = p["w2"].shape[1]
    cpad = max(LANE, ((n_classes + LANE - 1) // LANE) * LANE)
    d_norm = float(dh) ** -0.25

    # fused q|k|v|ones|lin1 weight and bias (ones block: zero weight, bias 1.0)
    wqkvg = jnp.concatenate(
        [p["wq"], p["wk"], p["wv"], jnp.zeros((num_features, emb), f32), p["w1"]], axis=1)
    bqkvg = jnp.concatenate(
        [p["bq"], p["bk"], p["bv"], jnp.ones((1, emb), f32), p["b1"]], axis=1)

    # block-diagonal FAVOR projection / diag weights over the q|k half, d_norm folded in
    pt = d_norm * p["proj"].T                                            # [Dh, M]
    dblk = jnp.full((dh, m_feat), 0.5 * d_norm * d_norm, f32)
    bigp = jnp.zeros((2 * emb, 2 * hm), f32)
    bigd = jnp.zeros((2 * emb, 2 * hm), f32)
    for hd in range(num_heads):
        rq = slice(hd * dh, (hd + 1) * dh)
        rk = slice(emb + hd * dh, emb + (hd + 1) * dh)
        cq = slice(hd * m_feat, (hd + 1) * m_feat)
        ck = slice(hm + hd * m_feat, hm + (hd + 1) * m_feat)
        bigp = bigp.at[rq, cq].set(pt).at[rk, ck].set(pt)
        bigd = bigd.at[rq, cq].set(dblk).at[rk, ck].set(dblk)

    # head-match mask duplicated for the fused [ctx | k_cum] block: [HM, 2E]
    row_head = jnp.arange(hm)[:, None] // m_feat
    col_head = jnp.arange(emb)[None, :] // dh
    mask = (row_head == col_head).astype(f32)
    mask2 = jnp.concatenate([mask, mask], axis=1)

    # lin2 weight/bias padded to lane-dense class width
    w2p = jnp.zeros((2 * emb, cpad), f32).at[:, :n_classes].set(p["w2"])
    b2p = jnp.zeros((1, cpad), f32).at[:, :n_classes].set(p["b2"])

    arrays = dict(wqkvg=wqkvg.astype(bf16), bqkvg=bqkvg.astype(f32),
                  bigp=bigp.astype(bf16), bigd=bigd.astype(bf16),
                  mask2=mask2, w2p=w2p.astype(bf16), b2p=b2p)
    meta = dict(num_heads=num_heads, head_dim=dh, nb_features=m_feat,
                num_classes=n_classes, cpad=cpad)
    return arrays, meta


# ----------------------------------------------------------------------------
# Per-call forward: jitted (cast inputs -> single pallas_call -> slice outputs)
# ----------------------------------------------------------------------------
def make_forward(params, *, num_heads=NUM_HEADS, k_steps=APPNP_K, alpha=APPNP_ALPHA):
    packed, meta = pack_params(params, num_heads=num_heads)
    cpad = meta["cpad"]
    n_classes = meta["num_classes"]
    kernel = functools.partial(
        fused_block_kernel, num_heads=num_heads, head_dim=meta["head_dim"],
        nb_features=meta["nb_features"], num_classes=n_classes,
        k_steps=k_steps, alpha=alpha)

    @jax.jit
    def forward(x, a_hat):
        n = x.shape[0]
        args = (x.astype(jnp.bfloat16), a_hat.astype(jnp.bfloat16),
                packed["wqkvg"], packed["bqkvg"], packed["bigp"], packed["bigd"],
                packed["mask2"], packed["w2p"], packed["b2p"])
        logp_pad, h_pad = pl.pallas_call(
            kernel,
            out_shape=(jax.ShapeDtypeStruct((n, cpad), jnp.float32),
                       jax.ShapeDtypeStruct((n, cpad), jnp.float32)),
            grid=(1,),
            in_specs=[_full_spec(a.shape) for a in args],
            out_specs=(_full_spec((n, cpad)), _full_spec((n, cpad))),
            compiler_params=pltpu.CompilerParams(
                dimension_semantics=("arbitrary",)),
        )(*args)
        return logp_pad[:, :n_classes], h_pad[:, :n_classes]

    return forward


# ----------------------------------------------------------------------------
# Parameter init (PyTorch nn.Linear default-style) & pure-JAX f32 reference
# ----------------------------------------------------------------------------
def init_params(key, num_features, hidden, num_classes, nb_features, head_dim):
    ks = jax.random.split(key, 11)

    def lin(kw, kb, fan_in, fan_out):
        bound = 1.0 / math.sqrt(fan_in)
        w = jax.random.uniform(kw, (fan_in, fan_out), jnp.float32, -bound, bound)
        b = jax.random.uniform(kb, (1, fan_out), jnp.float32, -bound, bound)
        return w, b

    wq, bq = lin(ks[0], ks[1], num_features, hidden)
    wk, bk = lin(ks[2], ks[3], num_features, hidden)
    wv, bv = lin(ks[4], ks[5], num_features, hidden)
    w1, b1 = lin(ks[6], ks[7], num_features, hidden)
    w2, b2 = lin(ks[8], ks[9], 2 * hidden, num_classes)
    proj = jax.random.normal(ks[10], (nb_features, head_dim), jnp.float32)
    return dict(wq=wq, bq=bq, wk=wk, bk=bk, wv=wv, bv=bv,
                w1=w1, b1=b1, w2=w2, b2=b2, proj=proj)


def reference_forward(x, a_hat, p):
    hdot = functools.partial(jnp.dot, precision=jax.lax.Precision.HIGHEST)
    emb = p["wq"].shape[1]
    head_dim = emb // NUM_HEADS
    ratio = float(p["proj"].shape[0]) ** -0.5
    d_norm = float(head_dim) ** -0.25

    q = hdot(x, p["wq"]) + p["bq"]
    k = hdot(x, p["wk"]) + p["bk"]
    v = hdot(x, p["wv"]) + p["bv"]
    heads = []
    for h in range(NUM_HEADS):
        sl = slice(h * head_dim, (h + 1) * head_dim)
        qh, kh, vh = q[:, sl], k[:, sl], v[:, sl]
        qd = hdot(d_norm * qh, p["proj"].T)
        kd = hdot(d_norm * kh, p["proj"].T)
        qdiag = (qh ** 2).sum(-1, keepdims=True) * 0.5 * d_norm ** 2
        kdiag = (kh ** 2).sum(-1, keepdims=True) * 0.5 * d_norm ** 2
        qp = ratio * (jnp.exp(qd - qdiag - qd.max(-1, keepdims=True)) + FAVOR_EPS)
        kp = ratio * (jnp.exp(kd - kdiag - kd.max()) + FAVOR_EPS)
        kc = kp.sum(0)
        dinv = 1.0 / hdot(qp, kc)
        ctx = hdot(kp.T, vh)
        heads.append(hdot(qp, ctx) * dinv[:, None])
    trans = jnp.concatenate(heads, axis=-1)
    g1 = hdot(x, p["w1"]) + p["b1"]
    cat = _elu(jnp.concatenate([g1, trans], axis=1))
    z = _elu(hdot(cat, p["w2"]) + p["b2"])
    hfin = z
    for _ in range(APPNP_K):
        hfin = (1.0 - APPNP_ALPHA) * hdot(a_hat, hfin) + APPNP_ALPHA * z
    m = jnp.max(hfin, axis=1, keepdims=True)
    logp = hfin - (jnp.log(jnp.sum(jnp.exp(hfin - m), axis=1, keepdims=True)) + m)
    return logp, hfin


if __name__ == "__main__":
    N, NUM_FEATURES, HIDDEN, NUM_CLASSES = 128, 48, 32, 8
    HEAD_DIM = HIDDEN // NUM_HEADS
    NB_FEATURES = max(1, int(HEAD_DIM * math.log(HEAD_DIM)))   # performer default

    key = jax.random.PRNGKey(0)
    kx, ke1, ke2, kp = jax.random.split(key, 4)

    x = jax.random.normal(kx, (N, NUM_FEATURES), jnp.float32)

    # synthetic undirected edge_index -> dense symmetric-normalized adjacency (glue)
    src = jax.random.randint(ke1, (256,), 0, N)
    dst = jax.random.randint(ke2, (256,), 0, N)
    row = jnp.concatenate([src, dst])
    col = jnp.concatenate([dst, src])
    A = jnp.zeros((N, N), jnp.float32).at[row, col].set(1.0)
    eye = jnp.eye(N, dtype=jnp.float32)
    A = A * (1.0 - eye) + eye                      # drop accidental self loops, add self loops
    deg = A.sum(axis=1)
    dinv = 1.0 / jnp.sqrt(deg)
    a_hat = dinv[:, None] * A * dinv[None, :]

    params = init_params(kp, NUM_FEATURES, HIDDEN, NUM_CLASSES, NB_FEATURES, HEAD_DIM)

    forward = make_forward(params)                  # packs / casts weights ONCE
    logp, hfin = forward(x, a_hat)
    jax.block_until_ready((logp, hfin))

    ref_logp, ref_h = reference_forward(x, a_hat, params)
    assert float(jnp.max(jnp.abs(logp - ref_logp))) < 5e-2
    assert float(jnp.max(jnp.abs(hfin - ref_h))) < 5e-2

    print("KERNEL_OK")
</pallas_src>

<mosaic_0001>
module attributes {stable_mosaic.version = 11 : i64} {
  func.func @fused_block_kernel(%arg0: i32, %arg1: memref<128x48xbf16, #tpu.memory_space<vmem>>, %arg2: memref<128x128xbf16, #tpu.memory_space<vmem>>, %arg3: memref<48x160xbf16, #tpu.memory_space<vmem>>, %arg4: memref<1x160xf32, #tpu.memory_space<vmem>>, %arg5: memref<64x128xbf16, #tpu.memory_space<vmem>>, %arg6: memref<64x128xbf16, #tpu.memory_space<vmem>>, %arg7: memref<64x64xf32, #tpu.memory_space<vmem>>, %arg8: memref<64x128xbf16, #tpu.memory_space<vmem>>, %arg9: memref<1x128xf32, #tpu.memory_space<vmem>>, %arg10: memref<128x128xf32, #tpu.memory_space<vmem>>, %arg11: memref<128x128xf32, #tpu.memory_space<vmem>>) attributes {dimension_semantics = [#tpu.dimension_semantics<arbitrary>], iteration_bounds = array<i64: 1>, scalar_prefetch = 0 : i64, scratch_operands = 0 : i64, tpu.core_type = #tpu.core_type<tc>, window_params = [{pipeline_mode = #tpu.pipeline_mode<synchronous>, transform_indices = @transform_0, window_bounds = array<i64: 128, 48>}, {pipeline_mode = #tpu.pipeline_mode<synchronous>, transform_indices = @transform_1, window_bounds = array<i64: 128, 128>}, {pipeline_mode = #tpu.pipeline_mode<synchronous>, transform_indices = @transform_2, window_bounds = array<i64: 48, 160>}, {pipeline_mode = #tpu.pipeline_mode<synchronous>, transform_indices = @transform_3, window_bounds = array<i64: 1, 160>}, {pipeline_mode = #tpu.pipeline_mode<synchronous>, transform_indices = @transform_4, window_bounds = array<i64: 64, 128>}, {pipeline_mode = #tpu.pipeline_mode<synchronous>, transform_indices = @transform_5, window_bounds = array<i64: 64, 128>}, {pipeline_mode = #tpu.pipeline_mode<synchronous>, transform_indices = @transform_6, window_bounds = array<i64: 64, 64>}, {pipeline_mode = #tpu.pipeline_mode<synchronous>, transform_indices = @transform_7, window_bounds = array<i64: 64, 128>}, {pipeline_mode = #tpu.pipeline_mode<synchronous>, transform_indices = @transform_8, window_bounds = array<i64: 1, 128>}, {pipeline_mode = #tpu.pipeline_mode<synchronous>, transform_indices = @transform_9, window_bounds = array<i64: 128, 128>}, {pipeline_mode = #tpu.pipeline_mode<synchronous>, transform_indices = @transform_10, window_bounds = array<i64: 128, 128>}]} {
    %c0 = arith.constant 0 : index
    %c0_0 = arith.constant 0 : index
    %0 = vector.load %arg1[%c0, %c0_0] : memref<128x48xbf16, #tpu.memory_space<vmem>>, vector<128x48xbf16>
    %c0_1 = arith.constant 0 : index
    %c0_2 = arith.constant 0 : index
    %1 = vector.load %arg3[%c0_1, %c0_2] : memref<48x160xbf16, #tpu.memory_space<vmem>>, vector<48x160xbf16>
    %cst = arith.constant dense<0.000000e+00> : vector<128x160xf32>
    %2 = tpu.matmul %0, %1, %cst {dimension_numbers = #tpu.dot_dimension_numbers<[1], [0], [0], [1], [0, 0, 1, 1], [], []>} : vector<128x48xbf16>, vector<48x160xbf16>, vector<128x160xf32> -> vector<128x160xf32>
    %c0_3 = arith.constant 0 : index
    %c0_4 = arith.constant 0 : index
    %3 = vector.load %arg4[%c0_3, %c0_4] : memref<1x160xf32, #tpu.memory_space<vmem>>, vector<1x160xf32>
    %4 = vector.broadcast %3 : vector<1x160xf32> to vector<128x160xf32>
    %5 = arith.addf %2, %4 : vector<128x160xf32>
    %6 = vector.extract_strided_slice %5 {offsets = [0, 0], sizes = [128, 64], strides = [1, 1]} : vector<128x160xf32> to vector<128x64xf32>
    %7 = vector.extract_strided_slice %5 {offsets = [0, 64], sizes = [128, 64], strides = [1, 1]} : vector<128x160xf32> to vector<128x64xf32>
    %8 = vector.extract_strided_slice %5 {offsets = [0, 128], sizes = [128, 32], strides = [1, 1]} : vector<128x160xf32> to vector<128x32xf32>
    %9 = arith.truncf %6 : vector<128x64xf32> to vector<128x64xbf16>
    %c0_5 = arith.constant 0 : index
    %c0_6 = arith.constant 0 : index
    %10 = vector.load %arg5[%c0_5, %c0_6] : memref<64x128xbf16, #tpu.memory_space<vmem>>, vector<64x128xbf16>
    %cst_7 = arith.constant dense<0.000000e+00> : vector<128x128xf32>
    %11 = tpu.matmul %9, %10, %cst_7 {dimension_numbers = #tpu.dot_dimension_numbers<[1], [0], [0], [1], [0, 0, 1, 1], [], []>} : vector<128x64xbf16>, vector<64x128xbf16>, vector<128x128xf32> -> vector<128x128xf32>
    %12 = arith.mulf %6, %6 : vector<128x64xf32>
    %13 = arith.truncf %12 : vector<128x64xf32> to vector<128x64xbf16>
    %c0_8 = arith.constant 0 : index
    %c0_9 = arith.constant 0 : index
    %14 = vector.load %arg6[%c0_8, %c0_9] : memref<64x128xbf16, #tpu.memory_space<vmem>>, vector<64x128xbf16>
    %cst_10 = arith.constant dense<0.000000e+00> : vector<128x128xf32>
    %15 = tpu.matmul %13, %14, %cst_10 {dimension_numbers = #tpu.dot_dimension_numbers<[1], [0], [0], [1], [0, 0, 1, 1], [], []>} : vector<128x64xbf16>, vector<64x128xbf16>, vector<128x128xf32> -> vector<128x128xf32>
    %16 = vector.extract_strided_slice %11 {offsets = [0, 0], sizes = [128, 64], strides = [1, 1]} : vector<128x128xf32> to vector<128x64xf32>
    %17 = vector.extract_strided_slice %11 {offsets = [0, 64], sizes = [128, 64], strides = [1, 1]} : vector<128x128xf32> to vector<128x64xf32>
    %18 = vector.extract_strided_slice %15 {offsets = [0, 0], sizes = [128, 64], strides = [1, 1]} : vector<128x128xf32> to vector<128x64xf32>
    %19 = vector.extract_strided_slice %15 {offsets = [0, 64], sizes = [128, 64], strides = [1, 1]} : vector<128x128xf32> to vector<128x64xf32>
    %20 = tpu.iota {dimensions = array<i32: 1>} : vector<1x64xi32>
    %cst_11 = arith.constant dense<0xFF800000> : vector<64xf32>
    %21 = vector.multi_reduction <maximumf>, %17, %cst_11 [0] : vector<128x64xf32> to vector<64xf32>
    %22 = vector.shape_cast %21 : vector<64xf32> to vector<1x64xf32>
    %cst_12 = arith.constant 0.000000e+00 : f32
    %23 = vector.broadcast %cst_12 : f32 to vector<128x64xf32>
    %cst_13 = arith.constant 0.000000e+00 : f32
    %24 = vector.broadcast %cst_13 : f32 to vector<1x64xf32>
    %c0_i32 = arith.constant 0 : i32
    %25 = vector.broadcast %c0_i32 : i32 to vector<1x64xi32>
    %26 = arith.cmpi sge, %20, %25 : vector<1x64xi32>
    %c16_i32 = arith.constant 16 : i32
    %27 = vector.broadcast %c16_i32 : i32 to vector<1x64xi32>
    %28 = arith.cmpi slt, %20, %27 : vector<1x64xi32>
    %29 = arith.andi %26, %28 : vector<1x64xi1>
    %cst_14 = arith.constant -1.000000e+30 : f32
    %30 = vector.shape_cast %29 : vector<1x64xi1> to vector<1x64xi1>
    %31 = vector.broadcast %30 : vector<1x64xi1> to vector<128x64xi1>
    %32 = vector.broadcast %cst_14 : f32 to vector<128x64xf32>
    %33 = arith.select %31, %16, %32 : vector<128x64xi1>, vector<128x64xf32>
    %cst_15 = arith.constant dense<0xFF800000> : vector<128xf32>
    %34 = vector.multi_reduction <maximumf>, %33, %cst_15 [1] : vector<128x64xf32> to vector<128xf32>
    %35 = vector.shape_cast %34 : vector<128xf32> to vector<128x1xf32>
    %cst_16 = arith.constant -1.000000e+30 : f32
    %36 = vector.broadcast %cst_16 : f32 to vector<1x64xf32>
    %37 = arith.select %29, %22, %36 : vector<1x64xi1>, vector<1x64xf32>
    %38 = vector.shape_cast %37 : vector<1x64xf32> to vector<1x1x64xf32>
    %cst_17 = arith.constant dense<0xFF800000> : vector<1xf32>
    %39 = vector.multi_reduction <maximumf>, %38, %cst_17 [1, 2] : vector<1x1x64xf32> to vector<1xf32>
    %40 = vector.shape_cast %39 : vector<1xf32> to vector<1x1x1xf32>
    %41 = vector.extract %40[0, 0, 0] : f32 from vector<1x1x1xf32>
    %cst_18 = arith.constant 0.000000e+00 : f32
    %42 = vector.shape_cast %29 : vector<1x64xi1> to vector<1x64xi1>
    %43 = vector.broadcast %42 : vector<1x64xi1> to vector<128x64xi1>
    %44 = vector.shape_cast %35 : vector<128x1xf32> to vector<128x1xf32>
    %45 = vector.broadcast %44 : vector<128x1xf32> to vector<128x64xf32>
    %46 = vector.broadcast %cst_18 : f32 to vector<128x64xf32>
    %47 = arith.select %43, %45, %46 : vector<128x64xi1>, vector<128x64xf32>
    %48 = arith.addf %23, %47 : vector<128x64xf32>
    %cst_19 = arith.constant 0.000000e+00 : f32
    %49 = vector.broadcast %41 : f32 to vector<1x64xf32>
    %50 = vector.broadcast %cst_19 : f32 to vector<1x64xf32>
    %51 = arith.select %29, %49, %50 : vector<1x64xi1>, vector<1x64xf32>
    %52 = arith.addf %24, %51 : vector<1x64xf32>
    %c16_i32_20 = arith.constant 16 : i32
    %53 = vector.broadcast %c16_i32_20 : i32 to vector<1x64xi32>
    %54 = arith.cmpi sge, %20, %53 : vector<1x64xi32>
    %c32_i32 = arith.constant 32 : i32
    %55 = vector.broadcast %c32_i32 : i32 to vector<1x64xi32>
    %56 = arith.cmpi slt, %20, %55 : vector<1x64xi32>
    %57 = arith.andi %54, %56 : vector<1x64xi1>
    %cst_21 = arith.constant -1.000000e+30 : f32
    %58 = vector.shape_cast %57 : vector<1x64xi1> to vector<1x64xi1>
    %59 = vector.broadcast %58 : vector<1x64xi1> to vector<128x64xi1>
    %60 = vector.broadcast %cst_21 : f32 to vector<128x64xf32>
    %61 = arith.select %59, %16, %60 : vector<128x64xi1>, vector<128x64xf32>
    %cst_22 = arith.constant dense<0xFF800000> : vector<128xf32>
    %62 = vector.multi_reduction <maximumf>, %61, %cst_22 [1] : vector<128x64xf32> to vector<128xf32>
    %63 = vector.shape_cast %62 : vector<128xf32> to vector<128x1xf32>
    %cst_23 = arith.constant -1.000000e+30 : f32
    %64 = vector.broadcast %cst_23 : f32 to vector<1x64xf32>
    %65 = arith.select %57, %22, %64 : vector<1x64xi1>, vector<1x64xf32>
    %66 = vector.shape_cast %65 : vector<1x64xf32> to vector<1x1x64xf32>
    %cst_24 = arith.constant dense<0xFF800000> : vector<1xf32>
    %67 = vector.multi_reduction <maximumf>, %66, %cst_24 [1, 2] : vector<1x1x64xf32> to vector<1xf32>
    %68 = vector.shape_cast %67 : vector<1xf32> to vector<1x1x1xf32>
    %69 = vector.extract %68[0, 0, 0] : f32 from vector<1x1x1xf32>
    %cst_25 = arith.constant 0.000000e+00 : f32
    %70 = vector.shape_cast %57 : vector<1x64xi1> to vector<1x64xi1>
    %71 = vector.broadcast %70 : vector<1x64xi1> to vector<128x64xi1>
    %72 = vector.shape_cast %63 : vector<128x1xf32> to vector<128x1xf32>
    %73 = vector.broadcast %72 : vector<128x1xf32> to vector<128x64xf32>
    %74 = vector.broadcast %cst_25 : f32 to vector<128x64xf32>
    %75 = arith.select %71, %73, %74 : vector<128x64xi1>, vector<128x64xf32>
    %76 = arith.addf %48, %75 : vector<128x64xf32>
    %cst_26 = arith.constant 0.000000e+00 : f32
    %77 = vector.broadcast %69 : f32 to vector<1x64xf32>
    %78 = vector.broadcast %cst_26 : f32 to vector<1x64xf32>
    %79 = arith.select %57, %77, %78 : vector<1x64xi1>, vector<1x64xf32>
    %80 = arith.addf %52, %79 : vector<1x64xf32>
    %c32_i32_27 = arith.constant 32 : i32
    %81 = vector.broadcast %c32_i32_27 : i32 to vector<1x64xi32>
    %82 = arith.cmpi sge, %20, %81 : vector<1x64xi32>
    %c48_i32 = arith.constant 48 : i32
    %83 = vector.broadcast %c48_i32 : i32 to vector<1x64xi32>
    %84 = arith.cmpi slt, %20, %83 : vector<1x64xi32>
    %85 = arith.andi %82, %84 : vector<1x64xi1>
    %cst_28 = arith.constant -1.000000e+30 : f32
    %86 = vector.shape_cast %85 : vector<1x64xi1> to vector<1x64xi1>
    %87 = vector.broadcast %86 : vector<1x64xi1> to vector<128x64xi1>
    %88 = vector.broadcast %cst_28 : f32 to vector<128x64xf32>
    %89 = arith.select %87, %16, %88 : vector<128x64xi1>, vector<128x64xf32>
    %cst_29 = arith.constant dense<0xFF800000> : vector<128xf32>
    %90 = vector.multi_reduction <maximumf>, %89, %cst_29 [1] : vector<128x64xf32> to vector<128xf32>
    %91 = vector.shape_cast %90 : vector<128xf32> to vector<128x1xf32>
    %cst_30 = arith.constant -1.000000e+30 : f32
    %92 = vector.broadcast %cst_30 : f32 to vector<1x64xf32>
    %93 = arith.select %85, %22, %92 : vector<1x64xi1>, vector<1x64xf32>
    %94 = vector.shape_cast %93 : vector<1x64xf32> to vector<1x1x64xf32>
    %cst_31 = arith.constant dense<0xFF800000> : vector<1xf32>
    %95 = vector.multi_reduction <maximumf>, %94, %cst_31 [1, 2] : vector<1x1x64xf32> to vector<1xf32>
    %96 = vector.shape_cast %95 : vector<1xf32> to vector<1x1x1xf32>
    %97 = vector.extract %96[0, 0, 0] : f32 from vector<1x1x1xf32>
    %cst_32 = arith.constant 0.000000e+00 : f32
    %98 = vector.shape_cast %85 : vector<1x64xi1> to vector<1x64xi1>
    %99 = vector.broadcast %98 : vector<1x64xi1> to vector<128x64xi1>
    %100 = vector.shape_cast %91 : vector<128x1xf32> to vector<128x1xf32>
    %101 = vector.broadcast %100 : vector<128x1xf32> to vector<128x64xf32>
    %102 = vector.broadcast %cst_32 : f32 to vector<128x64xf32>
    %103 = arith.select %99, %101, %102 : vector<128x64xi1>, vector<128x64xf32>
    %104 = arith.addf %76, %103 : vector<128x64xf32>
    %cst_33 = arith.constant 0.000000e+00 : f32
    %105 = vector.broadcast %97 : f32 to vector<1x64xf32>
    %106 = vector.broadcast %cst_33 : f32 to vector<1x64xf32>
    %107 = arith.select %85, %105, %106 : vector<1x64xi1>, vector<1x64xf32>
    %108 = arith.addf %80, %107 : vector<1x64xf32>
    %c48_i32_34 = arith.constant 48 : i32
    %109 = vector.broadcast %c48_i32_34 : i32 to vector<1x64xi32>
    %110 = arith.cmpi sge, %20, %109 : vector<1x64xi32>
    %c64_i32 = arith.constant 64 : i32
    %111 = vector.broadcast %c64_i32 : i32 to vector<1x64xi32>
    %112 = arith.cmpi slt, %20, %111 : vector<1x64xi32>
    %113 = arith.andi %110, %112 : vector<1x64xi1>
    %cst_35 = arith.constant -1.000000e+30 : f32
    %114 = vector.shape_cast %113 : vector<1x64xi1> to vector<1x64xi1>
    %115 = vector.broadcast %114 : vector<1x64xi1> to vector<128x64xi1>
    %116 = vector.broadcast %cst_35 : f32 to vector<128x64xf32>
    %117 = arith.select %115, %16, %116 : vector<128x64xi1>, vector<128x64xf32>
    %cst_36 = arith.constant dense<0xFF800000> : vector<128xf32>
    %118 = vector.multi_reduction <maximumf>, %117, %cst_36 [1] : vector<128x64xf32> to vector<128xf32>
    %119 = vector.shape_cast %118 : vector<128xf32> to vector<128x1xf32>
    %cst_37 = arith.constant -1.000000e+30 : f32
    %120 = vector.broadcast %cst_37 : f32 to vector<1x64xf32>
    %121 = arith.select %113, %22, %120 : vector<1x64xi1>, vector<1x64xf32>
    %122 = vector.shape_cast %121 : vector<1x64xf32> to vector<1x1x64xf32>
    %cst_38 = arith.constant dense<0xFF800000> : vector<1xf32>
    %123 = vector.multi_reduction <maximumf>, %122, %cst_38 [1, 2] : vector<1x1x64xf32> to vector<1xf32>
    %124 = vector.shape_cast %123 : vector<1xf32> to vector<1x1x1xf32>
    %125 = vector.extract %124[0, 0, 0] : f32 from vector<1x1x1xf32>
    %cst_39 = arith.constant 0.000000e+00 : f32
    %126 = vector.shape_cast %113 : vector<1x64xi1> to vector<1x64xi1>
    %127 = vector.broadcast %126 : vector<1x64xi1> to vector<128x64xi1>
    %128 = vector.shape_cast %119 : vector<128x1xf32> to vector<128x1xf32>
    %129 = vector.broadcast %128 : vector<128x1xf32> to vector<128x64xf32>
    %130 = vector.broadcast %cst_39 : f32 to vector<128x64xf32>
    %131 = arith.select %127, %129, %130 : vector<128x64xi1>, vector<128x64xf32>
    %132 = arith.addf %104, %131 : vector<128x64xf32>
    %cst_40 = arith.constant 0.000000e+00 : f32
    %133 = vector.broadcast %125 : f32 to vector<1x64xf32>
    %134 = vector.broadcast %cst_40 : f32 to vector<1x64xf32>
    %135 = arith.select %113, %133, %134 : vector<1x64xi1>, vector<1x64xf32>
    %136 = arith.addf %108, %135 : vector<1x64xf32>
    %137 = arith.subf %16, %18 : vector<128x64xf32>
    %138 = arith.subf %137, %132 : vector<128x64xf32>
    %139 = math.exp %138 : vector<128x64xf32>
    %cst_41 = arith.constant 9.99999974E-5 : f32
    %140 = vector.broadcast %cst_41 : f32 to vector<128x64xf32>
    %141 = arith.addf %139, %140 : vector<128x64xf32>
    %cst_42 = arith.constant 2.500000e-01 : f32
    %142 = vector.broadcast %cst_42 : f32 to vector<128x64xf32>
    %143 = arith.mulf %142, %141 : vector<128x64xf32>
    %144 = arith.subf %17, %19 : vector<128x64xf32>
    %145 = vector.broadcast %136 : vector<1x64xf32> to vector<128x64xf32>
    %146 = arith.subf %144, %145 : vector<128x64xf32>
    %147 = math.exp %146 : vector<128x64xf32>
    %cst_43 = arith.constant 9.99999974E-5 : f32
    %148 = vector.broadcast %cst_43 : f32 to vector<128x64xf32>
    %149 = arith.addf %147, %148 : vector<128x64xf32>
    %cst_44 = arith.constant 2.500000e-01 : f32
    %150 = vector.broadcast %cst_44 : f32 to vector<128x64xf32>
    %151 = arith.mulf %150, %149 : vector<128x64xf32>
    %152 = arith.truncf %143 : vector<128x64xf32> to vector<128x64xbf16>
    %153 = arith.truncf %151 : vector<128x64xf32> to vector<128x64xbf16>
    %154 = arith.truncf %7 : vector<128x64xf32> to vector<128x64xbf16>
    %cst_45 = arith.constant dense<0.000000e+00> : vector<64x64xf32>
    %155 = tpu.matmul %153, %154, %cst_45 {dimension_numbers = #tpu.dot_dimension_numbers<[0], [0], [1], [1], [0, 1, 1, 1], [], []>} : vector<128x64xbf16>, vector<128x64xbf16>, vector<64x64xf32> -> vector<64x64xf32>
    %c0_46 = arith.constant 0 : index
    %c0_47 = arith.constant 0 : index
    %156 = vector.load %arg7[%c0_46, %c0_47] : memref<64x64xf32, #tpu.memory_space<vmem>>, vector<64x64xf32>
    %157 = arith.mulf %155, %156 : vector<64x64xf32>
    %158 = arith.truncf %157 : vector<64x64xf32> to vector<64x64xbf16>
    %cst_48 = arith.constant dense<0.000000e+00> : vector<128x64xf32>
    %159 = tpu.matmul %152, %158, %cst_48 {dimension_numbers = #tpu.dot_dimension_numbers<[1], [0], [0], [1], [0, 0, 1, 1], [], []>} : vector<128x64xbf16>, vector<64x64xbf16>, vector<128x64xf32> -> vector<128x64xf32>
    %160 = vector.extract_strided_slice %159 {offsets = [0, 0], sizes = [128, 32], strides = [1, 1]} : vector<128x64xf32> to vector<128x32xf32>
    %161 = vector.extract_strided_slice %159 {offsets = [0, 32], sizes = [128, 32], strides = [1, 1]} : vector<128x64xf32> to vector<128x32xf32>
    %162 = tpu.reciprocal %161 {approx = true} : vector<128x32xf32> -> vector<128x32xf32>
    %163 = arith.mulf %160, %162 : vector<128x32xf32>
    %c0_49 = arith.constant 0 : index
    %c0_50 = arith.constant 0 : index
    %164 = vector.load %arg8[%c0_49, %c0_50] : memref<64x128xbf16, #tpu.memory_space<vmem>>, vector<64x128xbf16>
    %cst_51 = arith.constant 0.000000e+00 : f32
    %165 = vector.broadcast %cst_51 : f32 to vector<128x32xf32>
    %166 = arith.cmpf ogt, %8, %165 : vector<128x32xf32>
    %cst_52 = arith.constant 0.000000e+00 : f32
    %167 = vector.broadcast %cst_52 : f32 to vector<128x32xf32>
    %168 = arith.minimumf %8, %167 : vector<128x32xf32>
    %169 = math.exp %168 : vector<128x32xf32>
    %cst_53 = arith.constant 1.000000e+00 : f32
    %170 = vector.broadcast %cst_53 : f32 to vector<128x32xf32>
    %171 = arith.subf %169, %170 : vector<128x32xf32>
    %172 = arith.select %166, %8, %171 : vector<128x32xi1>, vector<128x32xf32>
    %173 = arith.truncf %172 : vector<128x32xf32> to vector<128x32xbf16>
    %174 = vector.extract_strided_slice %164 {offsets = [0, 0], sizes = [32, 128], strides = [1, 1]} : vector<64x128xbf16> to vector<32x128xbf16>
    %cst_54 = arith.constant dense<0.000000e+00> : vector<128x128xf32>
    %175 = tpu.matmul %173, %174, %cst_54 {dimension_numbers = #tpu.dot_dimension_numbers<[1], [0], [0], [1], [0, 0, 1, 1], [], []>} : vector<128x32xbf16>, vector<32x128xbf16>, vector<128x128xf32> -> vector<128x128xf32>
    %cst_55 = arith.constant 0.000000e+00 : f32
    %176 = vector.broadcast %cst_55 : f32 to vector<128x32xf32>
    %177 = arith.cmpf ogt, %163, %176 : vector<128x32xf32>
    %cst_56 = arith.constant 0.000000e+00 : f32
    %178 = vector.broadcast %cst_56 : f32 to vector<128x32xf32>
    %179 = arith.minimumf %163, %178 : vector<128x32xf32>
    %180 = math.exp %179 : vector<128x32xf32>
    %cst_57 = arith.constant 1.000000e+00 : f32
    %181 = vector.broadcast %cst_57 : f32 to vector<128x32xf32>
    %182 = arith.subf %180, %181 : vector<128x32xf32>
    %183 = arith.select %177, %163, %182 : vector<128x32xi1>, vector<128x32xf32>
    %184 = arith.truncf %183 : vector<128x32xf32> to vector<128x32xbf16>
    %185 = vector.extract_strided_slice %164 {offsets = [32, 0], sizes = [32, 128], strides = [1, 1]} : vector<64x128xbf16> to vector<32x128xbf16>
    %cst_58 = arith.constant dense<0.000000e+00> : vector<128x128xf32>
    %186 = tpu.matmul %184, %185, %cst_58 {dimension_numbers = #tpu.dot_dimension_numbers<[1], [0], [0], [1], [0, 0, 1, 1], [], []>} : vector<128x32xbf16>, vector<32x128xbf16>, vector<128x128xf32> -> vector<128x128xf32>
    %187 = arith.addf %175, %186 : vector<128x128xf32>
    %c0_59 = arith.constant 0 : index
    %c0_60 = arith.constant 0 : index
    %188 = vector.load %arg9[%c0_59, %c0_60] : memref<1x128xf32, #tpu.memory_space<vmem>>, vector<1x128xf32>
    %189 = vector.broadcast %188 : vector<1x128xf32> to vector<128x128xf32>
    %190 = arith.addf %187, %189 : vector<128x128xf32>
    %cst_61 = arith.constant 0.000000e+00 : f32
    %191 = vector.broadcast %cst_61 : f32 to vector<128x128xf32>
    %192 = arith.cmpf ogt, %190, %191 : vector<128x128xf32>
    %cst_62 = arith.constant 0.000000e+00 : f32
    %193 = vector.broadcast %cst_62 : f32 to vector<128x128xf32>
    %194 = arith.minimumf %190, %193 : vector<128x128xf32>
    %195 = math.exp %194 : vector<128x128xf32>
    %cst_63 = arith.constant 1.000000e+00 : f32
    %196 = vector.broadcast %cst_63 : f32 to vector<128x128xf32>
    %197 = arith.subf %195, %196 : vector<128x128xf32>
    %198 = arith.select %192, %190, %197 : vector<128x128xi1>, vector<128x128xf32>
    %c0_64 = arith.constant 0 : index
    %c0_65 = arith.constant 0 : index
    %199 = vector.load %arg2[%c0_64, %c0_65] : memref<128x128xbf16, #tpu.memory_space<vmem>>, vector<128x128xbf16>
    %cst_66 = arith.constant dense<0.000000e+00> : vector<128x128xf32>
    %200 = tpu.matmul %199, %199, %cst_66 {dimension_numbers = #tpu.dot_dimension_numbers<[1], [0], [0], [1], [0, 0, 1, 1], [], []>} : vector<128x128xbf16>, vector<128x128xbf16>, vector<128x128xf32> -> vector<128x128xf32>
    %201 = arith.truncf %200 : vector<128x128xf32> to vector<128x128xbf16>
    %202 = arith.truncf %198 : vector<128x128xf32> to vector<128x128xbf16>
    %cst_67 = arith.constant dense<0.000000e+00> : vector<128x128xf32>
    %203 = tpu.matmul %199, %202, %cst_67 {dimension_numbers = #tpu.dot_dimension_numbers<[1], [0], [0], [1], [0, 0, 1, 1], [], []>} : vector<128x128xbf16>, vector<128x128xbf16>, vector<128x128xf32> -> vector<128x128xf32>
    %cst_68 = arith.constant 9.000000e-02 : f32
    %204 = vector.broadcast %cst_68 : f32 to vector<128x128xf32>
    %205 = arith.mulf %204, %203 : vector<128x128xf32>
    %cst_69 = arith.constant 1.000000e-01 : f32
    %206 = vector.broadcast %cst_69 : f32 to vector<128x128xf32>
    %207 = arith.mulf %206, %198 : vector<128x128xf32>
    %208 = arith.addf %205, %207 : vector<128x128xf32>
    %209 = arith.truncf %198 : vector<128x128xf32> to vector<128x128xbf16>
    %cst_70 = arith.constant dense<0.000000e+00> : vector<128x128xf32>
    %210 = tpu.matmul %201, %209, %cst_70 {dimension_numbers = #tpu.dot_dimension_numbers<[1], [0], [0], [1], [0, 0, 1, 1], [], []>} : vector<128x128xbf16>, vector<128x128xbf16>, vector<128x128xf32> -> vector<128x128xf32>
    %cst_71 = arith.constant 8.100000e-01 : f32
    %211 = vector.broadcast %cst_71 : f32 to vector<128x128xf32>
    %212 = arith.mulf %211, %210 : vector<128x128xf32>
    %213 = arith.addf %212, %208 : vector<128x128xf32>
    %214 = arith.truncf %213 : vector<128x128xf32> to vector<128x128xbf16>
    %cst_72 = arith.constant dense<0.000000e+00> : vector<128x128xf32>
    %215 = tpu.matmul %201, %214, %cst_72 {dimension_numbers = #tpu.dot_dimension_numbers<[1], [0], [0], [1], [0, 0, 1, 1], [], []>} : vector<128x128xbf16>, vector<128x128xbf16>, vector<128x128xf32> -> vector<128x128xf32>
    %cst_73 = arith.constant 8.100000e-01 : f32
    %216 = vector.broadcast %cst_73 : f32 to vector<128x128xf32>
    %217 = arith.mulf %216, %215 : vector<128x128xf32>
    %218 = arith.addf %217, %208 : vector<128x128xf32>
    %219 = arith.truncf %218 : vector<128x128xf32> to vector<128x128xbf16>
    %cst_74 = arith.constant dense<0.000000e+00> : vector<128x128xf32>
    %220 = tpu.matmul %201, %219, %cst_74 {dimension_numbers = #tpu.dot_dimension_numbers<[1], [0], [0], [1], [0, 0, 1, 1], [], []>} : vector<128x128xbf16>, vector<128x128xbf16>, vector<128x128xf32> -> vector<128x128xf32>
    %cst_75 = arith.constant 8.100000e-01 : f32
    %221 = vector.broadcast %cst_75 : f32 to vector<128x128xf32>
    %222 = arith.mulf %221, %220 : vector<128x128xf32>
    %223 = arith.addf %222, %208 : vector<128x128xf32>
    %224 = arith.truncf %223 : vector<128x128xf32> to vector<128x128xbf16>
    %cst_76 = arith.constant dense<0.000000e+00> : vector<128x128xf32>
    %225 = tpu.matmul %201, %224, %cst_76 {dimension_numbers = #tpu.dot_dimension_numbers<[1], [0], [0], [1], [0, 0, 1, 1], [], []>} : vector<128x128xbf16>, vector<128x128xbf16>, vector<128x128xf32> -> vector<128x128xf32>
    %cst_77 = arith.constant 8.100000e-01 : f32
    %226 = vector.broadcast %cst_77 : f32 to vector<128x128xf32>
    %227 = arith.mulf %226, %225 : vector<128x128xf32>
    %228 = arith.addf %227, %208 : vector<128x128xf32>
    %229 = arith.truncf %228 : vector<128x128xf32> to vector<128x128xbf16>
    %cst_78 = arith.constant dense<0.000000e+00> : vector<128x128xf32>
    %230 = tpu.matmul %201, %229, %cst_78 {dimension_numbers = #tpu.dot_dimension_numbers<[1], [0], [0], [1], [0, 0, 1, 1], [], []>} : vector<128x128xbf16>, vector<128x128xbf16>, vector<128x128xf32> -> vector<128x128xf32>
    %cst_79 = arith.constant 8.100000e-01 : f32
    %231 = vector.broadcast %cst_79 : f32 to vector<128x128xf32>
    %232 = arith.mulf %231, %230 : vector<128x128xf32>
    %233 = arith.addf %232, %208 : vector<128x128xf32>
    %234 = tpu.iota {dimensions = array<i32: 1>} : vector<128x128xi32>
    %c8_i32 = arith.constant 8 : i32
    %235 = vector.broadcast %c8_i32 : i32 to vector<128x128xi32>
    %236 = arith.cmpi slt, %234, %235 : vector<128x128xi32>
    %cst_80 = arith.constant -1.000000e+30 : f32
    %237 = vector.broadcast %cst_80 : f32 to vector<128x128xf32>
    %238 = arith.select %236, %233, %237 : vector<128x128xi1>, vector<128x128xf32>
    %cst_81 = arith.constant dense<0xFF800000> : vector<128xf32>
    %239 = vector.multi_reduction <maximumf>, %238, %cst_81 [1] : vector<128x128xf32> to vector<128xf32>
    %240 = vector.shape_cast %239 : vector<128xf32> to vector<128x1xf32>
    %241 = vector.broadcast %240 : vector<128x1xf32> to vector<128x128xf32>
    %242 = arith.subf %238, %241 : vector<128x128xf32>
    %243 = math.exp %242 : vector<128x128xf32>
    %cst_82 = arith.constant dense<0.000000e+00> : vector<128xf32>
    %244 = vector.multi_reduction <add>, %243, %cst_82 [1] : vector<128x128xf32> to vector<128xf32>
    %245 = vector.shape_cast %244 : vector<128xf32> to vector<128x1xf32>
    %246 = math.log %245 : vector<128x1xf32>
    %247 = arith.addf %246, %240 : vector<128x1xf32>
    %248 = vector.broadcast %247 : vector<128x1xf32> to vector<128x128xf32>
    %249 = arith.subf %233, %248 : vector<128x128xf32>
    %cst_83 = arith.constant 0.000000e+00 : f32
    %250 = vector.broadcast %cst_83 : f32 to vector<128x128xf32>
    %251 = arith.select %236, %249, %250 : vector<128x128xi1>, vector<128x128xf32>
    %c0_84 = arith.constant 0 : index
    %c0_85 = arith.constant 0 : index
    %252 = vector.load %arg10[%c0_84, %c0_85] : memref<128x128xf32, #tpu.memory_space<vmem>>, vector<128x128xf32>
    tpu.vector_store %arg10[%c0_84, %c0_85], %251 {strides = array<i32>} : memref<128x128xf32, #tpu.memory_space<vmem>>, vector<128x128xf32>,
    %c0_86 = arith.constant 0 : index
    %c0_87 = arith.constant 0 : index
    %253 = vector.load %arg11[%c0_86, %c0_87] : memref<128x128xf32, #tpu.memory_space<vmem>>, vector<128x128xf32>
    tpu.vector_store %arg11[%c0_86, %c0_87], %233 {strides = array<i32>} : memref<128x128xf32, #tpu.memory_space<vmem>>, vector<128x128xf32>,
    return
  }
  func.func @transform_0(%arg0: i32) -> (i32, i32) {
    %c0_i32 = arith.constant 0 : i32
    %c0_i32_0 = arith.constant 0 : i32
    %c0_i32_1 = arith.constant 0 : i32
    return %c0_i32, %c0_i32_0 : i32, i32
  }
  func.func @transform_1(%arg0: i32) -> (i32, i32) {
    %c0_i32 = arith.constant 0 : i32
    %c0_i32_0 = arith.constant 0 : i32
    %c0_i32_1 = arith.constant 0 : i32
    return %c0_i32, %c0_i32_0 : i32, i32
  }
  func.func @transform_2(%arg0: i32) -> (i32, i32) {
    %c0_i32 = arith.constant 0 : i32
    %c0_i32_0 = arith.constant 0 : i32
    %c0_i32_1 = arith.constant 0 : i32
    return %c0_i32, %c0_i32_0 : i32, i32
  }
  func.func @transform_3(%arg0: i32) -> (i32, i32) {
    %c0_i32 = arith.constant 0 : i32
    %c0_i32_0 = arith.constant 0 : i32
    %c0_i32_1 = arith.constant 0 : i32
    return %c0_i32, %c0_i32_0 : i32, i32
  }
  func.func @transform_4(%arg0: i32) -> (i32, i32) {
    %c0_i32 = arith.constant 0 : i32
    %c0_i32_0 = arith.constant 0 : i32
    %c0_i32_1 = arith.constant 0 : i32
    return %c0_i32, %c0_i32_0 : i32, i32
  }
  func.func @transform_5(%arg0: i32) -> (i32, i32) {
    %c0_i32 = arith.constant 0 : i32
    %c0_i32_0 = arith.constant 0 : i32
    %c0_i32_1 = arith.constant 0 : i32
    return %c0_i32, %c0_i32_0 : i32, i32
  }
  func.func @transform_6(%arg0: i32) -> (i32, i32) {
    %c0_i32 = arith.constant 0 : i32
    %c0_i32_0 = arith.constant 0 : i32
    %c0_i32_1 = arith.constant 0 : i32
    return %c0_i32, %c0_i32_0 : i32, i32
  }
  func.func @transform_7(%arg0: i32) -> (i32, i32) {
    %c0_i32 = arith.constant 0 : i32
    %c0_i32_0 = arith.constant 0 : i32
    %c0_i32_1 = arith.constant 0 : i32
    return %c0_i32, %c0_i32_0 : i32, i32
  }
  func.func @transform_8(%arg0: i32) -> (i32, i32) {
    %c0_i32 = arith.constant 0 : i32
    %c0_i32_0 = arith.constant 0 : i32
    %c0_i32_1 = arith.constant 0 : i32
    return %c0_i32, %c0_i32_0 : i32, i32
  }
  func.func @transform_9(%arg0: i32) -> (i32, i32) {
    %c0_i32 = arith.constant 0 : i32
    %c0_i32_0 = arith.constant 0 : i32
    %c0_i32_1 = arith.constant 0 : i32
    return %c0_i32, %c0_i32_0 : i32, i32
  }
  func.func @transform_10(%arg0: i32) -> (i32, i32) {
    %c0_i32 = arith.constant 0 : i32
    %c0_i32_0 = arith.constant 0 : i32
    %c0_i32_1 = arith.constant 0 : i32
    return %c0_i32, %c0_i32_0 : i32, i32
  }
}

</mosaic_0001>

<llo_original>
// kernel: forward.1
$region0: #{forward.1}
  #allocation0 [shape = 'u32[]', space=smem, size = 0x4, offset = 0x4, fixed_abs, tag = 'smem constant byte address 0x4 - core index']
  #allocation1 [shape = 'u32[144,128]{1,0:T(1,128)}', space=vmem, size = 0x12000, scoped, tag = 'internal scratch']
  %s0 = inlined_call_operand.vmem [shape: bf16[128,48], index: 0, kind: input, shape index: {}]
  %s1 = inlined_call_operand.vmem [shape: bf16[128,128], index: 1, kind: input, shape index: {}]
  %s2 = inlined_call_operand.vmem [shape: bf16[48,160], index: 2, kind: input, shape index: {}]
  %s3 = inlined_call_operand.vmem [shape: f32[1,160], index: 3, kind: input, shape index: {}]
  %s4 = inlined_call_operand.vmem [shape: bf16[64,128], index: 4, kind: input, shape index: {}]
  %s5 = inlined_call_operand.vmem [shape: bf16[64,128], index: 5, kind: input, shape index: {}]
  %s6 = inlined_call_operand.vmem [shape: f32[64,64], index: 6, kind: input, shape index: {}]
  %s7 = inlined_call_operand.vmem [shape: bf16[64,128], index: 7, kind: input, shape index: {}]
  %s8 = inlined_call_operand.vmem [shape: f32[1,128], index: 8, kind: input, shape index: {}]
  %s9 = inlined_call_operand.vmem [shape: f32[128,128], index: 9, kind: output, shape index: {0}]
  %s10 = inlined_call_operand.vmem [shape: f32[128,128], index: 10, kind: output, shape index: {1}]
  %11 = xla_tuple %s9, %s10
  %s12 = sld [smem:[#allocation0]]
  $region54: #{forward.1} parent=0
    _
  %s14 = ssub.s32 1, %s12
  %s15 = scalar_select 0, %s14, %s12
  // Predicated region
  $region2: #{forward.1} parent=0 // pred_check
    _
  $region3: #{forward.1} parent=0 // pred_check_branch
    %17 = sbr.rel (0) target = $region5
  $region4: #{forward.1} parent=0 // pred_region
    _
  $region5: #{forward.1} parent=0 // pred_fallthru
    _
  // Predicated region
  $region6: #{forward.1} parent=0 // pred_check
    _
  $region7: #{forward.1} parent=0 // pred_check_branch
    %19 = sbr.rel (0) target = $region9
  $region8: #{forward.1} parent=0 // pred_region
    _
  $region9: #{forward.1} parent=0 // pred_fallthru
    _
  // Predicated region
  $region10: #{forward.1} parent=0 // pred_check
    _
  $region11: #{forward.1} parent=0 // pred_check_branch
    %21 = sbr.rel (0) target = $region13
  $region12: #{forward.1} parent=0 // pred_region
    _
  $region13: #{forward.1} parent=0 // pred_fallthru
    _
  // Predicated region
  $region14: #{forward.1} parent=0 // pred_check
    _
  $region15: #{forward.1} parent=0 // pred_check_branch
    %23 = sbr.rel (0) target = $region17
  $region16: #{forward.1} parent=0 // pred_region
    _
  $region17: #{forward.1} parent=0 // pred_fallthru
    _
  // Predicated region
  $region18: #{forward.1} parent=0 // pred_check
    _
  $region19: #{forward.1} parent=0 // pred_check_branch
    %25 = sbr.rel (0) target = $region21
  $region20: #{forward.1} parent=0 // pred_region
    _
  $region21: #{forward.1} parent=0 // pred_fallthru
    _
  // Predicated region
  $region22: #{forward.1} parent=0 // pred_check
    _
  $region23: #{forward.1} parent=0 // pred_check_branch
    %27 = sbr.rel (0) target = $region25
  $region24: #{forward.1} parent=0 // pred_region
    _
  $region25: #{forward.1} parent=0 // pred_fallthru
    _
  // Predicated region
  $region26: #{forward.1} parent=0 // pred_check
    _
  $region27: #{forward.1} parent=0 // pred_check_branch
    %29 = sbr.rel (0) target = $region29
  $region28: #{forward.1} parent=0 // pred_region
    _
  $region29: #{forward.1} parent=0 // pred_fallthru
    _
  // Predicated region
  $region30: #{forward.1} parent=0 // pred_check
    _
  $region31: #{forward.1} parent=0 // pred_check_branch
    %31 = sbr.rel (0) target = $region33
  $region32: #{forward.1} parent=0 // pred_region
    _
  $region33: #{forward.1} parent=0 // pred_fallthru
    _
  // Predicated region
  $region34: #{forward.1} parent=0 // pred_check
    _
  $region35: #{forward.1} parent=0 // pred_check_branch
    %33 = sbr.rel (0) target = $region37
  $region36: #{forward.1} parent=0 // pred_region
    _
  $region37: #{forward.1} parent=0 // pred_fallthru
    _
  %v35 = vld [vmem:[%s0] sm:$0xf]
  %v36 = vld [vmem:[%s0 + $0x4] sm:$0xf]
  %v37 = vld [vmem:[%s0 + $0x8] sm:$0xf]
  %v38 = vld [vmem:[%s0 + $0xc] sm:$0xf]
  %v39 = vld [vmem:[%s0 + $0x10] sm:$0xf]
  %v40 = vld [vmem:[%s0 + $0x14] sm:$0xf]
  %v41 = vld [vmem:[%s0 + $0x18] sm:$0xf]
  %v42 = vld [vmem:[%s0 + $0x1c] sm:$0xf]
  %v43 = vld [vmem:[%s0 + $0x20] sm:$0xf]
  %v44 = vld [vmem:[%s0 + $0x24] sm:$0xf]
  %v45 = vld [vmem:[%s0 + $0x28] sm:$0xf]
  %v46 = vld [vmem:[%s0 + $0x2c] sm:$0xf]
  %v47 = vld [vmem:[%s0 + $0x30] sm:$0xf]
  %v48 = vld [vmem:[%s0 + $0x34] sm:$0xf]
  %v49 = vld [vmem:[%s0 + $0x38] sm:$0xf]
  %v50 = vld [vmem:[%s0 + $0x3c] sm:$0xf]
  %v51 = vld [vmem:[%s2] sm:$0xff]
  %v52 = vld [vmem:[%s2 + $0x8] sm:$0xff]
  %v53 = vld [vmem:[%s2 + $0x10] sm:$0xff]
  %v54 = vld [vmem:[%s2 + $0x18] sm:$0xff]
  %v55 = vld [vmem:[%s2 + $0x20] sm:$0xff]
  %v56 = vld [vmem:[%s2 + $0x28] sm:$0xff]
  %v57 = vld [vmem:[%s3] sm:$0x3]
  %v59 = vlaneseq
  %v60 = vshrl.u32 %v59, 7
  %v61 = vsub.s32 0, %v60
  %v62 = vrot.slane %v57, %v61
  %v63 = vlaneseq
  %v64 = vshrl.u32 %v63, 7
  %v65 = vsub.s32 1, %v64
  %v66 = vrot.slane %v57, %v65
  %v85 = vunpack.c.l.b16 %v35
  %v86 = vunpack.c.l.b16 %v36
  %v87 = vunpack.c.l.b16 %v37
  %v88 = vunpack.c.l.b16 %v38
  %v89 = vunpack.c.l.b16 %v39
  %v90 = vunpack.c.l.b16 %v40
  %v91 = vunpack.c.l.b16 %v41
  %v92 = vunpack.c.l.b16 %v42
  %v93 = vunpack.c.l.b16 %v43
  %v94 = vunpack.c.l.b16 %v44
  %v95 = vunpack.c.l.b16 %v45
  %v96 = vunpack.c.l.b16 %v46
  %v97 = vunpack.c.l.b16 %v47
  %v98 = vunpack.c.l.b16 %v48
  %v99 = vunpack.c.l.b16 %v49
  %v100 = vunpack.c.l.b16 %v50
  %v101 = vpack.c.b16 %v86, %v85
  %v102 = vpack.c.b16 %v88, %v87
  %v103 = vpack.c.b16 %v90, %v89
  %v104 = vpack.c.b16 %v92, %v91
  %v105 = vpack.c.b16 %v94, %v93
  %v106 = vpack.c.b16 %v96, %v95
  %v107 = vpack.c.b16 %v98, %v97
  %v108 = vpack.c.b16 %v100, %v99
  %v115 = vunpack.c.l.b16 %v51
  %v116 = vunpack.c.h.b16 %v51
  %v117 = vunpack.c.l.b16 %v52
  %v118 = vunpack.c.h.b16 %v52
  %v119 = vunpack.c.l.b16 %v53
  %v120 = vunpack.c.h.b16 %v53
  %v121 = vunpack.c.l.b16 %v54
  %v122 = vunpack.c.h.b16 %v54
  %v123 = vunpack.c.l.b16 %v55
  %v124 = vunpack.c.h.b16 %v55
  %v125 = vunpack.c.l.b16 %v56
  %v126 = vunpack.c.h.b16 %v56
  %v127 = vpack.c.b16 %v117, %v115
  %v128 = vpack.c.b16 %v118, %v116
  %v129 = vpack.c.b16 %v121, %v119
  %v130 = vpack.c.b16 %v122, %v120
  %v131 = vpack.c.b16 %v125, %v123
  %v132 = vpack.c.b16 %v126, %v124
  %vm139 = vcmask 392192
  %v141 = vsel %vm139, %v101, 0
  %v144 = vsel %vm139, %v102, 0
  %v147 = vsel %vm139, %v103, 0
  %v150 = vsel %vm139, %v104, 0
  %v153 = vsel %vm139, %v105, 0
  %v156 = vsel %vm139, %v106, 0
  %v159 = vsel %vm139, %v107, 0
  %v162 = vsel %vm139, %v108, 0
  %164 = vmatprep.subr.bf16.mxu0 %v128
  %165 = vmatpush1.bf16.msra.mxu0 %v127
  %166 = vmatprep.subr.bf16.mxu0 %v130
  %167 = vmatpush1.bf16.msra.mxu0 %v129
  %168 = vmatprep.subr.bf16.mxu0 %v132
  %169 = vmatpush1.bf16.msra.mxu0 %v131
  %170 = vmatprep.subr.bf16.mxu0 0
  %171 = vmatpush1.bf16.msra.mxu0 0
  %172 = vmatprep.subr.bf16.mxu0 0
  %173 = vmatpush1.bf16.msra.mxu0 0
  %174 = vmatprep.subr.bf16.mxu0 0
  %175 = vmatpush1.bf16.msra.mxu0 0
  %176 = vmatprep.subr.bf16.mxu0 0
  %177 = vmatpush1.bf16.msra.mxu0 0
  %178 = vmatprep.subr.bf16.mxu0 0
  %179 = vmatpush1.bf16.msra.mxu0 0
  %180 = vmatprep.subr.bf16.mxu0 0
  %181 = vmatpush1.bf16.msra.mxu0 0
  %182 = vmatprep.subr.bf16.mxu0 0
  %183 = vmatpush1.bf16.msra.mxu0 0
  %184 = vmatprep.subr.bf16.mxu0 0
  %185 = vmatpush1.bf16.msra.mxu0 0
  %186 = vmatprep.subr.bf16.mxu0 0
  %187 = vmatpush1.bf16.msra.mxu0 0
  %188 = vmatprep.subr.bf16.mxu0 0
  %189 = vmatpush1.bf16.msra.mxu0 0
  %190 = vmatprep.subr.bf16.mxu0 0
  %191 = vmatpush1.bf16.msra.mxu0 0
  %192 = vmatprep.subr.bf16.mxu0 0
  %193 = vmatpush1.bf16.msra.mxu0 0
  %194 = vmatprep.subr.bf16.mxu0 0
  %195 = vmatpush1.bf16.msra.mxu0 0
  %196 = vmatprep.mubr.bf16.mxu0 0
  %197 = vmatmul.mubr.bf16.gmra.mrb[0].mxu0 %v141
  %v198 = vpop.f32.mrb[0].mxu0
  %v199 = vadd.f32 %v62, %v198
  %v200 = vpop.f32.mrb[0].mxu0
  %v201 = vadd.f32 %v66, %v200
  %v202 = vpop.f32.mrb[0].mxu0
  %v203 = vadd.f32 %v62, %v202
  %v204 = vpop.f32.mrb[0].mxu0
  %v205 = vadd.f32 %v66, %v204
  %206 = vmatprep.mubr.bf16.mxu0 0
  %207 = vmatmul.mubr.bf16.gmra.mrb[0].mxu0 %v144
  %v208 = vpop.f32.mrb[0].mxu0
  %v209 = vadd.f32 %v62, %v208
  %v210 = vpop.f32.mrb[0].mxu0
  %v211 = vadd.f32 %v66, %v210
  %v212 = vpop.f32.mrb[0].mxu0
  %v213 = vadd.f32 %v62, %v212
  %v214 = vpop.f32.mrb[0].mxu0
  %v215 = vadd.f32 %v66, %v214
  %216 = vmatprep.mubr.bf16.mxu0 0
  %217 = vmatmul.mubr.bf16.gmra.mrb[0].mxu0 %v147
  %v218 = vpop.f32.mrb[0].mxu0
  %v219 = vadd.f32 %v62, %v218
  %v220 = vpop.f32.mrb[0].mxu0
  %v221 = vadd.f32 %v66, %v220
  %v222 = vpop.f32.mrb[0].mxu0
  %v223 = vadd.f32 %v62, %v222
  %v224 = vpop.f32.mrb[0].mxu0
  %v225 = vadd.f32 %v66, %v224
  %226 = vmatprep.mubr.bf16.mxu0 0
  %227 = vmatmul.mubr.bf16.gmra.mrb[0].mxu0 %v150
  %v228 = vpop.f32.mrb[0].mxu0
  %v229 = vadd.f32 %v62, %v228
  %v230 = vpop.f32.mrb[0].mxu0
  %v231 = vadd.f32 %v66, %v230
  %v232 = vpop.f32.mrb[0].mxu0
  %v233 = vadd.f32 %v62, %v232
  %v234 = vpop.f32.mrb[0].mxu0
  %v235 = vadd.f32 %v66, %v234
  %236 = vmatprep.mubr.bf16.mxu0 0
  %237 = vmatmul.mubr.bf16.gmra.mrb[0].mxu0 %v153
  %v238 = vpop.f32.mrb[0].mxu0
  %v239 = vadd.f32 %v62, %v238
  %v240 = vpop.f32.mrb[0].mxu0
  %v241 = vadd.f32 %v66, %v240
  %v242 = vpop.f32.mrb[0].mxu0
  %v243 = vadd.f32 %v62, %v242
  %v244 = vpop.f32.mrb[0].mxu0
  %v245 = vadd.f32 %v66, %v244
  %246 = vmatprep.mubr.bf16.mxu0 0
  %247 = vmatmul.mubr.bf16.gmra.mrb[0].mxu0 %v156
  %v248 = vpop.f32.mrb[0].mxu0
  %v249 = vadd.f32 %v62, %v248
  %v250 = vpop.f32.mrb[0].mxu0
  %v251 = vadd.f32 %v66, %v250
  %v252 = vpop.f32.mrb[0].mxu0
  %v253 = vadd.f32 %v62, %v252
  %v254 = vpop.f32.mrb[0].mxu0
  %v255 = vadd.f32 %v66, %v254
  %256 = vmatprep.mubr.bf16.mxu0 0
  %257 = vmatmul.mubr.bf16.gmra.mrb[0].mxu0 %v159
  %v258 = vpop.f32.mrb[0].mxu0
  %v259 = vadd.f32 %v62, %v258
  %v260 = vpop.f32.mrb[0].mxu0
  %v261 = vadd.f32 %v66, %v260
  %v262 = vpop.f32.mrb[0].mxu0
  %v263 = vadd.f32 %v62, %v262
  %v264 = vpop.f32.mrb[0].mxu0
  %v265 = vadd.f32 %v66, %v264
  %266 = vmatprep.mubr.bf16.mxu0 0
  %267 = vmatmul.mubr.bf16.gmra.mrb[0].mxu0 %v162
  %v268 = vpop.f32.mrb[0].mxu0
  %v269 = vadd.f32 %v62, %v268
  %v270 = vpop.f32.mrb[0].mxu0
  %v271 = vadd.f32 %v66, %v270
  %v272 = vpop.f32.mrb[0].mxu0
  %v273 = vadd.f32 %v62, %v272
  %v274 = vpop.f32.mrb[0].mxu0
  %v275 = vadd.f32 %v66, %v274
  %276 = vdwg.mxu0
  %v277 = vpack.c.bf16 %v203, %v199
  %v278 = vpack.c.bf16 %v213, %v209
  %v279 = vpack.c.bf16 %v223, %v219
  %v280 = vpack.c.bf16 %v233, %v229
  %v281 = vpack.c.bf16 %v243, %v239
  %v282 = vpack.c.bf16 %v253, %v249
  %v283 = vpack.c.bf16 %v263, %v259
  %v284 = vpack.c.bf16 %v273, %v269
  %v285 = vld [vmem:[%s4] sm:$0xf]
  %v286 = vld [vmem:[%s4 + $0x4] sm:$0xf]
  %v287 = vld [vmem:[%s4 + $0x8] sm:$0xf]
  %v288 = vld [vmem:[%s4 + $0xc] sm:$0xf]
  %v289 = vld [vmem:[%s4 + $0x10] sm:$0xf]
  %v290 = vld [vmem:[%s4 + $0x14] sm:$0xf]
  %v291 = vld [vmem:[%s4 + $0x18] sm:$0xf]
  %v292 = vld [vmem:[%s4 + $0x1c] sm:$0xf]
  %v301 = vunpack.c.l.b16 %v285
  %v302 = vunpack.c.l.b16 %v286
  %v303 = vunpack.c.l.b16 %v287
  %v304 = vunpack.c.l.b16 %v288
  %v305 = vunpack.c.l.b16 %v289
  %v306 = vunpack.c.l.b16 %v290
  %v307 = vunpack.c.l.b16 %v291
  %v308 = vunpack.c.l.b16 %v292
  %v309 = vpack.c.b16 %v302, %v301
  %v310 = vpack.c.b16 %v304, %v303
  %v311 = vpack.c.b16 %v306, %v305
  %v312 = vpack.c.b16 %v308, %v307
  %vm317 = vcmask 523264
  %v319 = vsel %vm317, %v277, 0
  %v322 = vsel %vm317, %v278, 0
  %v325 = vsel %vm317, %v279, 0
  %v328 = vsel %vm317, %v280, 0
  %v331 = vsel %vm317, %v281, 0
  %v334 = vsel %vm317, %v282, 0
  %v337 = vsel %vm317, %v283, 0
  %v340 = vsel %vm317, %v284, 0
  %342 = vmatprep.subr.bf16.mxu0 0
  %343 = vmatpush1.bf16.msra.mxu0 %v309
  %344 = vmatprep.subr.bf16.mxu0 0
  %345 = vmatpush1.bf16.msra.mxu0 %v310
  %346 = vmatprep.subr.bf16.mxu0 0
  %347 = vmatpush1.bf16.msra.mxu0 %v311
  %348 = vmatprep.subr.bf16.mxu0 0
  %349 = vmatpush1.bf16.msra.mxu0 %v312
  %350 = vmatprep.subr.bf16.mxu0 0
  %351 = vmatpush1.bf16.msra.mxu0 0
  %352 = vmatprep.subr.bf16.mxu0 0
  %353 = vmatpush1.bf16.msra.mxu0 0
  %354 = vmatprep.subr.bf16.mxu0 0
  %355 = vmatpush1.bf16.msra.mxu0 0
  %356 = vmatprep.subr.bf16.mxu0 0
  %357 = vmatpush1.bf16.msra.mxu0 0
  %358 = vmatprep.subr.bf16.mxu0 0
  %359 = vmatpush1.bf16.msra.mxu0 0
  %360 = vmatprep.subr.bf16.mxu0 0
  %361 = vmatpush1.bf16.msra.mxu0 0
  %362 = vmatprep.subr.bf16.mxu0 0
  %363 = vmatpush1.bf16.msra.mxu0 0
  %364 = vmatprep.subr.bf16.mxu0 0
  %365 = vmatpush1.bf16.msra.mxu0 0
  %366 = vmatprep.subr.bf16.mxu0 0
  %367 = vmatpush1.bf16.msra.mxu0 0
  %368 = vmatprep.subr.bf16.mxu0 0
  %369 = vmatpush1.bf16.msra.mxu0 0
  %370 = vmatprep.subr.bf16.mxu0 0
  %371 = vmatpush1.bf16.msra.mxu0 0
  %372 = vmatprep.subr.bf16.mxu0 0
  %373 = vmatpush1.bf16.msra.mxu0 0
  %374 = vmatprep.mubr.bf16.mxu0 0
  %375 = vmatmul.mubr.bf16.gmra.mrb[0].mxu0 %v319
  %v376 = vpop.f32.mrb[0].mxu0
  %v377 = vadd.f32 0.0, %v376
  %v378 = vpop.f32.mrb[0].mxu0
  %v379 = vpop.f32.mrb[0].mxu0
  %v380 = vadd.f32 0.0, %v379
  %v381 = vpop.f32.mrb[0].mxu0
  %382 = vmatprep.mubr.bf16.mxu0 0
  %383 = vmatmul.mubr.bf16.gmra.mrb[0].mxu0 %v322
  %v384 = vpop.f32.mrb[0].mxu0
  %v385 = vadd.f32 0.0, %v384
  %v386 = vpop.f32.mrb[0].mxu0
  %v387 = vpop.f32.mrb[0].mxu0
  %v388 = vadd.f32 0.0, %v387
  %v389 = vpop.f32.mrb[0].mxu0
  %390 = vmatprep.mubr.bf16.mxu0 0
  %391 = vmatmul.mubr.bf16.gmra.mrb[0].mxu0 %v325
  %v392 = vpop.f32.mrb[0].mxu0
  %v393 = vadd.f32 0.0, %v392
  %v394 = vpop.f32.mrb[0].mxu0
  %v395 = vpop.f32.mrb[0].mxu0
  %v396 = vadd.f32 0.0, %v395
  %v397 = vpop.f32.mrb[0].mxu0
  %398 = vmatprep.mubr.bf16.mxu0 0
  %399 = vmatmul.mubr.bf16.gmra.mrb[0].mxu0 %v328
  %v400 = vpop.f32.mrb[0].mxu0
  %v401 = vadd.f32 0.0, %v400
  %v402 = vpop.f32.mrb[0].mxu0
  %v403 = vpop.f32.mrb[0].mxu0
  %v404 = vadd.f32 0.0, %v403
  %v405 = vpop.f32.mrb[0].mxu0
  %406 = vmatprep.mubr.bf16.mxu0 0
  %407 = vmatmul.mubr.bf16.gmra.mrb[0].mxu0 %v331
  %v408 = vpop.f32.mrb[0].mxu0
  %v409 = vadd.f32 0.0, %v408
  %v410 = vpop.f32.mrb[0].mxu0
  %v411 = vpop.f32.mrb[0].mxu0
  %v412 = vadd.f32 0.0, %v411
  %v413 = vpop.f32.mrb[0].mxu0
  %414 = vmatprep.mubr.bf16.mxu0 0
  %415 = vmatmul.mubr.bf16.gmra.mrb[0].mxu0 %v334
  %v416 = vpop.f32.mrb[0].mxu0
  %v417 = vadd.f32 0.0, %v416
  %v418 = vpop.f32.mrb[0].mxu0
  %v419 = vpop.f32.mrb[0].mxu0
  %v420 = vadd.f32 0.0, %v419
  %v421 = vpop.f32.mrb[0].mxu0
  %422 = vmatprep.mubr.bf16.mxu0 0
  %423 = vmatmul.mubr.bf16.gmra.mrb[0].mxu0 %v337
  %v424 = vpop.f32.mrb[0].mxu0
  %v425 = vadd.f32 0.0, %v424
  %v426 = vpop.f32.mrb[0].mxu0
  %v427 = vpop.f32.mrb[0].mxu0
  %v428 = vadd.f32 0.0, %v427
  %v429 = vpop.f32.mrb[0].mxu0
  %430 = vmatprep.mubr.bf16.mxu0 0
  %431 = vmatmul.mubr.bf16.gmra.mrb[0].mxu0 %v340
  %v432 = vpop.f32.mrb[0].mxu0
  %v433 = vadd.f32 0.0, %v432
  %v434 = vpop.f32.mrb[0].mxu0
  %v435 = vpop.f32.mrb[0].mxu0
  %v436 = vadd.f32 0.0, %v435
  %v437 = vpop.f32.mrb[0].mxu0
  %438 = vdwg.mxu0
  %v439 = vmul.f32 %v199, %v199
  %v440 = vmul.f32 %v203, %v203
  %v441 = vmul.f32 %v209, %v209
  %v442 = vmul.f32 %v213, %v213
  %v443 = vmul.f32 %v219, %v219
  %v444 = vmul.f32 %v223, %v223
  %v445 = vmul.f32 %v229, %v229
  %v446 = vmul.f32 %v233, %v233
  %v447 = vmul.f32 %v239, %v239
  %v448 = vmul.f32 %v243, %v243
  %v449 = vmul.f32 %v249, %v249
  %v450 = vmul.f32 %v253, %v253
  %v451 = vmul.f32 %v259, %v259
  %v452 = vmul.f32 %v263, %v263
  %v453 = vmul.f32 %v269, %v269
  %v454 = vmul.f32 %v273, %v273
  %v455 = vpack.c.bf16 %v440, %v439
  %v456 = vpack.c.bf16 %v442, %v441
  %v457 = vpack.c.bf16 %v444, %v443
  %v458 = vpack.c.bf16 %v446, %v445
  %v459 = vpack.c.bf16 %v448, %v447
  %v460 = vpack.c.bf16 %v450, %v449
  %v461 = vpack.c.bf16 %v452, %v451
  %v462 = vpack.c.bf16 %v454, %v453
  %v463 = vld [vmem:[%s5] sm:$0xf]
  %v464 = vld [vmem:[%s5 + $0x4] sm:$0xf]
  %v465 = vld [vmem:[%s5 + $0x8] sm:$0xf]
  %v466 = vld [vmem:[%s5 + $0xc] sm:$0xf]
  %v467 = vld [vmem:[%s5 + $0x10] sm:$0xf]
  %v468 = vld [vmem:[%s5 + $0x14] sm:$0xf]
  %v469 = vld [vmem:[%s5 + $0x18] sm:$0xf]
  %v470 = vld [vmem:[%s5 + $0x1c] sm:$0xf]
  %v479 = vunpack.c.l.b16 %v463
  %v480 = vunpack.c.l.b16 %v464
  %v481 = vunpack.c.l.b16 %v465
  %v482 = vunpack.c.l.b16 %v466
  %v483 = vunpack.c.l.b16 %v467
  %v484 = vunpack.c.l.b16 %v468
  %v485 = vunpack.c.l.b16 %v469
  %v486 = vunpack.c.l.b16 %v470
  %v487 = vpack.c.b16 %v480, %v479
  %v488 = vpack.c.b16 %v482, %v481
  %v489 = vpack.c.b16 %v484, %v483
  %v490 = vpack.c.b16 %v486, %v485
  %v496 = vsel %vm317, %v455, 0
  %v499 = vsel %vm317, %v456, 0
  %v502 = vsel %vm317, %v457, 0
  %v505 = vsel %vm317, %v458, 0
  %v508 = vsel %vm317, %v459, 0
  %v511 = vsel %vm317, %v460, 0
  %v514 = vsel %vm317, %v461, 0
  %v517 = vsel %vm317, %v462, 0
  %519 = vmatprep.subr.bf16.mxu0 0
  %520 = vmatpush1.bf16.msra.mxu0 %v487
  %521 = vmatprep.subr.bf16.mxu0 0
  %522 = vmatpush1.bf16.msra.mxu0 %v488
  %523 = vmatprep.subr.bf16.mxu0 0
  %524 = vmatpush1.bf16.msra.mxu0 %v489
  %525 = vmatprep.subr.bf16.mxu0 0
  %526 = vmatpush1.bf16.msra.mxu0 %v490
  %527 = vmatprep.subr.bf16.mxu0 0
  %528 = vmatpush1.bf16.msra.mxu0 0
  %529 = vmatprep.subr.bf16.mxu0 0
  %530 = vmatpush1.bf16.msra.mxu0 0
  %531 = vmatprep.subr.bf16.mxu0 0
  %532 = vmatpush1.bf16.msra.mxu0 0
  %533 = vmatprep.subr.bf16.mxu0 0
  %534 = vmatpush1.bf16.msra.mxu0 0
  %535 = vmatprep.subr.bf16.mxu0 0
  %536 = vmatpush1.bf16.msra.mxu0 0
  %537 = vmatprep.subr.bf16.mxu0 0
  %538 = vmatpush1.bf16.msra.mxu0 0
  %539 = vmatprep.subr.bf16.mxu0 0
  %540 = vmatpush1.bf16.msra.mxu0 0
  %541 = vmatprep.subr.bf16.mxu0 0
  %542 = vmatpush1.bf16.msra.mxu0 0
  %543 = vmatprep.subr.bf16.mxu0 0
  %544 = vmatpush1.bf16.msra.mxu0 0
  %545 = vmatprep.subr.bf16.mxu0 0
  %546 = vmatpush1.bf16.msra.mxu0 0
  %547 = vmatprep.subr.bf16.mxu0 0
  %548 = vmatpush1.bf16.msra.mxu0 0
  %549 = vmatprep.subr.bf16.mxu0 0
  %550 = vmatpush1.bf16.msra.mxu0 0
  %551 = vmatprep.mubr.bf16.mxu0 0
  %552 = vmatmul.mubr.bf16.gmra.mrb[0].mxu0 %v496
  %v553 = vpop.f32.mrb[0].mxu0
  %v554 = vadd.f32 0.0, %v553
  %v555 = vpop.f32.mrb[0].mxu0
  %v556 = vpop.f32.mrb[0].mxu0
  %v557 = vadd.f32 0.0, %v556
  %v558 = vpop.f32.mrb[0].mxu0
  %559 = vmatprep.mubr.bf16.mxu0 0
  %560 = vmatmul.mubr.bf16.gmra.mrb[0].mxu0 %v499
  %v561 = vpop.f32.mrb[0].mxu0
  %v562 = vadd.f32 0.0, %v561
  %v563 = vpop.f32.mrb[0].mxu0
  %v564 = vpop.f32.mrb[0].mxu0
  %v565 = vadd.f32 0.0, %v564
  %v566 = vpop.f32.mrb[0].mxu0
  %567 = vmatprep.mubr.bf16.mxu0 0
  %568 = vmatmul.mubr.bf16.gmra.mrb[0].mxu0 %v502
  %v569 = vpop.f32.mrb[0].mxu0
  %v570 = vadd.f32 0.0, %v569
  %v571 = vpop.f32.mrb[0].mxu0
  %v572 = vpop.f32.mrb[0].mxu0
  %v573 = vadd.f32 0.0, %v572
  %v574 = vpop.f32.mrb[0].mxu0
  %575 = vmatprep.mubr.bf16.mxu0 0
  %576 = vmatmul.mubr.bf16.gmra.mrb[0].mxu0 %v505
  %v577 = vpop.f32.mrb[0].mxu0
  %v578 = vadd.f32 0.0, %v577
  %v579 = vpop.f32.mrb[0].mxu0
  %v580 = vpop.f32.mrb[0].mxu0
  %v581 = vadd.f32 0.0, %v580
  %v582 = vpop.f32.mrb[0].mxu0
  %583 = vmatprep.mubr.bf16.mxu0 0
  %584 = vmatmul.mubr.bf16.gmra.mrb[0].mxu0 %v508
  %v585 = vpop.f32.mrb[0].mxu0
  %v586 = vadd.f32 0.0, %v585
  %v587 = vpop.f32.mrb[0].mxu0
  %v588 = vpop.f32.mrb[0].mxu0
  %v589 = vadd.f32 0.0, %v588
  %v590 = vpop.f32.mrb[0].mxu0
  %591 = vmatprep.mubr.bf16.mxu0 0
  %592 = vmatmul.mubr.bf16.gmra.mrb[0].mxu0 %v511
  %v593 = vpop.f32.mrb[0].mxu0
  %v594 = vadd.f32 0.0, %v593
  %v595 = vpop.f32.mrb[0].mxu0
  %v596 = vpop.f32.mrb[0].mxu0
  %v597 = vadd.f32 0.0, %v596
  %v598 = vpop.f32.mrb[0].mxu0
  %599 = vmatprep.mubr.bf16.mxu0 0
  %600 = vmatmul.mubr.bf16.gmra.mrb[0].mxu0 %v514
  %v601 = vpop.f32.mrb[0].mxu0
  %v602 = vadd.f32 0.0, %v601
  %v603 = vpop.f32.mrb[0].mxu0
  %v604 = vpop.f32.mrb[0].mxu0
  %v605 = vadd.f32 0.0, %v604
  %v606 = vpop.f32.mrb[0].mxu0
  %607 = vmatprep.mubr.bf16.mxu0 0
  %608 = vmatmul.mubr.bf16.gmra.mrb[0].mxu0 %v517
  %v609 = vpop.f32.mrb[0].mxu0
  %v610 = vadd.f32 0.0, %v609
  %v611 = vpop.f32.mrb[0].mxu0
  %v612 = vpop.f32.mrb[0].mxu0
  %v613 = vadd.f32 0.0, %v612
  %v614 = vpop.f32.mrb[0].mxu0
  %615 = vdwg.mxu0
  %v616 = vlaneseq
  %v617 = vand.u32 %v616, 127
  %vm618 = vcmask 1048064
  %v619 = vsel %vm618, %v377, -inf
  %v620 = vsel %vm618, %v380, -inf
  %v621 = vsel %vm618, %v385, -inf
  %v622 = vsel %vm618, %v388, -inf
  %v623 = vsel %vm618, %v393, -inf
  %v624 = vmax.f32 %v619, %v623
  %v625 = vsel %vm618, %v396, -inf
  %v626 = vmax.f32 %v620, %v625
  %v627 = vsel %vm618, %v401, -inf
  %v628 = vmax.f32 %v621, %v627
  %v629 = vsel %vm618, %v404, -inf
  %v630 = vmax.f32 %v622, %v629
  %v631 = vsel %vm618, %v409, -inf
  %v632 = vmax.f32 %v624, %v631
  %v633 = vsel %vm618, %v412, -inf
  %v634 = vmax.f32 %v626, %v633
  %v635 = vsel %vm618, %v417, -inf
  %v636 = vmax.f32 %v628, %v635
  %v637 = vsel %vm618, %v420, -inf
  %v638 = vmax.f32 %v630, %v637
  %v639 = vsel %vm618, %v425, -inf
  %v640 = vmax.f32 %v632, %v639
  %v641 = vsel %vm618, %v428, -inf
  %v642 = vmax.f32 %v634, %v641
  %v643 = vsel %vm618, %v433, -inf
  %v644 = vmax.f32 %v636, %v643
  %v645 = vsel %vm618, %v436, -inf
  %v646 = vmax.f32 %v638, %v645
  %v647 = vmax.f32 %v640, %v642
  %v648 = vmax.f32 %v644, %v646
  %v649 = vmax.f32 %v647, %v648
  %v650 = vrot.slane %v649, 4
  %v651 = vmax.f32 %v649, %v650
  %v652 = vrot.slane %v651, 2
  %v653 = vmax.f32 %v651, %v652
  %v654 = vrot.slane %v653, 1
  %v655 = vmax.f32 %v653, %v654
  %vm656 = vcmp.ge.s32.totalorder %v617, 0
  %vm657 = vcmp.lt.s32.totalorder %v617, 16
  %vm658 = vmand %vm656, %vm657
  %v659 = vsel %vm658, 1, 0
  %vm660 = vcmp.eq.s32.totalorder %v659, 1
  %v661 = vsel %vm660, %v377, -1e+30
  %v662 = vsel %vm660, %v380, -1e+30
  %v663 = vsel %vm660, %v385, -1e+30
  %v664 = vsel %vm660, %v388, -1e+30
  %v665 = vsel %vm660, %v393, -1e+30
  %v666 = vsel %vm660, %v396, -1e+30
  %v667 = vsel %vm660, %v401, -1e+30
  %v668 = vsel %vm660, %v404, -1e+30
  %v669 = vsel %vm660, %v409, -1e+30
  %v670 = vsel %vm660, %v412, -1e+30
  %v671 = vsel %vm660, %v417, -1e+30
  %v672 = vsel %vm660, %v420, -1e+30
  %v673 = vsel %vm660, %v425, -1e+30
  %v674 = vsel %vm660, %v428, -1e+30
  %v675 = vsel %vm660, %v433, -1e+30
  %v676 = vsel %vm660, %v436, -1e+30
  %v677 = vsel %vm317, %v661, -inf
  %678 = vmax.xlane.f32.xlu0 %v677
  %v679 = vpop.xlane.xlu0 %678
  %v680 = vsel %vm317, %v662, -inf
  %681 = vmax.xlane.f32.xlu0 %v680
  %v682 = vpop.xlane.xlu0 %681
  %v683 = vsel %vm317, %v663, -inf
  %684 = vmax.xlane.f32.xlu0 %v683
  %v685 = vpop.xlane.xlu0 %684
  %v686 = vsel %vm317, %v664, -inf
  %687 = vmax.xlane.f32.xlu0 %v686
  %v688 = vpop.xlane.xlu0 %687
  %v689 = vsel %vm317, %v665, -inf
  %690 = vmax.xlane.f32.xlu0 %v689
  %v691 = vpop.xlane.xlu0 %690
  %v692 = vsel %vm317, %v666, -inf
  %693 = vmax.xlane.f32.xlu0 %v692
  %v694 = vpop.xlane.xlu0 %693
  %v695 = vsel %vm317, %v667, -inf
  %696 = vmax.xlane.f32.xlu0 %v695
  %v697 = vpop.xlane.xlu0 %696
  %v698 = vsel %vm317, %v668, -inf
  %699 = vmax.xlane.f32.xlu0 %v698
  %v700 = vpop.xlane.xlu0 %699
  %v701 = vsel %vm317, %v669, -inf
  %702 = vmax.xlane.f32.xlu0 %v701
  %v703 = vpop.xlane.xlu0 %702
  %v704 = vsel %vm317, %v670, -inf
  %705 = vmax.xlane.f32.xlu0 %v704
  %v706 = vpop.xlane.xlu0 %705
  %v707 = vsel %vm317, %v671, -inf
  %708 = vmax.xlane.f32.xlu0 %v707
  %v709 = vpop.xlane.xlu0 %708
  %v710 = vsel %vm317, %v672, -inf
  %711 = vmax.xlane.f32.xlu0 %v710
  %v712 = vpop.xlane.xlu0 %711
  %v713 = vsel %vm317, %v673, -inf
  %714 = vmax.xlane.f32.xlu0 %v713
  %v715 = vpop.xlane.xlu0 %714
  %v716 = vsel %vm317, %v674, -inf
  %717 = vmax.xlane.f32.xlu0 %v716
  %v718 = vpop.xlane.xlu0 %717
  %v719 = vsel %vm317, %v675, -inf
  %720 = vmax.xlane.f32.xlu0 %v719
  %v721 = vpop.xlane.xlu0 %720
  %v722 = vsel %vm317, %v676, -inf
  %723 = vmax.xlane.f32.xlu0 %v722
  %v724 = vpop.xlane.xlu0 %723
  %726 = vrot.lane.b32.xlu0 %v655, 64
  %v727 = vpop.permute.xlu0 %726
  %v729 = vsel %vm658, %v727, -1e+30
  %vm730 = vcmask 516096
  %v731 = vsel %vm730, %v729, -inf
  %732 = vmax.xlane.f32.xlu0 %v731
  %v733 = vpop.xlane.xlu0 %732
  %v734 = vrot.slane %v733, 4
  %v735 = vmax.f32 %v733, %v734
  %v736 = vrot.slane %v735, 2
  %v737 = vmax.f32 %v735, %v736
  %v738 = vrot.slane %v737, 1
  %v739 = vmax.f32 %v737, %v738
  %s740 = vtos %v739
  %v741 = vsel %vm660, %v679, 0.0
  %v742 = vsel %vm660, %v682, 0.0
  %v743 = vsel %vm660, %v685, 0.0
  %v744 = vsel %vm660, %v688, 0.0
  %v745 = vsel %vm660, %v691, 0.0
  %v746 = vsel %vm660, %v694, 0.0
  %v747 = vsel %vm660, %v697, 0.0
  %v748 = vsel %vm660, %v700, 0.0
  %v749 = vsel %vm660, %v703, 0.0
  %v750 = vsel %vm660, %v706, 0.0
  %v751 = vsel %vm660, %v709, 0.0
  %v752 = vsel %vm660, %v712, 0.0
  %v753 = vsel %vm660, %v715, 0.0
  %v754 = vsel %vm660, %v718, 0.0
  %v755 = vsel %vm660, %v721, 0.0
  %v756 = vsel %vm660, %v724, 0.0
  %v757 = vadd.f32 %v741, 0.0
  %v758 = vadd.f32 %v742, 0.0
  %v759 = vadd.f32 %v743, 0.0
  %v760 = vadd.f32 %v744, 0.0
  %v761 = vadd.f32 %v745, 0.0
  %v762 = vadd.f32 %v746, 0.0
  %v763 = vadd.f32 %v747, 0.0
  %v764 = vadd.f32 %v748, 0.0
  %v765 = vadd.f32 %v749, 0.0
  %v766 = vadd.f32 %v750, 0.0
  %v767 = vadd.f32 %v751, 0.0
  %v768 = vadd.f32 %v752, 0.0
  %v769 = vadd.f32 %v753, 0.0
  %v770 = vadd.f32 %v754, 0.0
  %v771 = vadd.f32 %v755, 0.0
  %v772 = vadd.f32 %v756, 0.0
  %v773 = vstv %s740
  %v774 = vsel %vm658, %v773, 0.0
  %v775 = vadd.f32 %v774, 0.0
  %vm776 = vcmp.ge.s32.totalorder %v617, 16
  %vm777 = vcmp.lt.s32.totalorder %v617, 32
  %vm778 = vmand %vm776, %vm777
  %v779 = vsel %vm778, 1, 0
  %vm780 = vcmp.eq.s32.totalorder %v779, 1
  %v781 = vsel %vm780, %v377, -1e+30
  %v782 = vsel %vm780, %v380, -1e+30
  %v783 = vsel %vm780, %v385, -1e+30
  %v784 = vsel %vm780, %v388, -1e+30
  %v785 = vsel %vm780, %v393, -1e+30
  %v786 = vsel %vm780, %v396, -1e+30
  %v787 = vsel %vm780, %v401, -1e+30
  %v788 = vsel %vm780, %v404, -1e+30
  %v789 = vsel %vm780, %v409, -1e+30
  %v790 = vsel %vm780, %v412, -1e+30
  %v791 = vsel %vm780, %v417, -1e+30
  %v792 = vsel %vm780, %v420, -1e+30
  %v793 = vsel %vm780, %v425, -1e+30
  %v794 = vsel %vm780, %v428, -1e+30
  %v795 = vsel %vm780, %v433, -1e+30
  %v796 = vsel %vm780, %v436, -1e+30
  %v797 = vsel %vm317, %v781, -inf
  %798 = vmax.xlane.f32.xlu0 %v797
  %v799 = vpop.xlane.xlu0 %798
  %v800 = vsel %vm317, %v782, -inf
  %801 = vmax.xlane.f32.xlu0 %v800
  %v802 = vpop.xlane.xlu0 %801
  %v803 = vsel %vm317, %v783, -inf
  %804 = vmax.xlane.f32.xlu0 %v803
  %v805 = vpop.xlane.xlu0 %804
  %v806 = vsel %vm317, %v784, -inf
  %807 = vmax.xlane.f32.xlu0 %v806
  %v808 = vpop.xlane.xlu0 %807
  %v809 = vsel %vm317, %v785, -inf
  %810 = vmax.xlane.f32.xlu0 %v809
  %v811 = vpop.xlane.xlu0 %810
  %v812 = vsel %vm317, %v786, -inf
  %813 = vmax.xlane.f32.xlu0 %v812
  %v814 = vpop.xlane.xlu0 %813
  %v815 = vsel %vm317, %v787, -inf
  %816 = vmax.xlane.f32.xlu0 %v815
  %v817 = vpop.xlane.xlu0 %816
  %v818 = vsel %vm317, %v788, -inf
  %819 = vmax.xlane.f32.xlu0 %v818
  %v820 = vpop.xlane.xlu0 %819
  %v821 = vsel %vm317, %v789, -inf
  %822 = vmax.xlane.f32.xlu0 %v821
  %v823 = vpop.xlane.xlu0 %822
  %v824 = vsel %vm317, %v790, -inf
  %825 = vmax.xlane.f32.xlu0 %v824
  %v826 = vpop.xlane.xlu0 %825
  %v827 = vsel %vm317, %v791, -inf
  %828 = vmax.xlane.f32.xlu0 %v827
  %v829 = vpop.xlane.xlu0 %828
  %v830 = vsel %vm317, %v792, -inf
  %831 = vmax.xlane.f32.xlu0 %v830
  %v832 = vpop.xlane.xlu0 %831
  %v833 = vsel %vm317, %v793, -inf
  %834 = vmax.xlane.f32.xlu0 %v833
  %v835 = vpop.xlane.xlu0 %834
  %v836 = vsel %vm317, %v794, -inf
  %837 = vmax.xlane.f32.xlu0 %v836
  %v838 = vpop.xlane.xlu0 %837
  %v839 = vsel %vm317, %v795, -inf
  %840 = vmax.xlane.f32.xlu0 %v839
  %v841 = vpop.xlane.xlu0 %840
  %v842 = vsel %vm317, %v796, -inf
  %843 = vmax.xlane.f32.xlu0 %v842
  %v844 = vpop.xlane.xlu0 %843
  %v845 = vsel %vm778, %v727, -1e+30
  %v846 = vsel %vm730, %v845, -inf
  %847 = vmax.xlane.f32.xlu0 %v846
  %v848 = vpop.xlane.xlu0 %847
  %v849 = vrot.slane %v848, 4
  %v850 = vmax.f32 %v848, %v849
  %v851 = vrot.slane %v850, 2
  %v852 = vmax.f32 %v850, %v851
  %v853 = vrot.slane %v852, 1
  %v854 = vmax.f32 %v852, %v853
  %s855 = vtos %v854
  %v856 = vsel %vm780, %v799, 0.0
  %v857 = vsel %vm780, %v802, 0.0
  %v858 = vsel %vm780, %v805, 0.0
  %v859 = vsel %vm780, %v808, 0.0
  %v860 = vsel %vm780, %v811, 0.0
  %v861 = vsel %vm780, %v814, 0.0
  %v862 = vsel %vm780, %v817, 0.0
  %v863 = vsel %vm780, %v820, 0.0
  %v864 = vsel %vm780, %v823, 0.0
  %v865 = vsel %vm780, %v826, 0.0
  %v866 = vsel %vm780, %v829, 0.0
  %v867 = vsel %vm780, %v832, 0.0
  %v868 = vsel %vm780, %v835, 0.0
  %v869 = vsel %vm780, %v838, 0.0
  %v870 = vsel %vm780, %v841, 0.0
  %v871 = vsel %vm780, %v844, 0.0
  %v872 = vadd.f32 %v757, %v856
  %v873 = vadd.f32 %v758, %v857
  %v874 = vadd.f32 %v759, %v858
  %v875 = vadd.f32 %v760, %v859
  %v876 = vadd.f32 %v761, %v860
  %v877 = vadd.f32 %v762, %v861
  %v878 = vadd.f32 %v763, %v862
  %v879 = vadd.f32 %v764, %v863
  %v880 = vadd.f32 %v765, %v864
  %v881 = vadd.f32 %v766, %v865
  %v882 = vadd.f32 %v767, %v866
  %v883 = vadd.f32 %v768, %v867
  %v884 = vadd.f32 %v769, %v868
  %v885 = vadd.f32 %v770, %v869
  %v886 = vadd.f32 %v771, %v870
  %v887 = vadd.f32 %v772, %v871
  %v888 = vstv %s855
  %v889 = vsel %vm778, %v888, 0.0
  %v890 = vadd.f32 %v775, %v889
  %vm891 = vcmp.ge.s32.totalorder %v617, 32
  %vm892 = vcmp.lt.s32.totalorder %v617, 48
  %vm893 = vmand %vm891, %vm892
  %v894 = vsel %vm893, 1, 0
  %vm895 = vcmp.eq.s32.totalorder %v894, 1
  %v896 = vsel %vm895, %v377, -1e+30
  %v897 = vsel %vm895, %v380, -1e+30
  %v898 = vsel %vm895, %v385, -1e+30
  %v899 = vsel %vm895, %v388, -1e+30
  %v900 = vsel %vm895, %v393, -1e+30
  %v901 = vsel %vm895, %v396, -1e+30
  %v902 = vsel %vm895, %v401, -1e+30
  %v903 = vsel %vm895, %v404, -1e+30
  %v904 = vsel %vm895, %v409, -1e+30
  %v905 = vsel %vm895, %v412, -1e+30
  %v906 = vsel %vm895, %v417, -1e+30
  %v907 = vsel %vm895, %v420, -1e+30
  %v908 = vsel %vm895, %v425, -1e+30
  %v909 = vsel %vm895, %v428, -1e+30
  %v910 = vsel %vm895, %v433, -1e+30
  %v911 = vsel %vm895, %v436, -1e+30
  %v912 = vsel %vm317, %v896, -inf
  %913 = vmax.xlane.f32.xlu0 %v912
  %v914 = vpop.xlane.xlu0 %913
  %v915 = vsel %vm317, %v897, -inf
  %916 = vmax.xlane.f32.xlu0 %v915
  %v917 = vpop.xlane.xlu0 %916
  %v918 = vsel %vm317, %v898, -inf
  %919 = vmax.xlane.f32.xlu0 %v918
  %v920 = vpop.xlane.xlu0 %919
  %v921 = vsel %vm317, %v899, -inf
  %922 = vmax.xlane.f32.xlu0 %v921
  %v923 = vpop.xlane.xlu0 %922
  %v924 = vsel %vm317, %v900, -inf
  %925 = vmax.xlane.f32.xlu0 %v924
  %v926 = vpop.xlane.xlu0 %925
  %v927 = vsel %vm317, %v901, -inf
  %928 = vmax.xlane.f32.xlu0 %v927
  %v929 = vpop.xlane.xlu0 %928
  %v930 = vsel %vm317, %v902, -inf
  %931 = vmax.xlane.f32.xlu0 %v930
  %v932 = vpop.xlane.xlu0 %931
  %v933 = vsel %vm317, %v903, -inf
  %934 = vmax.xlane.f32.xlu0 %v933
  %v935 = vpop.xlane.xlu0 %934
  %v936 = vsel %vm317, %v904, -inf
  %937 = vmax.xlane.f32.xlu0 %v936
  %v938 = vpop.xlane.xlu0 %937
  %v939 = vsel %vm317, %v905, -inf
  %940 = vmax.xlane.f32.xlu0 %v939
  %v941 = vpop.xlane.xlu0 %940
  %v942 = vsel %vm317, %v906, -inf
  %943 = vmax.xlane.f32.xlu0 %v942
  %v944 = vpop.xlane.xlu0 %943
  %v945 = vsel %vm317, %v907, -inf
  %946 = vmax.xlane.f32.xlu0 %v945
  %v947 = vpop.xlane.xlu0 %946
  %v948 = vsel %vm317, %v908, -inf
  %949 = vmax.xlane.f32.xlu0 %v948
  %v950 = vpop.xlane.xlu0 %949
  %v951 = vsel %vm317, %v909, -inf
  %952 = vmax.xlane.f32.xlu0 %v951
  %v953 = vpop.xlane.xlu0 %952
  %v954 = vsel %vm317, %v910, -inf
  %955 = vmax.xlane.f32.xlu0 %v954
  %v956 = vpop.xlane.xlu0 %955
  %v957 = vsel %vm317, %v911, -inf
  %958 = vmax.xlane.f32.xlu0 %v957
  %v959 = vpop.xlane.xlu0 %958
  %v960 = vsel %vm893, %v727, -1e+30
  %v961 = vsel %vm730, %v960, -inf
  %962 = vmax.xlane.f32.xlu0 %v961
  %v963 = vpop.xlane.xlu0 %962
  %v964 = vrot.slane %v963, 4
  %v965 = vmax.f32 %v963, %v964
  %v966 = vrot.slane %v965, 2
  %v967 = vmax.f32 %v965, %v966
  %v968 = vrot.slane %v967, 1
  %v969 = vmax.f32 %v967, %v968
  %s970 = vtos %v969
  %v971 = vsel %vm895, %v914, 0.0
  %v972 = vsel %vm895, %v917, 0.0
  %v973 = vsel %vm895, %v920, 0.0
  %v974 = vsel %vm895, %v923, 0.0
  %v975 = vsel %vm895, %v926, 0.0
  %v976 = vsel %vm895, %v929, 0.0
  %v977 = vsel %vm895, %v932, 0.0
  %v978 = vsel %vm895, %v935, 0.0
  %v979 = vsel %vm895, %v938, 0.0
  %v980 = vsel %vm895, %v941, 0.0
  %v981 = vsel %vm895, %v944, 0.0
  %v982 = vsel %vm895, %v947, 0.0
  %v983 = vsel %vm895, %v950, 0.0
  %v984 = vsel %vm895, %v953, 0.0
  %v985 = vsel %vm895, %v956, 0.0
  %v986 = vsel %vm895, %v959, 0.0
  %v987 = vadd.f32 %v872, %v971
  %v988 = vadd.f32 %v873, %v972
  %v989 = vadd.f32 %v874, %v973
  %v990 = vadd.f32 %v875, %v974
  %v991 = vadd.f32 %v876, %v975
  %v992 = vadd.f32 %v877, %v976
  %v993 = vadd.f32 %v878, %v977
  %v994 = vadd.f32 %v879, %v978
  %v995 = vadd.f32 %v880, %v979
  %v996 = vadd.f32 %v881, %v980
  %v997 = vadd.f32 %v882, %v981
  %v998 = vadd.f32 %v883, %v982
  %v999 = vadd.f32 %v884, %v983
  %v1000 = vadd.f32 %v885, %v984
  %v1001 = vadd.f32 %v886, %v985
  %v1002 = vadd.f32 %v887, %v986
  %v1003 = vstv %s970
  %v1004 = vsel %vm893, %v1003, 0.0
  %v1005 = vadd.f32 %v890, %v1004
  %vm1006 = vcmp.ge.s32.totalorder %v617, 48
  %vm1007 = vcmp.lt.s32.totalorder %v617, 64
  %vm1008 = vmand %vm1006, %vm1007
  %v1009 = vsel %vm1008, 1, 0
  %vm1010 = vcmp.eq.s32.totalorder %v1009, 1
  %v1011 = vsel %vm1010, %v377, -1e+30
  %v1012 = vsel %vm1010, %v380, -1e+30
  %v1013 = vsel %vm1010, %v385, -1e+30
  %v1014 = vsel %vm1010, %v388, -1e+30
  %v1015 = vsel %vm1010, %v393, -1e+30
  %v1016 = vsel %vm1010, %v396, -1e+30
  %v1017 = vsel %vm1010, %v401, -1e+30
  %v1018 = vsel %vm1010, %v404, -1e+30
  %v1019 = vsel %vm1010, %v409, -1e+30
  %v1020 = vsel %vm1010, %v412, -1e+30
  %v1021 = vsel %vm1010, %v417, -1e+30
  %v1022 = vsel %vm1010, %v420, -1e+30
  %v1023 = vsel %vm1010, %v425, -1e+30
  %v1024 = vsel %vm1010, %v428, -1e+30
  %v1025 = vsel %vm1010, %v433, -1e+30
  %v1026 = vsel %vm1010, %v436, -1e+30
  %v1027 = vsel %vm317, %v1011, -inf
  %1028 = vmax.xlane.f32.xlu0 %v1027
  %v1029 = vpop.xlane.xlu0 %1028
  %v1030 = vsel %vm317, %v1012, -inf
  %1031 = vmax.xlane.f32.xlu0 %v1030
  %v1032 = vpop.xlane.xlu0 %1031
  %v1033 = vsel %vm317, %v1013, -inf
  %1034 = vmax.xlane.f32.xlu0 %v1033
  %v1035 = vpop.xlane.xlu0 %1034
  %v1036 = vsel %vm317, %v1014, -inf
  %1037 = vmax.xlane.f32.xlu0 %v1036
  %v1038 = vpop.xlane.xlu0 %1037
  %v1039 = vsel %vm317, %v1015, -inf
  %1040 = vmax.xlane.f32.xlu0 %v1039
  %v1041 = vpop.xlane.xlu0 %1040
  %v1042 = vsel %vm317, %v1016, -inf
  %1043 = vmax.xlane.f32.xlu0 %v1042
  %v1044 = vpop.xlane.xlu0 %1043
  %v1045 = vsel %vm317, %v1017, -inf
  %1046 = vmax.xlane.f32.xlu0 %v1045
  %v1047 = vpop.xlane.xlu0 %1046
  %v1048 = vsel %vm317, %v1018, -inf
  %1049 = vmax.xlane.f32.xlu0 %v1048
  %v1050 = vpop.xlane.xlu0 %1049
  %v1051 = vsel %vm317, %v1019, -inf
  %1052 = vmax.xlane.f32.xlu0 %v1051
  %v1053 = vpop.xlane.xlu0 %1052
  %v1054 = vsel %vm317, %v1020, -inf
  %1055 = vmax.xlane.f32.xlu0 %v1054
  %v1056 = vpop.xlane.xlu0 %1055
  %v1057 = vsel %vm317, %v1021, -inf
  %1058 = vmax.xlane.f32.xlu0 %v1057
  %v1059 = vpop.xlane.xlu0 %1058
  %v1060 = vsel %vm317, %v1022, -inf
  %1061 = vmax.xlane.f32.xlu0 %v1060
  %v1062 = vpop.xlane.xlu0 %1061
  %v1063 = vsel %vm317, %v1023, -inf
  %1064 = vmax.xlane.f32.xlu0 %v1063
  %v1065 = vpop.xlane.xlu0 %1064
  %v1066 = vsel %vm317, %v1024, -inf
  %1067 = vmax.xlane.f32.xlu0 %v1066
  %v1068 = vpop.xlane.xlu0 %1067
  %v1069 = vsel %vm317, %v1025, -inf
  %1070 = vmax.xlane.f32.xlu0 %v1069
  %v1071 = vpop.xlane.xlu0 %1070
  %v1072 = vsel %vm317, %v1026, -inf
  %1073 = vmax.xlane.f32.xlu0 %v1072
  %v1074 = vpop.xlane.xlu0 %1073
  %v1075 = vsel %vm1008, %v727, -1e+30
  %v1076 = vsel %vm730, %v1075, -inf
  %1077 = vmax.xlane.f32.xlu0 %v1076
  %v1078 = vpop.xlane.xlu0 %1077
  %v1079 = vrot.slane %v1078, 4
  %v1080 = vmax.f32 %v1078, %v1079
  %v1081 = vrot.slane %v1080, 2
  %v1082 = vmax.f32 %v1080, %v1081
  %v1083 = vrot.slane %v1082, 1
  %v1084 = vmax.f32 %v1082, %v1083
  %s1085 = vtos %v1084
  %v1086 = vsel %vm1010, %v1029, 0.0
  %v1087 = vsel %vm1010, %v1032, 0.0
  %v1088 = vsel %vm1010, %v1035, 0.0
  %v1089 = vsel %vm1010, %v1038, 0.0
  %v1090 = vsel %vm1010, %v1041, 0.0
  %v1091 = vsel %vm1010, %v1044, 0.0
  %v1092 = vsel %vm1010, %v1047, 0.0
  %v1093 = vsel %vm1010, %v1050, 0.0
  %v1094 = vsel %vm1010, %v1053, 0.0
  %v1095 = vsel %vm1010, %v1056, 0.0
  %v1096 = vsel %vm1010, %v1059, 0.0
  %v1097 = vsel %vm1010, %v1062, 0.0
  %v1098 = vsel %vm1010, %v1065, 0.0
  %v1099 = vsel %vm1010, %v1068, 0.0
  %v1100 = vsel %vm1010, %v1071, 0.0
  %v1101 = vsel %vm1010, %v1074, 0.0
  %v1102 = vadd.f32 %v987, %v1086
  %v1103 = vadd.f32 %v988, %v1087
  %v1104 = vadd.f32 %v989, %v1088
  %v1105 = vadd.f32 %v990, %v1089
  %v1106 = vadd.f32 %v991, %v1090
  %v1107 = vadd.f32 %v992, %v1091
  %v1108 = vadd.f32 %v993, %v1092
  %v1109 = vadd.f32 %v994, %v1093
  %v1110 = vadd.f32 %v995, %v1094
  %v1111 = vadd.f32 %v996, %v1095
  %v1112 = vadd.f32 %v997, %v1096
  %v1113 = vadd.f32 %v998, %v1097
  %v1114 = vadd.f32 %v999, %v1098
  %v1115 = vadd.f32 %v1000, %v1099
  %v1116 = vadd.f32 %v1001, %v1100
  %v1117 = vadd.f32 %v1002, %v1101
  %v1118 = vstv %s1085
  %v1119 = vsel %vm1008, %v1118, 0.0
  %v1120 = vadd.f32 %v1005, %v1119
  %v1121 = vsub.f32 %v377, %v554
  %v1122 = vsub.f32 %v380, %v557
  %v1123 = vsub.f32 %v385, %v562
  %v1124 = vsub.f32 %v388, %v565
  %v1125 = vsub.f32 %v393, %v570
  %v1126 = vsub.f32 %v396, %v573
  %v1127 = vsub.f32 %v401, %v578
  %v1128 = vsub.f32 %v404, %v581
  %v1129 = vsub.f32 %v409, %v586
  %v1130 = vsub.f32 %v412, %v589
  %v1131 = vsub.f32 %v417, %v594
  %v1132 = vsub.f32 %v420, %v597
  %v1133 = vsub.f32 %v425, %v602
  %v1134 = vsub.f32 %v428, %v605
  %v1135 = vsub.f32 %v433, %v610
  %v1136 = vsub.f32 %v436, %v613
  %v1137 = vsub.f32 %v1121, %v1102
  %v1138 = vsub.f32 %v1122, %v1103
  %v1139 = vsub.f32 %v1123, %v1104
  %v1140 = vsub.f32 %v1124, %v1105
  %v1141 = vsub.f32 %v1125, %v1106
  %v1142 = vsub.f32 %v1126, %v1107
  %v1143 = vsub.f32 %v1127, %v1108
  %v1144 = vsub.f32 %v1128, %v1109
  %v1145 = vsub.f32 %v1129, %v1110
  %v1146 = vsub.f32 %v1130, %v1111
  %v1147 = vsub.f32 %v1131, %v1112
  %v1148 = vsub.f32 %v1132, %v1113
  %v1149 = vsub.f32 %v1133, %v1114
  %v1150 = vsub.f32 %v1134, %v1115
  %v1151 = vsub.f32 %v1135, %v1116
  %v1152 = vsub.f32 %v1136, %v1117
  %v1153 = vmul.f32 %v1137, 1.442695
  %v1154 = vpow.pop %v1153
  %v1155 = vmul.f32 %v1138, 1.442695
  %v1156 = vpow.pop %v1155
  %v1157 = vmul.f32 %v1139, 1.442695
  %v1158 = vpow.pop %v1157
  %v1159 = vmul.f32 %v1140, 1.442695
  %v1160 = vpow.pop %v1159
  %v1161 = vmul.f32 %v1141, 1.442695
  %v1162 = vpow.pop %v1161
  %v1163 = vmul.f32 %v1142, 1.442695
  %v1164 = vpow.pop %v1163
  %v1165 = vmul.f32 %v1143, 1.442695
  %v1166 = vpow.pop %v1165
  %v1167 = vmul.f32 %v1144, 1.442695
  %v1168 = vpow.pop %v1167
  %v1169 = vmul.f32 %v1145, 1.442695
  %v1170 = vpow.pop %v1169
  %v1171 = vmul.f32 %v1146, 1.442695
  %v1172 = vpow.pop %v1171
  %v1173 = vmul.f32 %v1147, 1.442695
  %v1174 = vpow.pop %v1173
  %v1175 = vmul.f32 %v1148, 1.442695
  %v1176 = vpow.pop %v1175
  %v1177 = vmul.f32 %v1149, 1.442695
  %v1178 = vpow.pop %v1177
  %v1179 = vmul.f32 %v1150, 1.442695
  %v1180 = vpow.pop %v1179
  %v1181 = vmul.f32 %v1151, 1.442695
  %v1182 = vpow.pop %v1181
  %v1183 = vmul.f32 %v1152, 1.442695
  %v1184 = vpow.pop %v1183
  %v1185 = vadd.f32 %v1154, 0.0001
  %v1186 = vadd.f32 %v1156, 0.0001
  %v1187 = vadd.f32 %v1158, 0.0001
  %v1188 = vadd.f32 %v1160, 0.0001
  %v1189 = vadd.f32 %v1162, 0.0001
  %v1190 = vadd.f32 %v1164, 0.0001
  %v1191 = vadd.f32 %v1166, 0.0001
  %v1192 = vadd.f32 %v1168, 0.0001
  %v1193 = vadd.f32 %v1170, 0.0001
  %v1194 = vadd.f32 %v1172, 0.0001
  %v1195 = vadd.f32 %v1174, 0.0001
  %v1196 = vadd.f32 %v1176, 0.0001
  %v1197 = vadd.f32 %v1178, 0.0001
  %v1198 = vadd.f32 %v1180, 0.0001
  %v1199 = vadd.f32 %v1182, 0.0001
  %v1200 = vadd.f32 %v1184, 0.0001
  %v1201 = vmul.f32 %v1185, 0.25
  %v1202 = vmul.f32 %v1186, 0.25
  %v1203 = vmul.f32 %v1187, 0.25
  %v1204 = vmul.f32 %v1188, 0.25
  %v1205 = vmul.f32 %v1189, 0.25
  %v1206 = vmul.f32 %v1190, 0.25
  %v1207 = vmul.f32 %v1191, 0.25
  %v1208 = vmul.f32 %v1192, 0.25
  %v1209 = vmul.f32 %v1193, 0.25
  %v1210 = vmul.f32 %v1194, 0.25
  %v1211 = vmul.f32 %v1195, 0.25
  %v1212 = vmul.f32 %v1196, 0.25
  %v1213 = vmul.f32 %v1197, 0.25
  %v1214 = vmul.f32 %v1198, 0.25
  %v1215 = vmul.f32 %v1199, 0.25
  %v1216 = vmul.f32 %v1200, 0.25
  %1218 = vrot.lane.b32.xlu0 %v1120, 64
  %v1219 = vpop.permute.xlu0 %1218
  %v1221 = vsub.f32 %v1121, %v1219
  %v1222 = vsub.f32 %v1122, %v1219
  %v1223 = vsub.f32 %v1123, %v1219
  %v1224 = vsub.f32 %v1124, %v1219
  %v1225 = vsub.f32 %v1125, %v1219
  %v1226 = vsub.f32 %v1126, %v1219
  %v1227 = vsub.f32 %v1127, %v1219
  %v1228 = vsub.f32 %v1128, %v1219
  %v1229 = vsub.f32 %v1129, %v1219
  %v1230 = vsub.f32 %v1130, %v1219
  %v1231 = vsub.f32 %v1131, %v1219
  %v1232 = vsub.f32 %v1132, %v1219
  %v1233 = vsub.f32 %v1133, %v1219
  %v1234 = vsub.f32 %v1134, %v1219
  %v1235 = vsub.f32 %v1135, %v1219
  %v1236 = vsub.f32 %v1136, %v1219
  %v1237 = vmul.f32 %v1221, 1.442695
  %v1238 = vpow.pop %v1237
  %v1239 = vmul.f32 %v1222, 1.442695
  %v1240 = vpow.pop %v1239
  %v1241 = vmul.f32 %v1223, 1.442695
  %v1242 = vpow.pop %v1241
  %v1243 = vmul.f32 %v1224, 1.442695
  %v1244 = vpow.pop %v1243
  %v1245 = vmul.f32 %v1225, 1.442695
  %v1246 = vpow.pop %v1245
  %v1247 = vmul.f32 %v1226, 1.442695
  %v1248 = vpow.pop %v1247
  %v1249 = vmul.f32 %v1227, 1.442695
  %v1250 = vpow.pop %v1249
  %v1251 = vmul.f32 %v1228, 1.442695
  %v1252 = vpow.pop %v1251
  %v1253 = vmul.f32 %v1229, 1.442695
  %v1254 = vpow.pop %v1253
  %v1255 = vmul.f32 %v1230, 1.442695
  %v1256 = vpow.pop %v1255
  %v1257 = vmul.f32 %v1231, 1.442695
  %v1258 = vpow.pop %v1257
  %v1259 = vmul.f32 %v1232, 1.442695
  %v1260 = vpow.pop %v1259
  %v1261 = vmul.f32 %v1233, 1.442695
  %v1262 = vpow.pop %v1261
  %v1263 = vmul.f32 %v1234, 1.442695
  %v1264 = vpow.pop %v1263
  %v1265 = vmul.f32 %v1235, 1.442695
  %v1266 = vpow.pop %v1265
  %v1267 = vmul.f32 %v1236, 1.442695
  %v1268 = vpow.pop %v1267
  %v1269 = vadd.f32 %v1238, 0.0001
  %v1270 = vadd.f32 %v1240, 0.0001
  %v1271 = vadd.f32 %v1242, 0.0001
  %v1272 = vadd.f32 %v1244, 0.0001
  %v1273 = vadd.f32 %v1246, 0.0001
  %v1274 = vadd.f32 %v1248, 0.0001
  %v1275 = vadd.f32 %v1250, 0.0001
  %v1276 = vadd.f32 %v1252, 0.0001
  %v1277 = vadd.f32 %v1254, 0.0001
  %v1278 = vadd.f32 %v1256, 0.0001
  %v1279 = vadd.f32 %v1258, 0.0001
  %v1280 = vadd.f32 %v1260, 0.0001
  %v1281 = vadd.f32 %v1262, 0.0001
  %v1282 = vadd.f32 %v1264, 0.0001
  %v1283 = vadd.f32 %v1266, 0.0001
  %v1284 = vadd.f32 %v1268, 0.0001
  %v1285 = vmul.f32 %v1269, 0.25
  %v1286 = vmul.f32 %v1270, 0.25
  %v1287 = vmul.f32 %v1271, 0.25
  %v1288 = vmul.f32 %v1272, 0.25
  %v1289 = vmul.f32 %v1273, 0.25
  %v1290 = vmul.f32 %v1274, 0.25
  %v1291 = vmul.f32 %v1275, 0.25
  %v1292 = vmul.f32 %v1276, 0.25
  %v1293 = vmul.f32 %v1277, 0.25
  %v1294 = vmul.f32 %v1278, 0.25
  %v1295 = vmul.f32 %v1279, 0.25
  %v1296 = vmul.f32 %v1280, 0.25
  %v1297 = vmul.f32 %v1281, 0.25
  %v1298 = vmul.f32 %v1282, 0.25
  %v1299 = vmul.f32 %v1283, 0.25
  %v1300 = vmul.f32 %v1284, 0.25
  %v1301 = vpack.c.bf16 %v1202, %v1201
  %v1302 = vpack.c.bf16 %v1204, %v1203
  %v1303 = vpack.c.bf16 %v1206, %v1205
  %v1304 = vpack.c.bf16 %v1208, %v1207
  %v1305 = vpack.c.bf16 %v1210, %v1209
  %v1306 = vpack.c.bf16 %v1212, %v1211
  %v1307 = vpack.c.bf16 %v1214, %v1213
  %v1308 = vpack.c.bf16 %v1216, %v1215
  %v1309 = vpack.c.bf16 %v1286, %v1285
  %v1310 = vpack.c.bf16 %v1288, %v1287
  %v1311 = vpack.c.bf16 %v1290, %v1289
  %v1312 = vpack.c.bf16 %v1292, %v1291
  %v1313 = vpack.c.bf16 %v1294, %v1293
  %v1314 = vpack.c.bf16 %v1296, %v1295
  %v1315 = vpack.c.bf16 %v1298, %v1297
  %v1316 = vpack.c.bf16 %v1300, %v1299
  %1325 = vrot.lane.b32.xlu0 %v1309, 64
  %v1326 = vpop.permute.xlu0 %1325
  %1327 = vrot.lane.b32.xlu0 %v1310, 64
  %v1328 = vpop.permute.xlu0 %1327
  %1329 = vrot.lane.b32.xlu0 %v1311, 64
  %v1330 = vpop.permute.xlu0 %1329
  %1331 = vrot.lane.b32.xlu0 %v1312, 64
  %v1332 = vpop.permute.xlu0 %1331
  %1333 = vrot.lane.b32.xlu0 %v1313, 64
  %v1334 = vpop.permute.xlu0 %1333
  %1335 = vrot.lane.b32.xlu0 %v1314, 64
  %v1336 = vpop.permute.xlu0 %1335
  %1337 = vrot.lane.b32.xlu0 %v1315, 64
  %v1338 = vpop.permute.xlu0 %1337
  %1339 = vrot.lane.b32.xlu0 %v1316, 64
  %v1340 = vpop.permute.xlu0 %1339
  %1349 = vxpose.xlu0.c.b16.start [1/8] %v1326, 128
  %1350 = vxpose.xlu0.c.b16.cont [2/8] %v1328, 128
  %1351 = vxpose.xlu0.c.b16.cont [3/8] %v1330, 128
  %1352 = vxpose.xlu0.c.b16.cont [4/8] %v1332, 128
  %1353 = vxpose.xlu0.c.b16.cont [5/8] %v1334, 128
  %1354 = vxpose.xlu0.c.b16.cont [6/8] %v1336, 128
  %1355 = vxpose.xlu0.c.b16.cont [7/8] %v1338, 128
  %1356 = vxpose.xlu0.c.b16.end [8/8] %v1340, 128
  %v1357 = vpop.trf.xlu0
  %v1358 = vpop.trf.xlu0
  %v1359 = vpop.trf.xlu0
  %v1360 = vpop.trf.xlu0
  %v1361 = vpop.trf.xlu0
  %v1362 = vpop.trf.xlu0
  %v1363 = vpop.trf.xlu0
  %v1364 = vpop.trf.xlu0
  %1373 = vrot.lane.b32.xlu0 %v277, 64
  %v1374 = vpop.permute.xlu0 %1373
  %1375 = vrot.lane.b32.xlu0 %v278, 64
  %v1376 = vpop.permute.xlu0 %1375
  %1377 = vrot.lane.b32.xlu0 %v279, 64
  %v1378 = vpop.permute.xlu0 %1377
  %1379 = vrot.lane.b32.xlu0 %v280, 64
  %v1380 = vpop.permute.xlu0 %1379
  %1381 = vrot.lane.b32.xlu0 %v281, 64
  %v1382 = vpop.permute.xlu0 %1381
  %1383 = vrot.lane.b32.xlu0 %v282, 64
  %v1384 = vpop.permute.xlu0 %1383
  %1385 = vrot.lane.b32.xlu0 %v283, 64
  %v1386 = vpop.permute.xlu0 %1385
  %1387 = vrot.lane.b32.xlu0 %v284, 64
  %v1388 = vpop.permute.xlu0 %1387
  %1397 = vmatprep.subr.bf16.mxu0 0
  %1398 = vmatpush1.bf16.msra.mxu0 %v1374
  %1399 = vmatprep.subr.bf16.mxu0 0
  %1400 = vmatpush1.bf16.msra.mxu0 %v1376
  %1401 = vmatprep.subr.bf16.mxu0 0
  %1402 = vmatpush1.bf16.msra.mxu0 %v1378
  %1403 = vmatprep.subr.bf16.mxu0 0
  %1404 = vmatpush1.bf16.msra.mxu0 %v1380
  %1405 = vmatprep.subr.bf16.mxu0 0
  %1406 = vmatpush1.bf16.msra.mxu0 %v1382
  %1407 = vmatprep.subr.bf16.mxu0 0
  %1408 = vmatpush1.bf16.msra.mxu0 %v1384
  %1409 = vmatprep.subr.bf16.mxu0 0
  %1410 = vmatpush1.bf16.msra.mxu0 %v1386
  %1411 = vmatprep.subr.bf16.mxu0 0
  %1412 = vmatpush1.bf16.msra.mxu0 %v1388
  %1413 = vmatprep.subr.bf16.mxu0 0
  %1414 = vmatpush1.bf16.msra.mxu0 0
  %1415 = vmatprep.subr.bf16.mxu0 0
  %1416 = vmatpush1.bf16.msra.mxu0 0
  %1417 = vmatprep.subr.bf16.mxu0 0
  %1418 = vmatpush1.bf16.msra.mxu0 0
  %1419 = vmatprep.subr.bf16.mxu0 0
  %1420 = vmatpush1.bf16.msra.mxu0 0
  %1421 = vmatprep.subr.bf16.mxu0 0
  %1422 = vmatpush1.bf16.msra.mxu0 0
  %1423 = vmatprep.subr.bf16.mxu0 0
  %1424 = vmatpush1.bf16.msra.mxu0 0
  %1425 = vmatprep.subr.bf16.mxu0 0
  %1426 = vmatpush1.bf16.msra.mxu0 0
  %1427 = vmatprep.subr.bf16.mxu0 0
  %1428 = vmatpush1.bf16.msra.mxu0 0
  %1429 = vmatprep.mubr.bf16.mxu0 0
  %1430 = vmatmul.mubr.bf16.gmra.mrb[0].mxu0 %v1357
  %v1431 = vpop.f32.mrb[0].mxu0
  %v1432 = vadd.f32 0.0, %v1431
  %v1433 = vpop.f32.mrb[0].mxu0
  %v1434 = vpop.f32.mrb[0].mxu0
  %v1435 = vadd.f32 0.0, %v1434
  %v1436 = vpop.f32.mrb[0].mxu0
  %1437 = vmatprep.mubr.bf16.mxu0 0
  %1438 = vmatmul.mubr.bf16.gmra.mrb[0].mxu0 %v1358
  %v1439 = vpop.f32.mrb[0].mxu0
  %v1440 = vadd.f32 0.0, %v1439
  %v1441 = vpop.f32.mrb[0].mxu0
  %v1442 = vpop.f32.mrb[0].mxu0
  %v1443 = vadd.f32 0.0, %v1442
  %v1444 = vpop.f32.mrb[0].mxu0
  %1445 = vmatprep.mubr.bf16.mxu0 0
  %1446 = vmatmul.mubr.bf16.gmra.mrb[0].mxu0 %v1359
  %v1447 = vpop.f32.mrb[0].mxu0
  %v1448 = vadd.f32 0.0, %v1447
  %v1449 = vpop.f32.mrb[0].mxu0
  %v1450 = vpop.f32.mrb[0].mxu0
  %v1451 = vadd.f32 0.0, %v1450
  %v1452 = vpop.f32.mrb[0].mxu0
  %1453 = vmatprep.mubr.bf16.mxu0 0
  %1454 = vmatmul.mubr.bf16.gmra.mrb[0].mxu0 %v1360
  %v1455 = vpop.f32.mrb[0].mxu0
  %v1456 = vadd.f32 0.0, %v1455
  %v1457 = vpop.f32.mrb[0].mxu0
  %v1458 = vpop.f32.mrb[0].mxu0
  %v1459 = vadd.f32 0.0, %v1458
  %v1460 = vpop.f32.mrb[0].mxu0
  %1461 = vdwg.mxu0
  %v1462 = vld [vmem:[%s6] sm:$0xff]
  %v1463 = vld [vmem:[%s6 + $0x8] sm:$0xff]
  %v1464 = vld [vmem:[%s6 + $0x10] sm:$0xff]
  %v1465 = vld [vmem:[%s6 + $0x18] sm:$0xff]
  %v1466 = vld [vmem:[%s6 + $0x20] sm:$0xff]
  %v1467 = vld [vmem:[%s6 + $0x28] sm:$0xff]
  %v1468 = vld [vmem:[%s6 + $0x30] sm:$0xff]
  %v1469 = vld [vmem:[%s6 + $0x38] sm:$0xff]
  %v1470 = vmul.f32 %v1432, %v1462
  %v1471 = vmul.f32 %v1435, %v1463
  %v1472 = vmul.f32 %v1440, %v1464
  %v1473 = vmul.f32 %v1443, %v1465
  %v1474 = vmul.f32 %v1448, %v1466
  %v1475 = vmul.f32 %v1451, %v1467
  %v1476 = vmul.f32 %v1456, %v1468
  %v1477 = vmul.f32 %v1459, %v1469
  %v1478 = vpack.c.bf16 %v1471, %v1470
  %v1479 = vpack.c.bf16 %v1473, %v1472
  %v1480 = vpack.c.bf16 %v1475, %v1474
  %v1481 = vpack.c.bf16 %v1477, %v1476
  %v1483 = vsel %vm317, %v1301, 0
  %v1486 = vsel %vm317, %v1302, 0
  %v1489 = vsel %vm317, %v1303, 0
  %v1492 = vsel %vm317, %v1304, 0
  %v1495 = vsel %vm317, %v1305, 0
  %v1498 = vsel %vm317, %v1306, 0
  %v1501 = vsel %vm317, %v1307, 0
  %v1504 = vsel %vm317, %v1308, 0
  %1506 = vmatprep.subr.bf16.mxu0 0
  %1507 = vmatpush1.bf16.msra.mxu0 %v1478
  %1508 = vmatprep.subr.bf16.mxu0 0
  %1509 = vmatpush1.bf16.msra.mxu0 %v1479
  %1510 = vmatprep.subr.bf16.mxu0 0
  %1511 = vmatpush1.bf16.msra.mxu0 %v1480
  %1512 = vmatprep.subr.bf16.mxu0 0
  %1513 = vmatpush1.bf16.msra.mxu0 %v1481
  %1514 = vmatprep.subr.bf16.mxu0 0
  %1515 = vmatpush1.bf16.msra.mxu0 0
  %1516 = vmatprep.subr.bf16.mxu0 0
  %1517 = vmatpush1.bf16.msra.mxu0 0
  %1518 = vmatprep.subr.bf16.mxu0 0
  %1519 = vmatpush1.bf16.msra.mxu0 0
  %1520 = vmatprep.subr.bf16.mxu0 0
  %1521 = vmatpush1.bf16.msra.mxu0 0
  %1522 = vmatprep.subr.bf16.mxu0 0
  %1523 = vmatpush1.bf16.msra.mxu0 0
  %1524 = vmatprep.subr.bf16.mxu0 0
  %1525 = vmatpush1.bf16.msra.mxu0 0
  %1526 = vmatprep.subr.bf16.mxu0 0
  %1527 = vmatpush1.bf16.msra.mxu0 0
  %1528 = vmatprep.subr.bf16.mxu0 0
  %1529 = vmatpush1.bf16.msra.mxu0 0
  %1530 = vmatprep.subr.bf16.mxu0 0
  %1531 = vmatpush1.bf16.msra.mxu0 0
  %1532 = vmatprep.subr.bf16.mxu0 0
  %1533 = vmatpush1.bf16.msra.mxu0 0
  %1534 = vmatprep.subr.bf16.mxu0 0
  %1535 = vmatpush1.bf16.msra.mxu0 0
  %1536 = vmatprep.subr.bf16.mxu0 0
  %1537 = vmatpush1.bf16.msra.mxu0 0
  %1538 = vmatprep.mubr.bf16.mxu0 0
  %1539 = vmatmul.mubr.bf16.gmra.mrb[0].mxu0 %v1483
  %v1540 = vpop.f32.mrb[0].mxu0
  %v1541 = vadd.f32 0.0, %v1540
  %v1542 = vpop.f32.mrb[0].mxu0
  %v1543 = vpop.f32.mrb[0].mxu0
  %v1544 = vadd.f32 0.0, %v1543
  %v1545 = vpop.f32.mrb[0].mxu0
  %1546 = vmatprep.mubr.bf16.mxu0 0
  %1547 = vmatmul.mubr.bf16.gmra.mrb[0].mxu0 %v1486
  %v1548 = vpop.f32.mrb[0].mxu0
  %v1549 = vadd.f32 0.0, %v1548
  %v1550 = vpop.f32.mrb[0].mxu0
  %v1551 = vpop.f32.mrb[0].mxu0
  %v1552 = vadd.f32 0.0, %v1551
  %v1553 = vpop.f32.mrb[0].mxu0
  %1554 = vmatprep.mubr.bf16.mxu0 0
  %1555 = vmatmul.mubr.bf16.gmra.mrb[0].mxu0 %v1489
  %v1556 = vpop.f32.mrb[0].mxu0
  %v1557 = vadd.f32 0.0, %v1556
  %v1558 = vpop.f32.mrb[0].mxu0
  %v1559 = vpop.f32.mrb[0].mxu0
  %v1560 = vadd.f32 0.0, %v1559
  %v1561 = vpop.f32.mrb[0].mxu0
  %1562 = vmatprep.mubr.bf16.mxu0 0
  %1563 = vmatmul.mubr.bf16.gmra.mrb[0].mxu0 %v1492
  %v1564 = vpop.f32.mrb[0].mxu0
  %v1565 = vadd.f32 0.0, %v1564
  %v1566 = vpop.f32.mrb[0].mxu0
  %v1567 = vpop.f32.mrb[0].mxu0
  %v1568 = vadd.f32 0.0, %v1567
  %v1569 = vpop.f32.mrb[0].mxu0
  %1570 = vmatprep.mubr.bf16.mxu0 0
  %1571 = vmatmul.mubr.bf16.gmra.mrb[0].mxu0 %v1495
  %v1572 = vpop.f32.mrb[0].mxu0
  %v1573 = vadd.f32 0.0, %v1572
  %v1574 = vpop.f32.mrb[0].mxu0
  %v1575 = vpop.f32.mrb[0].mxu0
  %v1576 = vadd.f32 0.0, %v1575
  %v1577 = vpop.f32.mrb[0].mxu0
  %1578 = vmatprep.mubr.bf16.mxu0 0
  %1579 = vmatmul.mubr.bf16.gmra.mrb[0].mxu0 %v1498
  %v1580 = vpop.f32.mrb[0].mxu0
  %v1581 = vadd.f32 0.0, %v1580
  %v1582 = vpop.f32.mrb[0].mxu0
  %v1583 = vpop.f32.mrb[0].mxu0
  %v1584 = vadd.f32 0.0, %v1583
  %v1585 = vpop.f32.mrb[0].mxu0
  %1586 = vmatprep.mubr.bf16.mxu0 0
  %1587 = vmatmul.mubr.bf16.gmra.mrb[0].mxu0 %v1501
  %v1588 = vpop.f32.mrb[0].mxu0
  %v1589 = vadd.f32 0.0, %v1588
  %v1590 = vpop.f32.mrb[0].mxu0
  %v1591 = vpop.f32.mrb[0].mxu0
  %v1592 = vadd.f32 0.0, %v1591
  %v1593 = vpop.f32.mrb[0].mxu0
  %1594 = vmatprep.mubr.bf16.mxu0 0
  %1595 = vmatmul.mubr.bf16.gmra.mrb[0].mxu0 %v1504
  %v1596 = vpop.f32.mrb[0].mxu0
  %v1597 = vadd.f32 0.0, %v1596
  %v1598 = vpop.f32.mrb[0].mxu0
  %v1599 = vpop.f32.mrb[0].mxu0
  %v1600 = vadd.f32 0.0, %v1599
  %v1601 = vpop.f32.mrb[0].mxu0
  %1602 = vdwg.mxu0
  %v1603 = vrcp.pop %v1541
  %v1604 = vrcp.pop %v1544
  %v1605 = vrcp.pop %v1549
  %v1606 = vrcp.pop %v1552
  %v1607 = vrcp.pop %v1557
  %v1608 = vrcp.pop %v1560
  %v1609 = vrcp.pop %v1565
  %v1610 = vrcp.pop %v1568
  %v1611 = vrcp.pop %v1573
  %v1612 = vrcp.pop %v1576
  %v1613 = vrcp.pop %v1581
  %v1614 = vrcp.pop %v1584
  %v1615 = vrcp.pop %v1589
  %v1616 = vrcp.pop %v1592
  %v1617 = vrcp.pop %v1597
  %v1618 = vrcp.pop %v1600
  %1635 = vrot.lane.b32.xlu0 %v1603, 96
  %v1636 = vpop.permute.xlu0 %1635
  %1637 = vrot.lane.b32.xlu0 %v1604, 96
  %v1638 = vpop.permute.xlu0 %1637
  %1639 = vrot.lane.b32.xlu0 %v1605, 96
  %v1640 = vpop.permute.xlu0 %1639
  %1641 = vrot.lane.b32.xlu0 %v1606, 96
  %v1642 = vpop.permute.xlu0 %1641
  %1643 = vrot.lane.b32.xlu0 %v1607, 96
  %v1644 = vpop.permute.xlu0 %1643
  %1645 = vrot.lane.b32.xlu0 %v1608, 96
  %v1646 = vpop.permute.xlu0 %1645
  %1647 = vrot.lane.b32.xlu0 %v1609, 96
  %v1648 = vpop.permute.xlu0 %1647
  %1649 = vrot.lane.b32.xlu0 %v1610, 96
  %v1650 = vpop.permute.xlu0 %1649
  %1651 = vrot.lane.b32.xlu0 %v1611, 96
  %v1652 = vpop.permute.xlu0 %1651
  %1653 = vrot.lane.b32.xlu0 %v1612, 96
  %v1654 = vpop.permute.xlu0 %1653
  %1655 = vrot.lane.b32.xlu0 %v1613, 96
  %v1656 = vpop.permute.xlu0 %1655
  %1657 = vrot.lane.b32.xlu0 %v1614, 96
  %v1658 = vpop.permute.xlu0 %1657
  %1659 = vrot.lane.b32.xlu0 %v1615, 96
  %v1660 = vpop.permute.xlu0 %1659
  %1661 = vrot.lane.b32.xlu0 %v1616, 96
  %v1662 = vpop.permute.xlu0 %1661
  %1663 = vrot.lane.b32.xlu0 %v1617, 96
  %v1664 = vpop.permute.xlu0 %1663
  %1665 = vrot.lane.b32.xlu0 %v1618, 96
  %v1666 = vpop.permute.xlu0 %1665
  %v1683 = vmul.f32 %v1541, %v1636
  %v1684 = vmul.f32 %v1544, %v1638
  %v1685 = vmul.f32 %v1549, %v1640
  %v1686 = vmul.f32 %v1552, %v1642
  %v1687 = vmul.f32 %v1557, %v1644
  %v1688 = vmul.f32 %v1560, %v1646
  %v1689 = vmul.f32 %v1565, %v1648
  %v1690 = vmul.f32 %v1568, %v1650
  %v1691 = vmul.f32 %v1573, %v1652
  %v1692 = vmul.f32 %v1576, %v1654
  %v1693 = vmul.f32 %v1581, %v1656
  %v1694 = vmul.f32 %v1584, %v1658
  %v1695 = vmul.f32 %v1589, %v1660
  %v1696 = vmul.f32 %v1592, %v1662
  %v1697 = vmul.f32 %v1597, %v1664
  %v1698 = vmul.f32 %v1600, %v1666
  %v1699 = vld [vmem:[%s7] sm:$0xf]
  %v1700 = vld [vmem:[%s7 + $0x4] sm:$0xf]
  %v1701 = vld [vmem:[%s7 + $0x8] sm:$0xf]
  %v1702 = vld [vmem:[%s7 + $0xc] sm:$0xf]
  %v1703 = vld [vmem:[%s7 + $0x10] sm:$0xf]
  %v1704 = vld [vmem:[%s7 + $0x14] sm:$0xf]
  %v1705 = vld [vmem:[%s7 + $0x18] sm:$0xf]
  %v1706 = vld [vmem:[%s7 + $0x1c] sm:$0xf]
  %vm1707 = vcmp.gt.f32.partialorder %v201, 0.0
  %vm1708 = vcmp.gt.f32.partialorder %v205, 0.0
  %vm1709 = vcmp.gt.f32.partialorder %v211, 0.0
  %vm1710 = vcmp.gt.f32.partialorder %v215, 0.0
  %vm1711 = vcmp.gt.f32.partialorder %v221, 0.0
  %vm1712 = vcmp.gt.f32.partialorder %v225, 0.0
  %vm1713 = vcmp.gt.f32.partialorder %v231, 0.0
  %vm1714 = vcmp.gt.f32.partialorder %v235, 0.0
  %vm1715 = vcmp.gt.f32.partialorder %v241, 0.0
  %vm1716 = vcmp.gt.f32.partialorder %v245, 0.0
  %vm1717 = vcmp.gt.f32.partialorder %v251, 0.0
  %vm1718 = vcmp.gt.f32.partialorder %v255, 0.0
  %vm1719 = vcmp.gt.f32.partialorder %v261, 0.0
  %vm1720 = vcmp.gt.f32.partialorder %v265, 0.0
  %vm1721 = vcmp.gt.f32.partialorder %v271, 0.0
  %vm1722 = vcmp.gt.f32.partialorder %v275, 0.0
  %v1723 = vmin.f32 %v201, 0.0
  %v1724 = vmin.f32 %v205, 0.0
  %v1725 = vmin.f32 %v211, 0.0
  %v1726 = vmin.f32 %v215, 0.0
  %v1727 = vmin.f32 %v221, 0.0
  %v1728 = vmin.f32 %v225, 0.0
  %v1729 = vmin.f32 %v231, 0.0
  %v1730 = vmin.f32 %v235, 0.0
  %v1731 = vmin.f32 %v241, 0.0
  %v1732 = vmin.f32 %v245, 0.0
  %v1733 = vmin.f32 %v251, 0.0
  %v1734 = vmin.f32 %v255, 0.0
  %v1735 = vmin.f32 %v261, 0.0
  %v1736 = vmin.f32 %v265, 0.0
  %v1737 = vmin.f32 %v271, 0.0
  %v1738 = vmin.f32 %v275, 0.0
  %v1739 = vmul.f32 %v1723, 1.442695
  %v1740 = vpow.pop %v1739
  %v1741 = vmul.f32 %v1724, 1.442695
  %v1742 = vpow.pop %v1741
  %v1743 = vmul.f32 %v1725, 1.442695
  %v1744 = vpow.pop %v1743
  %v1745 = vmul.f32 %v1726, 1.442695
  %v1746 = vpow.pop %v1745
  %v1747 = vmul.f32 %v1727, 1.442695
  %v1748 = vpow.pop %v1747
  %v1749 = vmul.f32 %v1728, 1.442695
  %v1750 = vpow.pop %v1749
  %v1751 = vmul.f32 %v1729, 1.442695
  %v1752 = vpow.pop %v1751
  %v1753 = vmul.f32 %v1730, 1.442695
  %v1754 = vpow.pop %v1753
  %v1755 = vmul.f32 %v1731, 1.442695
  %v1756 = vpow.pop %v1755
  %v1757 = vmul.f32 %v1732, 1.442695
  %v1758 = vpow.pop %v1757
  %v1759 = vmul.f32 %v1733, 1.442695
  %v1760 = vpow.pop %v1759
  %v1761 = vmul.f32 %v1734, 1.442695
  %v1762 = vpow.pop %v1761
  %v1763 = vmul.f32 %v1735, 1.442695
  %v1764 = vpow.pop %v1763
  %v1765 = vmul.f32 %v1736, 1.442695
  %v1766 = vpow.pop %v1765
  %v1767 = vmul.f32 %v1737, 1.442695
  %v1768 = vpow.pop %v1767
  %v1769 = vmul.f32 %v1738, 1.442695
  %v1770 = vpow.pop %v1769
  %v1771 = vsub.f32 %v1740, 1.0
  %v1772 = vsub.f32 %v1742, 1.0
  %v1773 = vsub.f32 %v1744, 1.0
  %v1774 = vsub.f32 %v1746, 1.0
  %v1775 = vsub.f32 %v1748, 1.0
  %v1776 = vsub.f32 %v1750, 1.0
  %v1777 = vsub.f32 %v1752, 1.0
  %v1778 = vsub.f32 %v1754, 1.0
  %v1779 = vsub.f32 %v1756, 1.0
  %v1780 = vsub.f32 %v1758, 1.0
  %v1781 = vsub.f32 %v1760, 1.0
  %v1782 = vsub.f32 %v1762, 1.0
  %v1783 = vsub.f32 %v1764, 1.0
  %v1784 = vsub.f32 %v1766, 1.0
  %v1785 = vsub.f32 %v1768, 1.0
  %v1786 = vsub.f32 %v1770, 1.0
  %v1787 = vsel %vm1707, %v201, %v1771
  %v1788 = vsel %vm1708, %v205, %v1772
  %v1789 = vsel %vm1709, %v211, %v1773
  %v1790 = vsel %vm1710, %v215, %v1774
  %v1791 = vsel %vm1711, %v221, %v1775
  %v1792 = vsel %vm1712, %v225, %v1776
  %v1793 = vsel %vm1713, %v231, %v1777
  %v1794 = vsel %vm1714, %v235, %v1778
  %v1795 = vsel %vm1715, %v241, %v1779
  %v1796 = vsel %vm1716, %v245, %v1780
  %v1797 = vsel %vm1717, %v251, %v1781
  %v1798 = vsel %vm1718, %v255, %v1782
  %v1799 = vsel %vm1719, %v261, %v1783
  %v1800 = vsel %vm1720, %v265, %v1784
  %v1801 = vsel %vm1721, %v271, %v1785
  %v1802 = vsel %vm1722, %v275, %v1786
  %v1803 = vpack.c.bf16 %v1788, %v1787
  %v1804 = vpack.c.bf16 %v1790, %v1789
  %v1805 = vpack.c.bf16 %v1792, %v1791
  %v1806 = vpack.c.bf16 %v1794, %v1793
  %v1807 = vpack.c.bf16 %v1796, %v1795
  %v1808 = vpack.c.bf16 %v1798, %v1797
  %v1809 = vpack.c.bf16 %v1800, %v1799
  %v1810 = vpack.c.bf16 %v1802, %v1801
  %vm1811 = vcmp.gt.f32.partialorder %v1683, 0.0
  %vm1812 = vcmp.gt.f32.partialorder %v1684, 0.0
  %vm1813 = vcmp.gt.f32.partialorder %v1685, 0.0
  %vm1814 = vcmp.gt.f32.partialorder %v1686, 0.0
  %vm1815 = vcmp.gt.f32.partialorder %v1687, 0.0
  %vm1816 = vcmp.gt.f32.partialorder %v1688, 0.0
  %vm1817 = vcmp.gt.f32.partialorder %v1689, 0.0
  %vm1818 = vcmp.gt.f32.partialorder %v1690, 0.0
  %vm1819 = vcmp.gt.f32.partialorder %v1691, 0.0
  %vm1820 = vcmp.gt.f32.partialorder %v1692, 0.0
  %vm1821 = vcmp.gt.f32.partialorder %v1693, 0.0
  %vm1822 = vcmp.gt.f32.partialorder %v1694, 0.0
  %vm1823 = vcmp.gt.f32.partialorder %v1695, 0.0
  %vm1824 = vcmp.gt.f32.partialorder %v1696, 0.0
  %vm1825 = vcmp.gt.f32.partialorder %v1697, 0.0
  %vm1826 = vcmp.gt.f32.partialorder %v1698, 0.0
  %v1827 = vmin.f32 %v1683, 0.0
  %v1828 = vmin.f32 %v1684, 0.0
  %v1829 = vmin.f32 %v1685, 0.0
  %v1830 = vmin.f32 %v1686, 0.0
  %v1831 = vmin.f32 %v1687, 0.0
  %v1832 = vmin.f32 %v1688, 0.0
  %v1833 = vmin.f32 %v1689, 0.0
  %v1834 = vmin.f32 %v1690, 0.0
  %v1835 = vmin.f32 %v1691, 0.0
  %v1836 = vmin.f32 %v1692, 0.0
  %v1837 = vmin.f32 %v1693, 0.0
  %v1838 = vmin.f32 %v1694, 0.0
  %v1839 = vmin.f32 %v1695, 0.0
  %v1840 = vmin.f32 %v1696, 0.0
  %v1841 = vmin.f32 %v1697, 0.0
  %v1842 = vmin.f32 %v1698, 0.0
  %v1843 = vmul.f32 %v1827, 1.442695
  %v1844 = vpow.pop %v1843
  %v1845 = vmul.f32 %v1828, 1.442695
  %v1846 = vpow.pop %v1845
  %v1847 = vmul.f32 %v1829, 1.442695
  %v1848 = vpow.pop %v1847
  %v1849 = vmul.f32 %v1830, 1.442695
  %v1850 = vpow.pop %v1849
  %v1851 = vmul.f32 %v1831, 1.442695
  %v1852 = vpow.pop %v1851
  %v1853 = vmul.f32 %v1832, 1.442695
  %v1854 = vpow.pop %v1853
  %v1855 = vmul.f32 %v1833, 1.442695
  %v1856 = vpow.pop %v1855
  %v1857 = vmul.f32 %v1834, 1.442695
  %v1858 = vpow.pop %v1857
  %v1859 = vmul.f32 %v1835, 1.442695
  %v1860 = vpow.pop %v1859
  %v1861 = vmul.f32 %v1836, 1.442695
  %v1862 = vpow.pop %v1861
  %v1863 = vmul.f32 %v1837, 1.442695
  %v1864 = vpow.pop %v1863
  %v1865 = vmul.f32 %v1838, 1.442695
  %v1866 = vpow.pop %v1865
  %v1867 = vmul.f32 %v1839, 1.442695
  %v1868 = vpow.pop %v1867
  %v1869 = vmul.f32 %v1840, 1.442695
  %v1870 = vpow.pop %v1869
  %v1871 = vmul.f32 %v1841, 1.442695
  %v1872 = vpow.pop %v1871
  %v1873 = vmul.f32 %v1842, 1.442695
  %v1874 = vpow.pop %v1873
  %v1875 = vsub.f32 %v1844, 1.0
  %v1876 = vsub.f32 %v1846, 1.0
  %v1877 = vsub.f32 %v1848, 1.0
  %v1878 = vsub.f32 %v1850, 1.0
  %v1879 = vsub.f32 %v1852, 1.0
  %v1880 = vsub.f32 %v1854, 1.0
  %v1881 = vsub.f32 %v1856, 1.0
  %v1882 = vsub.f32 %v1858, 1.0
  %v1883 = vsub.f32 %v1860, 1.0
  %v1884 = vsub.f32 %v1862, 1.0
  %v1885 = vsub.f32 %v1864, 1.0
  %v1886 = vsub.f32 %v1866, 1.0
  %v1887 = vsub.f32 %v1868, 1.0
  %v1888 = vsub.f32 %v1870, 1.0
  %v1889 = vsub.f32 %v1872, 1.0
  %v1890 = vsub.f32 %v1874, 1.0
  %v1891 = vsel %vm1811, %v1683, %v1875
  %v1892 = vsel %vm1812, %v1684, %v1876
  %v1893 = vsel %vm1813, %v1685, %v1877
  %v1894 = vsel %vm1814, %v1686, %v1878
  %v1895 = vsel %vm1815, %v1687, %v1879
  %v1896 = vsel %vm1816, %v1688, %v1880
  %v1897 = vsel %vm1817, %v1689, %v1881
  %v1898 = vsel %vm1818, %v1690, %v1882
  %v1899 = vsel %vm1819, %v1691, %v1883
  %v1900 = vsel %vm1820, %v1692, %v1884
  %v1901 = vsel %vm1821, %v1693, %v1885
  %v1902 = vsel %vm1822, %v1694, %v1886
  %v1903 = vsel %vm1823, %v1695, %v1887
  %v1904 = vsel %vm1824, %v1696, %v1888
  %v1905 = vsel %vm1825, %v1697, %v1889
  %v1906 = vsel %vm1826, %v1698, %v1890
  %v1907 = vpack.c.bf16 %v1892, %v1891
  %v1908 = vpack.c.bf16 %v1894, %v1893
  %v1909 = vpack.c.bf16 %v1896, %v1895
  %v1910 = vpack.c.bf16 %v1898, %v1897
  %v1911 = vpack.c.bf16 %v1900, %v1899
  %v1912 = vpack.c.bf16 %v1902, %v1901
  %v1913 = vpack.c.bf16 %v1904, %v1903
  %v1914 = vpack.c.bf16 %v1906, %v1905
  %v1919 = vunpack.c.l.b16 %v1703
  %v1920 = vunpack.c.l.b16 %v1704
  %v1921 = vunpack.c.l.b16 %v1705
  %v1922 = vunpack.c.l.b16 %v1706
  %v1923 = vpack.c.b16 %v1920, %v1919
  %v1924 = vpack.c.b16 %v1922, %v1921
  %vm1927 = vcmask 261120
  %v1929 = vsel %vm1927, %v1907, 0
  %v1932 = vsel %vm1927, %v1908, 0
  %v1935 = vsel %vm1927, %v1909, 0
  %v1938 = vsel %vm1927, %v1910, 0
  %v1941 = vsel %vm1927, %v1911, 0
  %v1944 = vsel %vm1927, %v1912, 0
  %v1947 = vsel %vm1927, %v1913, 0
  %v1950 = vsel %vm1927, %v1914, 0
  %1952 = vmatprep.subr.bf16.mxu0 0
  %1953 = vmatpush1.bf16.msra.mxu0 %v1923
  %1954 = vmatprep.subr.bf16.mxu0 0
  %1955 = vmatpush1.bf16.msra.mxu0 %v1924
  %1956 = vmatprep.subr.bf16.mxu0 0
  %1957 = vmatpush1.bf16.msra.mxu0 0
  %1958 = vmatprep.subr.bf16.mxu0 0
  %1959 = vmatpush1.bf16.msra.mxu0 0
  %1960 = vmatprep.subr.bf16.mxu0 0
  %1961 = vmatpush1.bf16.msra.mxu0 0
  %1962 = vmatprep.subr.bf16.mxu0 0
  %1963 = vmatpush1.bf16.msra.mxu0 0
  %1964 = vmatprep.subr.bf16.mxu0 0
  %1965 = vmatpush1.bf16.msra.mxu0 0
  %1966 = vmatprep.subr.bf16.mxu0 0
  %1967 = vmatpush1.bf16.msra.mxu0 0
  %1968 = vmatprep.subr.bf16.mxu0 0
  %1969 = vmatpush1.bf16.msra.mxu0 0
  %1970 = vmatprep.subr.bf16.mxu0 0
  %1971 = vmatpush1.bf16.msra.mxu0 0
  %1972 = vmatprep.subr.bf16.mxu0 0
  %1973 = vmatpush1.bf16.msra.mxu0 0
  %1974 = vmatprep.subr.bf16.mxu0 0
  %1975 = vmatpush1.bf16.msra.mxu0 0
  %1976 = vmatprep.subr.bf16.mxu0 0
  %1977 = vmatpush1.bf16.msra.mxu0 0
  %1978 = vmatprep.subr.bf16.mxu0 0
  %1979 = vmatpush1.bf16.msra.mxu0 0
  %1980 = vmatprep.subr.bf16.mxu0 0
  %1981 = vmatpush1.bf16.msra.mxu0 0
  %1982 = vmatprep.subr.bf16.mxu0 0
  %1983 = vmatpush1.bf16.msra.mxu0 0
  %1984 = vmatprep.mubr.bf16.mxu0 0
  %1985 = vmatmul.mubr.bf16.gmra.mrb[0].mxu0 %v1929
  %v1986 = vpop.f32.mrb[0].mxu0
  %v1987 = vadd.f32 0.0, %v1986
  %v1988 = vpop.f32.mrb[0].mxu0
  %v1989 = vpop.f32.mrb[0].mxu0
  %v1990 = vadd.f32 0.0, %v1989
  %v1991 = vpop.f32.mrb[0].mxu0
  %1992 = vmatprep.mubr.bf16.mxu0 0
  %1993 = vmatmul.mubr.bf16.gmra.mrb[0].mxu0 %v1932
  %v1994 = vpop.f32.mrb[0].mxu0
  %v1995 = vadd.f32 0.0, %v1994
  %v1996 = vpop.f32.mrb[0].mxu0
  %v1997 = vpop.f32.mrb[0].mxu0
  %v1998 = vadd.f32 0.0, %v1997
  %v1999 = vpop.f32.mrb[0].mxu0
  %2000 = vmatprep.mubr.bf16.mxu0 0
  %2001 = vmatmul.mubr.bf16.gmra.mrb[0].mxu0 %v1935
  %v2002 = vpop.f32.mrb[0].mxu0
  %v2003 = vadd.f32 0.0, %v2002
  %v2004 = vpop.f32.mrb[0].mxu0
  %v2005 = vpop.f32.mrb[0].mxu0
  %v2006 = vadd.f32 0.0, %v2005
  %v2007 = vpop.f32.mrb[0].mxu0
  %2008 = vmatprep.mubr.bf16.mxu0 0
  %2009 = vmatmul.mubr.bf16.gmra.mrb[0].mxu0 %v1938
  %v2010 = vpop.f32.mrb[0].mxu0
  %v2011 = vadd.f32 0.0, %v2010
  %v2012 = vpop.f32.mrb[0].mxu0
  %v2013 = vpop.f32.mrb[0].mxu0
  %v2014 = vadd.f32 0.0, %v2013
  %v2015 = vpop.f32.mrb[0].mxu0
  %2016 = vmatprep.mubr.bf16.mxu0 0
  %2017 = vmatmul.mubr.bf16.gmra.mrb[0].mxu0 %v1941
  %v2018 = vpop.f32.mrb[0].mxu0
  %v2019 = vadd.f32 0.0, %v2018
  %v2020 = vpop.f32.mrb[0].mxu0
  %v2021 = vpop.f32.mrb[0].mxu0
  %v2022 = vadd.f32 0.0, %v2021
  %v2023 = vpop.f32.mrb[0].mxu0
  %2024 = vmatprep.mubr.bf16.mxu0 0
  %2025 = vmatmul.mubr.bf16.gmra.mrb[0].mxu0 %v1944
  %v2026 = vpop.f32.mrb[0].mxu0
  %v2027 = vadd.f32 0.0, %v2026
  %v2028 = vpop.f32.mrb[0].mxu0
  %v2029 = vpop.f32.mrb[0].mxu0
  %v2030 = vadd.f32 0.0, %v2029
  %v2031 = vpop.f32.mrb[0].mxu0
  %2032 = vmatprep.mubr.bf16.mxu0 0
  %2033 = vmatmul.mubr.bf16.gmra.mrb[0].mxu0 %v1947
  %v2034 = vpop.f32.mrb[0].mxu0
  %v2035 = vadd.f32 0.0, %v2034
  %v2036 = vpop.f32.mrb[0].mxu0
  %v2037 = vpop.f32.mrb[0].mxu0
  %v2038 = vadd.f32 0.0, %v2037
  %v2039 = vpop.f32.mrb[0].mxu0
  %2040 = vmatprep.mubr.bf16.mxu0 0
  %2041 = vmatmul.mubr.bf16.gmra.mrb[0].mxu0 %v1950
  %v2042 = vpop.f32.mrb[0].mxu0
  %v2043 = vadd.f32 0.0, %v2042
  %v2044 = vpop.f32.mrb[0].mxu0
  %v2045 = vpop.f32.mrb[0].mxu0
  %v2046 = vadd.f32 0.0, %v2045
  %v2047 = vpop.f32.mrb[0].mxu0
  %2048 = vdwg.mxu0
  %v2053 = vunpack.c.l.b16 %v1699
  %v2054 = vunpack.c.l.b16 %v1700
  %v2055 = vunpack.c.l.b16 %v1701
  %v2056 = vunpack.c.l.b16 %v1702
  %v2057 = vpack.c.b16 %v2054, %v2053
  %v2058 = vpack.c.b16 %v2056, %v2055
  %v2062 = vsel %vm1927, %v1803, 0
  %v2065 = vsel %vm1927, %v1804, 0
  %v2068 = vsel %vm1927, %v1805, 0
  %v2071 = vsel %vm1927, %v1806, 0
  %v2074 = vsel %vm1927, %v1807, 0
  %v2077 = vsel %vm1927, %v1808, 0
  %v2080 = vsel %vm1927, %v1809, 0
  %v2083 = vsel %vm1927, %v1810, 0
  %2085 = vmatprep.subr.bf16.mxu0 0
  %2086 = vmatpush1.bf16.msra.mxu0 %v2057
  %2087 = vmatprep.subr.bf16.mxu0 0
  %2088 = vmatpush1.bf16.msra.mxu0 %v2058
  %2089 = vmatprep.subr.bf16.mxu0 0
  %2090 = vmatpush1.bf16.msra.mxu0 0
  %2091 = vmatprep.subr.bf16.mxu0 0
  %2092 = vmatpush1.bf16.msra.mxu0 0
  %2093 = vmatprep.subr.bf16.mxu0 0
  %2094 = vmatpush1.bf16.msra.mxu0 0
  %2095 = vmatprep.subr.bf16.mxu0 0
  %2096 = vmatpush1.bf16.msra.mxu0 0
  %2097 = vmatprep.subr.bf16.mxu0 0
  %2098 = vmatpush1.bf16.msra.mxu0 0
  %2099 = vmatprep.subr.bf16.mxu0 0
  %2100 = vmatpush1.bf16.msra.mxu0 0
  %2101 = vmatprep.subr.bf16.mxu0 0
  %2102 = vmatpush1.bf16.msra.mxu0 0
  %2103 = vmatprep.subr.bf16.mxu0 0
  %2104 = vmatpush1.bf16.msra.mxu0 0
  %2105 = vmatprep.subr.bf16.mxu0 0
  %2106 = vmatpush1.bf16.msra.mxu0 0
  %2107 = vmatprep.subr.bf16.mxu0 0
  %2108 = vmatpush1.bf16.msra.mxu0 0
  %2109 = vmatprep.subr.bf16.mxu0 0
  %2110 = vmatpush1.bf16.msra.mxu0 0
  %2111 = vmatprep.subr.bf16.mxu0 0
  %2112 = vmatpush1.bf16.msra.mxu0 0
  %2113 = vmatprep.subr.bf16.mxu0 0
  %2114 = vmatpush1.bf16.msra.mxu0 0
  %2115 = vmatprep.subr.bf16.mxu0 0
  %2116 = vmatpush1.bf16.msra.mxu0 0
  %2117 = vmatprep.mubr.bf16.mxu0 0
  %2118 = vmatmul.mubr.bf16.gmra.mrb[0].mxu0 %v2062
  %v2119 = vpop.f32.mrb[0].mxu0
  %v2120 = vadd.f32 %v1987, %v2119
  %v2121 = vpop.f32.mrb[0].mxu0
  %v2122 = vpop.f32.mrb[0].mxu0
  %v2123 = vadd.f32 %v1990, %v2122
  %v2124 = vpop.f32.mrb[0].mxu0
  %2125 = vmatprep.mubr.bf16.mxu0 0
  %2126 = vmatmul.mubr.bf16.gmra.mrb[0].mxu0 %v2065
  %v2127 = vpop.f32.mrb[0].mxu0
  %v2128 = vadd.f32 %v1995, %v2127
  %v2129 = vpop.f32.mrb[0].mxu0
  %v2130 = vpop.f32.mrb[0].mxu0
  %v2131 = vadd.f32 %v1998, %v2130
  %v2132 = vpop.f32.mrb[0].mxu0
  %2133 = vmatprep.mubr.bf16.mxu0 0
  %2134 = vmatmul.mubr.bf16.gmra.mrb[0].mxu0 %v2068
  %v2135 = vpop.f32.mrb[0].mxu0
  %v2136 = vadd.f32 %v2003, %v2135
  %v2137 = vpop.f32.mrb[0].mxu0
  %v2138 = vpop.f32.mrb[0].mxu0
  %v2139 = vadd.f32 %v2006, %v2138
  %v2140 = vpop.f32.mrb[0].mxu0
  %2141 = vmatprep.mubr.bf16.mxu0 0
  %2142 = vmatmul.mubr.bf16.gmra.mrb[0].mxu0 %v2071
  %v2143 = vpop.f32.mrb[0].mxu0
  %v2144 = vadd.f32 %v2011, %v2143
  %v2145 = vpop.f32.mrb[0].mxu0
  %v2146 = vpop.f32.mrb[0].mxu0
  %v2147 = vadd.f32 %v2014, %v2146
  %v2148 = vpop.f32.mrb[0].mxu0
  %2149 = vmatprep.mubr.bf16.mxu0 0
  %2150 = vmatmul.mubr.bf16.gmra.mrb[0].mxu0 %v2074
  %v2151 = vpop.f32.mrb[0].mxu0
  %v2152 = vadd.f32 %v2019, %v2151
  %v2153 = vpop.f32.mrb[0].mxu0
  %v2154 = vpop.f32.mrb[0].mxu0
  %v2155 = vadd.f32 %v2022, %v2154
  %v2156 = vpop.f32.mrb[0].mxu0
  %2157 = vmatprep.mubr.bf16.mxu0 0
  %2158 = vmatmul.mubr.bf16.gmra.mrb[0].mxu0 %v2077
  %v2159 = vpop.f32.mrb[0].mxu0
  %v2160 = vadd.f32 %v2027, %v2159
  %v2161 = vpop.f32.mrb[0].mxu0
  %v2162 = vpop.f32.mrb[0].mxu0
  %v2163 = vadd.f32 %v2030, %v2162
  %v2164 = vpop.f32.mrb[0].mxu0
  %2165 = vmatprep.mubr.bf16.mxu0 0
  %2166 = vmatmul.mubr.bf16.gmra.mrb[0].mxu0 %v2080
  %v2167 = vpop.f32.mrb[0].mxu0
  %v2168 = vadd.f32 %v2035, %v2167
  %v2169 = vpop.f32.mrb[0].mxu0
  %v2170 = vpop.f32.mrb[0].mxu0
  %v2171 = vadd.f32 %v2038, %v2170
  %v2172 = vpop.f32.mrb[0].mxu0
  %2173 = vmatprep.mubr.bf16.mxu0 0
  %2174 = vmatmul.mubr.bf16.gmra.mrb[0].mxu0 %v2083
  %v2175 = vpop.f32.mrb[0].mxu0
  %v2176 = vadd.f32 %v2043, %v2175
  %v2177 = vpop.f32.mrb[0].mxu0
  %v2178 = vpop.f32.mrb[0].mxu0
  %v2179 = vadd.f32 %v2046, %v2178
  %v2180 = vpop.f32.mrb[0].mxu0
  %2181 = vdwg.mxu0
  %v2182 = vld [vmem:[%s8] sm:$0x1]
  %v2184 = vlaneseq
  %v2185 = vshrl.u32 %v2184, 7
  %v2186 = vsub.s32 0, %v2185
  %v2187 = vrot.slane %v2182, %v2186
  %v2189 = vadd.f32 %v2120, %v2187
  %v2190 = vadd.f32 %v2123, %v2187
  %v2191 = vadd.f32 %v2128, %v2187
  %v2192 = vadd.f32 %v2131, %v2187
  %v2193 = vadd.f32 %v2136, %v2187
  %v2194 = vadd.f32 %v2139, %v2187
  %v2195 = vadd.f32 %v2144, %v2187
  %v2196 = vadd.f32 %v2147, %v2187
  %v2197 = vadd.f32 %v2152, %v2187
  %v2198 = vadd.f32 %v2155, %v2187
  %v2199 = vadd.f32 %v2160, %v2187
  %v2200 = vadd.f32 %v2163, %v2187
  %v2201 = vadd.f32 %v2168, %v2187
  %v2202 = vadd.f32 %v2171, %v2187
  %v2203 = vadd.f32 %v2176, %v2187
  %v2204 = vadd.f32 %v2179, %v2187
  %vm2205 = vcmp.gt.f32.partialorder %v2189, 0.0
  %vm2206 = vcmp.gt.f32.partialorder %v2190, 0.0
  %vm2207 = vcmp.gt.f32.partialorder %v2191, 0.0
  %vm2208 = vcmp.gt.f32.partialorder %v2192, 0.0
  %vm2209 = vcmp.gt.f32.partialorder %v2193, 0.0
  %vm2210 = vcmp.gt.f32.partialorder %v2194, 0.0
  %vm2211 = vcmp.gt.f32.partialorder %v2195, 0.0
  %vm2212 = vcmp.gt.f32.partialorder %v2196, 0.0
  %vm2213 = vcmp.gt.f32.partialorder %v2197, 0.0
  %vm2214 = vcmp.gt.f32.partialorder %v2198, 0.0
  %vm2215 = vcmp.gt.f32.partialorder %v2199, 0.0
  %vm2216 = vcmp.gt.f32.partialorder %v2200, 0.0
  %vm2217 = vcmp.gt.f32.partialorder %v2201, 0.0
  %vm2218 = vcmp.gt.f32.partialorder %v2202, 0.0
  %vm2219 = vcmp.gt.f32.partialorder %v2203, 0.0
  %vm2220 = vcmp.gt.f32.partialorder %v2204, 0.0
  %v2221 = vmin.f32 %v2189, 0.0
  %v2222 = vmin.f32 %v2190, 0.0
  %v2223 = vmin.f32 %v2191, 0.0
  %v2224 = vmin.f32 %v2192, 0.0
  %v2225 = vmin.f32 %v2193, 0.0
  %v2226 = vmin.f32 %v2194, 0.0
  %v2227 = vmin.f32 %v2195, 0.0
  %v2228 = vmin.f32 %v2196, 0.0
  %v2229 = vmin.f32 %v2197, 0.0
  %v2230 = vmin.f32 %v2198, 0.0
  %v2231 = vmin.f32 %v2199, 0.0
  %v2232 = vmin.f32 %v2200, 0.0
  %v2233 = vmin.f32 %v2201, 0.0
  %v2234 = vmin.f32 %v2202, 0.0
  %v2235 = vmin.f32 %v2203, 0.0
  %v2236 = vmin.f32 %v2204, 0.0
  %v2237 = vmul.f32 %v2221, 1.442695
  %v2238 = vpow.pop %v2237
  %v2239 = vmul.f32 %v2222, 1.442695
  %v2240 = vpow.pop %v2239
  %v2241 = vmul.f32 %v2223, 1.442695
  %v2242 = vpow.pop %v2241
  %v2243 = vmul.f32 %v2224, 1.442695
  %v2244 = vpow.pop %v2243
  %v2245 = vmul.f32 %v2225, 1.442695
  %v2246 = vpow.pop %v2245
  %v2247 = vmul.f32 %v2226, 1.442695
  %v2248 = vpow.pop %v2247
  %v2249 = vmul.f32 %v2227, 1.442695
  %v2250 = vpow.pop %v2249
  %v2251 = vmul.f32 %v2228, 1.442695
  %v2252 = vpow.pop %v2251
  %v2253 = vmul.f32 %v2229, 1.442695
  %v2254 = vpow.pop %v2253
  %v2255 = vmul.f32 %v2230, 1.442695
  %v2256 = vpow.pop %v2255
  %v2257 = vmul.f32 %v2231, 1.442695
  %v2258 = vpow.pop %v2257
  %v2259 = vmul.f32 %v2232, 1.442695
  %v2260 = vpow.pop %v2259
  %v2261 = vmul.f32 %v2233, 1.442695
  %v2262 = vpow.pop %v2261
  %v2263 = vmul.f32 %v2234, 1.442695
  %v2264 = vpow.pop %v2263
  %v2265 = vmul.f32 %v2235, 1.442695
  %v2266 = vpow.pop %v2265
  %v2267 = vmul.f32 %v2236, 1.442695
  %v2268 = vpow.pop %v2267
  %v2269 = vsub.f32 %v2238, 1.0
  %v2270 = vsub.f32 %v2240, 1.0
  %v2271 = vsub.f32 %v2242, 1.0
  %v2272 = vsub.f32 %v2244, 1.0
  %v2273 = vsub.f32 %v2246, 1.0
  %v2274 = vsub.f32 %v2248, 1.0
  %v2275 = vsub.f32 %v2250, 1.0
  %v2276 = vsub.f32 %v2252, 1.0
  %v2277 = vsub.f32 %v2254, 1.0
  %v2278 = vsub.f32 %v2256, 1.0
  %v2279 = vsub.f32 %v2258, 1.0
  %v2280 = vsub.f32 %v2260, 1.0
  %v2281 = vsub.f32 %v2262, 1.0
  %v2282 = vsub.f32 %v2264, 1.0
  %v2283 = vsub.f32 %v2266, 1.0
  %v2284 = vsub.f32 %v2268, 1.0
  %v2285 = vsel %vm2205, %v2189, %v2269
  %v2286 = vsel %vm2206, %v2190, %v2270
  %v2287 = vsel %vm2207, %v2191, %v2271
  %v2288 = vsel %vm2208, %v2192, %v2272
  %v2289 = vsel %vm2209, %v2193, %v2273
  %v2290 = vsel %vm2210, %v2194, %v2274
  %v2291 = vsel %vm2211, %v2195, %v2275
  %v2292 = vsel %vm2212, %v2196, %v2276
  %v2293 = vsel %vm2213, %v2197, %v2277
  %v2294 = vsel %vm2214, %v2198, %v2278
  %v2295 = vsel %vm2215, %v2199, %v2279
  %v2296 = vsel %vm2216, %v2200, %v2280
  %v2297 = vsel %vm2217, %v2201, %v2281
  %v2298 = vsel %vm2218, %v2202, %v2282
  %v2299 = vsel %vm2219, %v2203, %v2283
  %v2300 = vsel %vm2220, %v2204, %v2284
  %v2301 = vld [vmem:[%s1] sm:$0xf]
  %v2302 = vld [vmem:[%s1 + $0x4] sm:$0xf]
  %v2303 = vld [vmem:[%s1 + $0x8] sm:$0xf]
  %v2304 = vld [vmem:[%s1 + $0xc] sm:$0xf]
  %v2305 = vld [vmem:[%s1 + $0x10] sm:$0xf]
  %v2306 = vld [vmem:[%s1 + $0x14] sm:$0xf]
  %v2307 = vld [vmem:[%s1 + $0x18] sm:$0xf]
  %v2308 = vld [vmem:[%s1 + $0x1c] sm:$0xf]
  %v2309 = vld [vmem:[%s1 + $0x20] sm:$0xf]
  %v2310 = vld [vmem:[%s1 + $0x24] sm:$0xf]
  %v2311 = vld [vmem:[%s1 + $0x28] sm:$0xf]
  %v2312 = vld [vmem:[%s1 + $0x2c] sm:$0xf]
  %v2313 = vld [vmem:[%s1 + $0x30] sm:$0xf]
  %v2314 = vld [vmem:[%s1 + $0x34] sm:$0xf]
  %v2315 = vld [vmem:[%s1 + $0x38] sm:$0xf]
  %v2316 = vld [vmem:[%s1 + $0x3c] sm:$0xf]
  %v2333 = vunpack.c.l.b16 %v2301
  %v2334 = vunpack.c.l.b16 %v2302
  %v2335 = vunpack.c.l.b16 %v2303
  %v2336 = vunpack.c.l.b16 %v2304
  %v2337 = vunpack.c.l.b16 %v2305
  %v2338 = vunpack.c.l.b16 %v2306
  %v2339 = vunpack.c.l.b16 %v2307
  %v2340 = vunpack.c.l.b16 %v2308
  %v2341 = vunpack.c.l.b16 %v2309
  %v2342 = vunpack.c.l.b16 %v2310
  %v2343 = vunpack.c.l.b16 %v2311
  %v2344 = vunpack.c.l.b16 %v2312
  %v2345 = vunpack.c.l.b16 %v2313
  %v2346 = vunpack.c.l.b16 %v2314
  %v2347 = vunpack.c.l.b16 %v2315
  %v2348 = vunpack.c.l.b16 %v2316
  %v2349 = vpack.c.b16 %v2334, %v2333
  %v2350 = vpack.c.b16 %v2336, %v2335
  %v2351 = vpack.c.b16 %v2338, %v2337
  %v2352 = vpack.c.b16 %v2340, %v2339
  %v2353 = vpack.c.b16 %v2342, %v2341
  %v2354 = vpack.c.b16 %v2344, %v2343
  %v2355 = vpack.c.b16 %v2346, %v2345
  %v2356 = vpack.c.b16 %v2348, %v2347
  %2365 = vmatprep.subr.bf16.mxu0 0
  %2366 = vmatpush1.bf16.msra.mxu0 %v2349
  %2367 = vmatprep.subr.bf16.mxu0 0
  %2368 = vmatpush1.bf16.msra.mxu0 %v2350
  %2369 = vmatprep.subr.bf16.mxu0 0
  %2370 = vmatpush1.bf16.msra.mxu0 %v2351
  %2371 = vmatprep.subr.bf16.mxu0 0
  %2372 = vmatpush1.bf16.msra.mxu0 %v2352
  %2373 = vmatprep.subr.bf16.mxu0 0
  %2374 = vmatpush1.bf16.msra.mxu0 %v2353
  %2375 = vmatprep.subr.bf16.mxu0 0
  %2376 = vmatpush1.bf16.msra.mxu0 %v2354
  %2377 = vmatprep.subr.bf16.mxu0 0
  %2378 = vmatpush1.bf16.msra.mxu0 %v2355
  %2379 = vmatprep.subr.bf16.mxu0 0
  %2380 = vmatpush1.bf16.msra.mxu0 %v2356
  %2381 = vmatprep.subr.bf16.mxu0 0
  %2382 = vmatpush1.bf16.msra.mxu0 0
  %2383 = vmatprep.subr.bf16.mxu0 0
  %2384 = vmatpush1.bf16.msra.mxu0 0
  %2385 = vmatprep.subr.bf16.mxu0 0
  %2386 = vmatpush1.bf16.msra.mxu0 0
  %2387 = vmatprep.subr.bf16.mxu0 0
  %2388 = vmatpush1.bf16.msra.mxu0 0
  %2389 = vmatprep.subr.bf16.mxu0 0
  %2390 = vmatpush1.bf16.msra.mxu0 0
  %2391 = vmatprep.subr.bf16.mxu0 0
  %2392 = vmatpush1.bf16.msra.mxu0 0
  %2393 = vmatprep.subr.bf16.mxu0 0
  %2394 = vmatpush1.bf16.msra.mxu0 0
  %2395 = vmatprep.subr.bf16.mxu0 0
  %2396 = vmatpush1.bf16.msra.mxu0 0
  %2397 = vmatprep.mubr.bf16.mxu0 0
  %2398 = vmatmul.mubr.bf16.gmra.mrb[0].mxu0 %v2349
  %v2399 = vpop.f32.mrb[0].mxu0
  %v2400 = vadd.f32 0.0, %v2399
  %v2401 = vpop.f32.mrb[0].mxu0
  %v2402 = vpop.f32.mrb[0].mxu0
  %v2403 = vadd.f32 0.0, %v2402
  %v2404 = vpop.f32.mrb[0].mxu0
  %2405 = vmatprep.mubr.bf16.mxu0 0
  %2406 = vmatmul.mubr.bf16.gmra.mrb[0].mxu0 %v2350
  %v2407 = vpop.f32.mrb[0].mxu0
  %v2408 = vadd.f32 0.0, %v2407
  %v2409 = vpop.f32.mrb[0].mxu0
  %v2410 = vpop.f32.mrb[0].mxu0
  %v2411 = vadd.f32 0.0, %v2410
  %v2412 = vpop.f32.mrb[0].mxu0
  %2413 = vmatprep.mubr.bf16.mxu0 0
  %2414 = vmatmul.mubr.bf16.gmra.mrb[0].mxu0 %v2351
  %v2415 = vpop.f32.mrb[0].mxu0
  %v2416 = vadd.f32 0.0, %v2415
  %v2417 = vpop.f32.mrb[0].mxu0
  %v2418 = vpop.f32.mrb[0].mxu0
  %v2419 = vadd.f32 0.0, %v2418
  %v2420 = vpop.f32.mrb[0].mxu0
  %2421 = vmatprep.mubr.bf16.mxu0 0
  %2422 = vmatmul.mubr.bf16.gmra.mrb[0].mxu0 %v2352
  %v2423 = vpop.f32.mrb[0].mxu0
  %v2424 = vadd.f32 0.0, %v2423
  %v2425 = vpop.f32.mrb[0].mxu0
  %v2426 = vpop.f32.mrb[0].mxu0
  %v2427 = vadd.f32 0.0, %v2426
  %v2428 = vpop.f32.mrb[0].mxu0
  %2429 = vmatprep.mubr.bf16.mxu0 0
  %2430 = vmatmul.mubr.bf16.gmra.mrb[0].mxu0 %v2353
  %v2431 = vpop.f32.mrb[0].mxu0
  %v2432 = vadd.f32 0.0, %v2431
  %v2433 = vpop.f32.mrb[0].mxu0
  %v2434 = vpop.f32.mrb[0].mxu0
  %v2435 = vadd.f32 0.0, %v2434
  %v2436 = vpop.f32.mrb[0].mxu0
  %2437 = vmatprep.mubr.bf16.mxu0 0
  %2438 = vmatmul.mubr.bf16.gmra.mrb[0].mxu0 %v2354
  %v2439 = vpop.f32.mrb[0].mxu0
  %v2440 = vadd.f32 0.0, %v2439
  %v2441 = vpop.f32.mrb[0].mxu0
  %v2442 = vpop.f32.mrb[0].mxu0
  %v2443 = vadd.f32 0.0, %v2442
  %v2444 = vpop.f32.mrb[0].mxu0
  %2445 = vmatprep.mubr.bf16.mxu0 0
  %2446 = vmatmul.mubr.bf16.gmra.mrb[0].mxu0 %v2355
  %v2447 = vpop.f32.mrb[0].mxu0
  %v2448 = vadd.f32 0.0, %v2447
  %v2449 = vpop.f32.mrb[0].mxu0
  %v2450 = vpop.f32.mrb[0].mxu0
  %v2451 = vadd.f32 0.0, %v2450
  %v2452 = vpop.f32.mrb[0].mxu0
  %2453 = vmatprep.mubr.bf16.mxu0 0
  %2454 = vmatmul.mubr.bf16.gmra.mrb[0].mxu0 %v2356
  %v2455 = vpop.f32.mrb[0].mxu0
  %v2456 = vadd.f32 0.0, %v2455
  %v2457 = vpop.f32.mrb[0].mxu0
  %v2458 = vpop.f32.mrb[0].mxu0
  %v2459 = vadd.f32 0.0, %v2458
  %v2460 = vpop.f32.mrb[0].mxu0
  %2461 = vdwg.mxu0
  %v2462 = vpack.c.bf16 %v2403, %v2400
  %v2463 = vpack.c.bf16 %v2411, %v2408
  %v2464 = vpack.c.bf16 %v2419, %v2416
  %v2465 = vpack.c.bf16 %v2427, %v2424
  %v2466 = vpack.c.bf16 %v2435, %v2432
  %v2467 = vpack.c.bf16 %v2443, %v2440
  %v2468 = vpack.c.bf16 %v2451, %v2448
  %v2469 = vpack.c.bf16 %v2459, %v2456
  %v2470 = vpack.c.bf16 %v2286, %v2285
  %v2471 = vpack.c.bf16 %v2288, %v2287
  %v2472 = vpack.c.bf16 %v2290, %v2289
  %v2473 = vpack.c.bf16 %v2292, %v2291
  %v2474 = vpack.c.bf16 %v2294, %v2293
  %v2475 = vpack.c.bf16 %v2296, %v2295
  %v2476 = vpack.c.bf16 %v2298, %v2297
  %v2477 = vpack.c.bf16 %v2300, %v2299
  %2478 = vmatprep.subr.bf16.mxu0 0
  %2479 = vmatpush1.bf16.msra.mxu0 %v2470
  %2480 = vmatprep.subr.bf16.mxu0 0
  %2481 = vmatpush1.bf16.msra.mxu0 %v2471
  %2482 = vmatprep.subr.bf16.mxu0 0
  %2483 = vmatpush1.bf16.msra.mxu0 %v2472
  %2484 = vmatprep.subr.bf16.mxu0 0
  %2485 = vmatpush1.bf16.msra.mxu0 %v2473
  %2486 = vmatprep.subr.bf16.mxu0 0
  %2487 = vmatpush1.bf16.msra.mxu0 %v2474
  %2488 = vmatprep.subr.bf16.mxu0 0
  %2489 = vmatpush1.bf16.msra.mxu0 %v2475
  %2490 = vmatprep.subr.bf16.mxu0 0
  %2491 = vmatpush1.bf16.msra.mxu0 %v2476
  %2492 = vmatprep.subr.bf16.mxu0 0
  %2493 = vmatpush1.bf16.msra.mxu0 %v2477
  %2494 = vmatprep.subr.bf16.mxu0 0
  %2495 = vmatpush1.bf16.msra.mxu0 0
  %2496 = vmatprep.subr.bf16.mxu0 0
  %2497 = vmatpush1.bf16.msra.mxu0 0
  %2498 = vmatprep.subr.bf16.mxu0 0
  %2499 = vmatpush1.bf16.msra.mxu0 0
  %2500 = vmatprep.subr.bf16.mxu0 0
  %2501 = vmatpush1.bf16.msra.mxu0 0
  %2502 = vmatprep.subr.bf16.mxu0 0
  %2503 = vmatpush1.bf16.msra.mxu0 0
  %2504 = vmatprep.subr.bf16.mxu0 0
  %2505 = vmatpush1.bf16.msra.mxu0 0
  %2506 = vmatprep.subr.bf16.mxu0 0
  %2507 = vmatpush1.bf16.msra.mxu0 0
  %2508 = vmatprep.subr.bf16.mxu0 0
  %2509 = vmatpush1.bf16.msra.mxu0 0
  %2510 = vmatprep.mubr.bf16.mxu0 0
  %2511 = vmatmul.mubr.bf16.gmra.mrb[0].mxu0 %v2349
  %v2512 = vpop.f32.mrb[0].mxu0
  %v2513 = vadd.f32 0.0, %v2512
  %v2514 = vpop.f32.mrb[0].mxu0
  %v2515 = vpop.f32.mrb[0].mxu0
  %v2516 = vadd.f32 0.0, %v2515
  %v2517 = vpop.f32.mrb[0].mxu0
  %2518 = vmatprep.mubr.bf16.mxu0 0
  %2519 = vmatmul.mubr.bf16.gmra.mrb[0].mxu0 %v2350
  %v2520 = vpop.f32.mrb[0].mxu0
  %v2521 = vadd.f32 0.0, %v2520
  %v2522 = vpop.f32.mrb[0].mxu0
  %v2523 = vpop.f32.mrb[0].mxu0
  %v2524 = vadd.f32 0.0, %v2523
  %v2525 = vpop.f32.mrb[0].mxu0
  %2526 = vmatprep.mubr.bf16.mxu0 0
  %2527 = vmatmul.mubr.bf16.gmra.mrb[0].mxu0 %v2351
  %v2528 = vpop.f32.mrb[0].mxu0
  %v2529 = vadd.f32 0.0, %v2528
  %v2530 = vpop.f32.mrb[0].mxu0
  %v2531 = vpop.f32.mrb[0].mxu0
  %v2532 = vadd.f32 0.0, %v2531
  %v2533 = vpop.f32.mrb[0].mxu0
  %2534 = vmatprep.mubr.bf16.mxu0 0
  %2535 = vmatmul.mubr.bf16.gmra.mrb[0].mxu0 %v2352
  %v2536 = vpop.f32.mrb[0].mxu0
  %v2537 = vadd.f32 0.0, %v2536
  %v2538 = vpop.f32.mrb[0].mxu0
  %v2539 = vpop.f32.mrb[0].mxu0
  %v2540 = vadd.f32 0.0, %v2539
  %v2541 = vpop.f32.mrb[0].mxu0
  %2542 = vmatprep.mubr.bf16.mxu0 0
  %2543 = vmatmul.mubr.bf16.gmra.mrb[0].mxu0 %v2353
  %v2544 = vpop.f32.mrb[0].mxu0
  %v2545 = vadd.f32 0.0, %v2544
  %v2546 = vpop.f32.mrb[0].mxu0
  %v2547 = vpop.f32.mrb[0].mxu0
  %v2548 = vadd.f32 0.0, %v2547
  %v2549 = vpop.f32.mrb[0].mxu0
  %2550 = vmatprep.mubr.bf16.mxu0 0
  %2551 = vmatmul.mubr.bf16.gmra.mrb[0].mxu0 %v2354
  %v2552 = vpop.f32.mrb[0].mxu0
  %v2553 = vadd.f32 0.0, %v2552
  %v2554 = vpop.f32.mrb[0].mxu0
  %v2555 = vpop.f32.mrb[0].mxu0
  %v2556 = vadd.f32 0.0, %v2555
  %v2557 = vpop.f32.mrb[0].mxu0
  %2558 = vmatprep.mubr.bf16.mxu0 0
  %2559 = vmatmul.mubr.bf16.gmra.mrb[0].mxu0 %v2355
  %v2560 = vpop.f32.mrb[0].mxu0
  %v2561 = vadd.f32 0.0, %v2560
  %v2562 = vpop.f32.mrb[0].mxu0
  %v2563 = vpop.f32.mrb[0].mxu0
  %v2564 = vadd.f32 0.0, %v2563
  %v2565 = vpop.f32.mrb[0].mxu0
  %2566 = vmatprep.mubr.bf16.mxu0 0
  %2567 = vmatmul.mubr.bf16.gmra.mrb[0].mxu0 %v2356
  %v2568 = vpop.f32.mrb[0].mxu0
  %v2569 = vadd.f32 0.0, %v2568
  %v2570 = vpop.f32.mrb[0].mxu0
  %v2571 = vpop.f32.mrb[0].mxu0
  %v2572 = vadd.f32 0.0, %v2571
  %v2573 = vpop.f32.mrb[0].mxu0
  %2574 = vdwg.mxu0
  %v2575 = vmul.f32 %v2513, 0.09
  %v2576 = vmul.f32 %v2516, 0.09
  %v2577 = vmul.f32 %v2521, 0.09
  %v2578 = vmul.f32 %v2524, 0.09
  %v2579 = vmul.f32 %v2529, 0.09
  %v2580 = vmul.f32 %v2532, 0.09
  %v2581 = vmul.f32 %v2537, 0.09
  %v2582 = vmul.f32 %v2540, 0.09
  %v2583 = vmul.f32 %v2545, 0.09
  %v2584 = vmul.f32 %v2548, 0.09
  %v2585 = vmul.f32 %v2553, 0.09
  %v2586 = vmul.f32 %v2556, 0.09
  %v2587 = vmul.f32 %v2561, 0.09
  %v2588 = vmul.f32 %v2564, 0.09
  %v2589 = vmul.f32 %v2569, 0.09
  %v2590 = vmul.f32 %v2572, 0.09
  %v2591 = vmul.f32 %v2285, 0.1
  %v2592 = vmul.f32 %v2286, 0.1
  %v2593 = vmul.f32 %v2287, 0.1
  %v2594 = vmul.f32 %v2288, 0.1
  %v2595 = vmul.f32 %v2289, 0.1
  %v2596 = vmul.f32 %v2290, 0.1
  %v2597 = vmul.f32 %v2291, 0.1
  %v2598 = vmul.f32 %v2292, 0.1
  %v2599 = vmul.f32 %v2293, 0.1
  %v2600 = vmul.f32 %v2294, 0.1
  %v2601 = vmul.f32 %v2295, 0.1
  %v2602 = vmul.f32 %v2296, 0.1
  %v2603 = vmul.f32 %v2297, 0.1
  %v2604 = vmul.f32 %v2298, 0.1
  %v2605 = vmul.f32 %v2299, 0.1
  %v2606 = vmul.f32 %v2300, 0.1
  %v2607 = vadd.f32 %v2575, %v2591
  %v2608 = vadd.f32 %v2576, %v2592
  %v2609 = vadd.f32 %v2577, %v2593
  %v2610 = vadd.f32 %v2578, %v2594
  %v2611 = vadd.f32 %v2579, %v2595
  %v2612 = vadd.f32 %v2580, %v2596
  %v2613 = vadd.f32 %v2581, %v2597
  %v2614 = vadd.f32 %v2582, %v2598
  %v2615 = vadd.f32 %v2583, %v2599
  %v2616 = vadd.f32 %v2584, %v2600
  %v2617 = vadd.f32 %v2585, %v2601
  %v2618 = vadd.f32 %v2586, %v2602
  %v2619 = vadd.f32 %v2587, %v2603
  %v2620 = vadd.f32 %v2588, %v2604
  %v2621 = vadd.f32 %v2589, %v2605
  %v2622 = vadd.f32 %v2590, %v2606
  %2623 = vmatprep.subr.bf16.mxu0 0
  %2624 = vmatpush1.bf16.msra.mxu0 %v2470
  %2625 = vmatprep.subr.bf16.mxu0 0
  %2626 = vmatpush1.bf16.msra.mxu0 %v2471
  %2627 = vmatprep.subr.bf16.mxu0 0
  %2628 = vmatpush1.bf16.msra.mxu0 %v2472
  %2629 = vmatprep.subr.bf16.mxu0 0
  %2630 = vmatpush1.bf16.msra.mxu0 %v2473
  %2631 = vmatprep.subr.bf16.mxu0 0
  %2632 = vmatpush1.bf16.msra.mxu0 %v2474
  %2633 = vmatprep.subr.bf16.mxu0 0
  %2634 = vmatpush1.bf16.msra.mxu0 %v2475
  %2635 = vmatprep.subr.bf16.mxu0 0
  %2636 = vmatpush1.bf16.msra.mxu0 %v2476
  %2637 = vmatprep.subr.bf16.mxu0 0
  %2638 = vmatpush1.bf16.msra.mxu0 %v2477
  %2639 = vmatprep.subr.bf16.mxu0 0
  %2640 = vmatpush1.bf16.msra.mxu0 0
  %2641 = vmatprep.subr.bf16.mxu0 0
  %2642 = vmatpush1.bf16.msra.mxu0 0
  %2643 = vmatprep.subr.bf16.mxu0 0
  %2644 = vmatpush1.bf16.msra.mxu0 0
  %2645 = vmatprep.subr.bf16.mxu0 0
  %2646 = vmatpush1.bf16.msra.mxu0 0
  %2647 = vmatprep.subr.bf16.mxu0 0
  %2648 = vmatpush1.bf16.msra.mxu0 0
  %2649 = vmatprep.subr.bf16.mxu0 0
  %2650 = vmatpush1.bf16.msra.mxu0 0
  %2651 = vmatprep.subr.bf16.mxu0 0
  %2652 = vmatpush1.bf16.msra.mxu0 0
  %2653 = vmatprep.subr.bf16.mxu0 0
  %2654 = vmatpush1.bf16.msra.mxu0 0
  %2655 = vmatprep.mubr.bf16.mxu0 0
  %2656 = vmatmul.mubr.bf16.gmra.mrb[0].mxu0 %v2462
  %v2657 = vpop.f32.mrb[0].mxu0
  %v2658 = vadd.f32 0.0, %v2657
  %v2659 = vpop.f32.mrb[0].mxu0
  %v2660 = vpop.f32.mrb[0].mxu0
  %v2661 = vadd.f32 0.0, %v2660
  %v2662 = vpop.f32.mrb[0].mxu0
  %2663 = vmatprep.mubr.bf16.mxu0 0
  %2664 = vmatmul.mubr.bf16.gmra.mrb[0].mxu0 %v2463
  %v2665 = vpop.f32.mrb[0].mxu0
  %v2666 = vadd.f32 0.0, %v2665
  %v2667 = vpop.f32.mrb[0].mxu0
  %v2668 = vpop.f32.mrb[0].mxu0
  %v2669 = vadd.f32 0.0, %v2668
  %v2670 = vpop.f32.mrb[0].mxu0
  %2671 = vmatprep.mubr.bf16.mxu0 0
  %2672 = vmatmul.mubr.bf16.gmra.mrb[0].mxu0 %v2464
  %v2673 = vpop.f32.mrb[0].mxu0
  %v2674 = vadd.f32 0.0, %v2673
  %v2675 = vpop.f32.mrb[0].mxu0
  %v2676 = vpop.f32.mrb[0].mxu0
  %v2677 = vadd.f32 0.0, %v2676
  %v2678 = vpop.f32.mrb[0].mxu0
  %2679 = vmatprep.mubr.bf16.mxu0 0
  %2680 = vmatmul.mubr.bf16.gmra.mrb[0].mxu0 %v2465
  %v2681 = vpop.f32.mrb[0].mxu0
  %v2682 = vadd.f32 0.0, %v2681
  %v2683 = vpop.f32.mrb[0].mxu0
  %v2684 = vpop.f32.mrb[0].mxu0
  %v2685 = vadd.f32 0.0, %v2684
  %v2686 = vpop.f32.mrb[0].mxu0
  %2687 = vmatprep.mubr.bf16.mxu0 0
  %2688 = vmatmul.mubr.bf16.gmra.mrb[0].mxu0 %v2466
  %v2689 = vpop.f32.mrb[0].mxu0
  %v2690 = vadd.f32 0.0, %v2689
  %v2691 = vpop.f32.mrb[0].mxu0
  %v2692 = vpop.f32.mrb[0].mxu0
  %v2693 = vadd.f32 0.0, %v2692
  %v2694 = vpop.f32.mrb[0].mxu0
  %2695 = vmatprep.mubr.bf16.mxu0 0
  %2696 = vmatmul.mubr.bf16.gmra.mrb[0].mxu0 %v2467
  %v2697 = vpop.f32.mrb[0].mxu0
  %v2698 = vadd.f32 0.0, %v2697
  %v2699 = vpop.f32.mrb[0].mxu0
  %v2700 = vpop.f32.mrb[0].mxu0
  %v2701 = vadd.f32 0.0, %v2700
  %v2702 = vpop.f32.mrb[0].mxu0
  %2703 = vmatprep.mubr.bf16.mxu0 0
  %2704 = vmatmul.mubr.bf16.gmra.mrb[0].mxu0 %v2468
  %v2705 = vpop.f32.mrb[0].mxu0
  %v2706 = vadd.f32 0.0, %v2705
  %v2707 = vpop.f32.mrb[0].mxu0
  %v2708 = vpop.f32.mrb[0].mxu0
  %v2709 = vadd.f32 0.0, %v2708
  %v2710 = vpop.f32.mrb[0].mxu0
  %2711 = vmatprep.mubr.bf16.mxu0 0
  %2712 = vmatmul.mubr.bf16.gmra.mrb[0].mxu0 %v2469
  %v2713 = vpop.f32.mrb[0].mxu0
  %v2714 = vadd.f32 0.0, %v2713
  %v2715 = vpop.f32.mrb[0].mxu0
  %v2716 = vpop.f32.mrb[0].mxu0
  %v2717 = vadd.f32 0.0, %v2716
  %v2718 = vpop.f32.mrb[0].mxu0
  %2719 = vdwg.mxu0
  %v2720 = vmul.f32 %v2658, 0.81
  %v2721 = vmul.f32 %v2661, 0.81
  %v2722 = vmul.f32 %v2666, 0.81
  %v2723 = vmul.f32 %v2669, 0.81
  %v2724 = vmul.f32 %v2674, 0.81
  %v2725 = vmul.f32 %v2677, 0.81
  %v2726 = vmul.f32 %v2682, 0.81
  %v2727 = vmul.f32 %v2685, 0.81
  %v2728 = vmul.f32 %v2690, 0.81
  %v2729 = vmul.f32 %v2693, 0.81
  %v2730 = vmul.f32 %v2698, 0.81
  %v2731 = vmul.f32 %v2701, 0.81
  %v2732 = vmul.f32 %v2706, 0.81
  %v2733 = vmul.f32 %v2709, 0.81
  %v2734 = vmul.f32 %v2714, 0.81
  %v2735 = vmul.f32 %v2717, 0.81
  %v2736 = vadd.f32 %v2720, %v2607
  %v2737 = vadd.f32 %v2721, %v2608
  %v2738 = vadd.f32 %v2722, %v2609
  %v2739 = vadd.f32 %v2723, %v2610
  %v2740 = vadd.f32 %v2724, %v2611
  %v2741 = vadd.f32 %v2725, %v2612
  %v2742 = vadd.f32 %v2726, %v2613
  %v2743 = vadd.f32 %v2727, %v2614
  %v2744 = vadd.f32 %v2728, %v2615
  %v2745 = vadd.f32 %v2729, %v2616
  %v2746 = vadd.f32 %v2730, %v2617
  %v2747 = vadd.f32 %v2731, %v2618
  %v2748 = vadd.f32 %v2732, %v2619
  %v2749 = vadd.f32 %v2733, %v2620
  %v2750 = vadd.f32 %v2734, %v2621
  %v2751 = vadd.f32 %v2735, %v2622
  %v2752 = vpack.c.bf16 %v2737, %v2736
  %v2753 = vpack.c.bf16 %v2739, %v2738
  %v2754 = vpack.c.bf16 %v2741, %v2740
  %v2755 = vpack.c.bf16 %v2743, %v2742
  %v2756 = vpack.c.bf16 %v2745, %v2744
  %v2757 = vpack.c.bf16 %v2747, %v2746
  %v2758 = vpack.c.bf16 %v2749, %v2748
  %v2759 = vpack.c.bf16 %v2751, %v2750
  %2760 = vmatprep.subr.bf16.mxu0 0
  %2761 = vmatpush1.bf16.msra.mxu0 %v2752
  %2762 = vmatprep.subr.bf16.mxu0 0
  %2763 = vmatpush1.bf16.msra.mxu0 %v2753
  %2764 = vmatprep.subr.bf16.mxu0 0
  %2765 = vmatpush1.bf16.msra.mxu0 %v2754
  %2766 = vmatprep.subr.bf16.mxu0 0
  %2767 = vmatpush1.bf16.msra.mxu0 %v2755
  %2768 = vmatprep.subr.bf16.mxu0 0
  %2769 = vmatpush1.bf16.msra.mxu0 %v2756
  %2770 = vmatprep.subr.bf16.mxu0 0
  %2771 = vmatpush1.bf16.msra.mxu0 %v2757
  %2772 = vmatprep.subr.bf16.mxu0 0
  %2773 = vmatpush1.bf16.msra.mxu0 %v2758
  %2774 = vmatprep.subr.bf16.mxu0 0
  %2775 = vmatpush1.bf16.msra.mxu0 %v2759
  %2776 = vmatprep.subr.bf16.mxu0 0
  %2777 = vmatpush1.bf16.msra.mxu0 0
  %2778 = vmatprep.subr.bf16.mxu0 0
  %2779 = vmatpush1.bf16.msra.mxu0 0
  %2780 = vmatprep.subr.bf16.mxu0 0
  %2781 = vmatpush1.bf16.msra.mxu0 0
  %2782 = vmatprep.subr.bf16.mxu0 0
  %2783 = vmatpush1.bf16.msra.mxu0 0
  %2784 = vmatprep.subr.bf16.mxu0 0
  %2785 = vmatpush1.bf16.msra.mxu0 0
  %2786 = vmatprep.subr.bf16.mxu0 0
  %2787 = vmatpush1.bf16.msra.mxu0 0
  %2788 = vmatprep.subr.bf16.mxu0 0
  %2789 = vmatpush1.bf16.msra.mxu0 0
  %2790 = vmatprep.subr.bf16.mxu0 0
  %2791 = vmatpush1.bf16.msra.mxu0 0
  %2792 = vmatprep.mubr.bf16.mxu0 0
  %2793 = vmatmul.mubr.bf16.gmra.mrb[0].mxu0 %v2462
  %v2794 = vpop.f32.mrb[0].mxu0
  %v2795 = vadd.f32 0.0, %v2794
  %v2796 = vpop.f32.mrb[0].mxu0
  %v2797 = vpop.f32.mrb[0].mxu0
  %v2798 = vadd.f32 0.0, %v2797
  %v2799 = vpop.f32.mrb[0].mxu0
  %2800 = vmatprep.mubr.bf16.mxu0 0
  %2801 = vmatmul.mubr.bf16.gmra.mrb[0].mxu0 %v2463
  %v2802 = vpop.f32.mrb[0].mxu0
  %v2803 = vadd.f32 0.0, %v2802
  %v2804 = vpop.f32.mrb[0].mxu0
  %v2805 = vpop.f32.mrb[0].mxu0
  %v2806 = vadd.f32 0.0, %v2805
  %v2807 = vpop.f32.mrb[0].mxu0
  %2808 = vmatprep.mubr.bf16.mxu0 0
  %2809 = vmatmul.mubr.bf16.gmra.mrb[0].mxu0 %v2464
  %v2810 = vpop.f32.mrb[0].mxu0
  %v2811 = vadd.f32 0.0, %v2810
  %v2812 = vpop.f32.mrb[0].mxu0
  %v2813 = vpop.f32.mrb[0].mxu0
  %v2814 = vadd.f32 0.0, %v2813
  %v2815 = vpop.f32.mrb[0].mxu0
  %2816 = vmatprep.mubr.bf16.mxu0 0
  %2817 = vmatmul.mubr.bf16.gmra.mrb[0].mxu0 %v2465
  %v2818 = vpop.f32.mrb[0].mxu0
  %v2819 = vadd.f32 0.0, %v2818
  %v2820 = vpop.f32.mrb[0].mxu0
  %v2821 = vpop.f32.mrb[0].mxu0
  %v2822 = vadd.f32 0.0, %v2821
  %v2823 = vpop.f32.mrb[0].mxu0
  %2824 = vmatprep.mubr.bf16.mxu0 0
  %2825 = vmatmul.mubr.bf16.gmra.mrb[0].mxu0 %v2466
  %v2826 = vpop.f32.mrb[0].mxu0
  %v2827 = vadd.f32 0.0, %v2826
  %v2828 = vpop.f32.mrb[0].mxu0
  %v2829 = vpop.f32.mrb[0].mxu0
  %v2830 = vadd.f32 0.0, %v2829
  %v2831 = vpop.f32.mrb[0].mxu0
  %2832 = vmatprep.mubr.bf16.mxu0 0
  %2833 = vmatmul.mubr.bf16.gmra.mrb[0].mxu0 %v2467
  %v2834 = vpop.f32.mrb[0].mxu0
  %v2835 = vadd.f32 0.0, %v2834
  %v2836 = vpop.f32.mrb[0].mxu0
  %v2837 = vpop.f32.mrb[0].mxu0
  %v2838 = vadd.f32 0.0, %v2837
  %v2839 = vpop.f32.mrb[0].mxu0
  %2840 = vmatprep.mubr.bf16.mxu0 0
  %2841 = vmatmul.mubr.bf16.gmra.mrb[0].mxu0 %v2468
  %v2842 = vpop.f32.mrb[0].mxu0
  %v2843 = vadd.f32 0.0, %v2842
  %v2844 = vpop.f32.mrb[0].mxu0
  %v2845 = vpop.f32.mrb[0].mxu0
  %v2846 = vadd.f32 0.0, %v2845
  %v2847 = vpop.f32.mrb[0].mxu0
  %2848 = vmatprep.mubr.bf16.mxu0 0
  %2849 = vmatmul.mubr.bf16.gmra.mrb[0].mxu0 %v2469
  %v2850 = vpop.f32.mrb[0].mxu0
  %v2851 = vadd.f32 0.0, %v2850
  %v2852 = vpop.f32.mrb[0].mxu0
  %v2853 = vpop.f32.mrb[0].mxu0
  %v2854 = vadd.f32 0.0, %v2853
  %v2855 = vpop.f32.mrb[0].mxu0
  %2856 = vdwg.mxu0
  %v2857 = vmul.f32 %v2795, 0.81
  %v2858 = vmul.f32 %v2798, 0.81
  %v2859 = vmul.f32 %v2803, 0.81
  %v2860 = vmul.f32 %v2806, 0.81
  %v2861 = vmul.f32 %v2811, 0.81
  %v2862 = vmul.f32 %v2814, 0.81
  %v2863 = vmul.f32 %v2819, 0.81
  %v2864 = vmul.f32 %v2822, 0.81
  %v2865 = vmul.f32 %v2827, 0.81
  %v2866 = vmul.f32 %v2830, 0.81
  %v2867 = vmul.f32 %v2835, 0.81
  %v2868 = vmul.f32 %v2838, 0.81
  %v2869 = vmul.f32 %v2843, 0.81
  %v2870 = vmul.f32 %v2846, 0.81
  %v2871 = vmul.f32 %v2851, 0.81
  %v2872 = vmul.f32 %v2854, 0.81
  %v2873 = vadd.f32 %v2857, %v2607
  %v2874 = vadd.f32 %v2858, %v2608
  %v2875 = vadd.f32 %v2859, %v2609
  %v2876 = vadd.f32 %v2860, %v2610
  %v2877 = vadd.f32 %v2861, %v2611
  %v2878 = vadd.f32 %v2862, %v2612
  %v2879 = vadd.f32 %v2863, %v2613
  %v2880 = vadd.f32 %v2864, %v2614
  %v2881 = vadd.f32 %v2865, %v2615
  %v2882 = vadd.f32 %v2866, %v2616
  %v2883 = vadd.f32 %v2867, %v2617
  %v2884 = vadd.f32 %v2868, %v2618
  %v2885 = vadd.f32 %v2869, %v2619
  %v2886 = vadd.f32 %v2870, %v2620
  %v2887 = vadd.f32 %v2871, %v2621
  %v2888 = vadd.f32 %v2872, %v2622
  %v2889 = vpack.c.bf16 %v2874, %v2873
  %v2890 = vpack.c.bf16 %v2876, %v2875
  %v2891 = vpack.c.bf16 %v2878, %v2877
  %v2892 = vpack.c.bf16 %v2880, %v2879
  %v2893 = vpack.c.bf16 %v2882, %v2881
  %v2894 = vpack.c.bf16 %v2884, %v2883
  %v2895 = vpack.c.bf16 %v2886, %v2885
  %v2896 = vpack.c.bf16 %v2888, %v2887
  %2897 = vmatprep.subr.bf16.mxu0 0
  %2898 = vmatpush1.bf16.msra.mxu0 %v2889
  %2899 = vmatprep.subr.bf16.mxu0 0
  %2900 = vmatpush1.bf16.msra.mxu0 %v2890
  %2901 = vmatprep.subr.bf16.mxu0 0
  %2902 = vmatpush1.bf16.msra.mxu0 %v2891
  %2903 = vmatprep.subr.bf16.mxu0 0
  %2904 = vmatpush1.bf16.msra.mxu0 %v2892
  %2905 = vmatprep.subr.bf16.mxu0 0
  %2906 = vmatpush1.bf16.msra.mxu0 %v2893
  %2907 = vmatprep.subr.bf16.mxu0 0
  %2908 = vmatpush1.bf16.msra.mxu0 %v2894
  %2909 = vmatprep.subr.bf16.mxu0 0
  %2910 = vmatpush1.bf16.msra.mxu0 %v2895
  %2911 = vmatprep.subr.bf16.mxu0 0
  %2912 = vmatpush1.bf16.msra.mxu0 %v2896
  %2913 = vmatprep.subr.bf16.mxu0 0
  %2914 = vmatpush1.bf16.msra.mxu0 0
  %2915 = vmatprep.subr.bf16.mxu0 0
  %2916 = vmatpush1.bf16.msra.mxu0 0
  %2917 = vmatprep.subr.bf16.mxu0 0
  %2918 = vmatpush1.bf16.msra.mxu0 0
  %2919 = vmatprep.subr.bf16.mxu0 0
  %2920 = vmatpush1.bf16.msra.mxu0 0
  %2921 = vmatprep.subr.bf16.mxu0 0
  %2922 = vmatpush1.bf16.msra.mxu0 0
  %2923 = vmatprep.subr.bf16.mxu0 0
  %2924 = vmatpush1.bf16.msra.mxu0 0
  %2925 = vmatprep.subr.bf16.mxu0 0
  %2926 = vmatpush1.bf16.msra.mxu0 0
  %2927 = vmatprep.subr.bf16.mxu0 0
  %2928 = vmatpush1.bf16.msra.mxu0 0
  %2929 = vmatprep.mubr.bf16.mxu0 0
  %2930 = vmatmul.mubr.bf16.gmra.mrb[0].mxu0 %v2462
  %v2931 = vpop.f32.mrb[0].mxu0
  %v2932 = vadd.f32 0.0, %v2931
  %v2933 = vpop.f32.mrb[0].mxu0
  %v2934 = vpop.f32.mrb[0].mxu0
  %v2935 = vadd.f32 0.0, %v2934
  %v2936 = vpop.f32.mrb[0].mxu0
  %2937 = vmatprep.mubr.bf16.mxu0 0
  %2938 = vmatmul.mubr.bf16.gmra.mrb[0].mxu0 %v2463
  %v2939 = vpop.f32.mrb[0].mxu0
  %v2940 = vadd.f32 0.0, %v2939
  %v2941 = vpop.f32.mrb[0].mxu0
  %v2942 = vpop.f32.mrb[0].mxu0
  %v2943 = vadd.f32 0.0, %v2942
  %v2944 = vpop.f32.mrb[0].mxu0
  %2945 = vmatprep.mubr.bf16.mxu0 0
  %2946 = vmatmul.mubr.bf16.gmra.mrb[0].mxu0 %v2464
  %v2947 = vpop.f32.mrb[0].mxu0
  %v2948 = vadd.f32 0.0, %v2947
  %v2949 = vpop.f32.mrb[0].mxu0
  %v2950 = vpop.f32.mrb[0].mxu0
  %v2951 = vadd.f32 0.0, %v2950
  %v2952 = vpop.f32.mrb[0].mxu0
  %2953 = vmatprep.mubr.bf16.mxu0 0
  %2954 = vmatmul.mubr.bf16.gmra.mrb[0].mxu0 %v2465
  %v2955 = vpop.f32.mrb[0].mxu0
  %v2956 = vadd.f32 0.0, %v2955
  %v2957 = vpop.f32.mrb[0].mxu0
  %v2958 = vpop.f32.mrb[0].mxu0
  %v2959 = vadd.f32 0.0, %v2958
  %v2960 = vpop.f32.mrb[0].mxu0
  %2961 = vmatprep.mubr.bf16.mxu0 0
  %2962 = vmatmul.mubr.bf16.gmra.mrb[0].mxu0 %v2466
  %v2963 = vpop.f32.mrb[0].mxu0
  %v2964 = vadd.f32 0.0, %v2963
  %v2965 = vpop.f32.mrb[0].mxu0
  %v2966 = vpop.f32.mrb[0].mxu0
  %v2967 = vadd.f32 0.0, %v2966
  %v2968 = vpop.f32.mrb[0].mxu0
  %2969 = vmatprep.mubr.bf16.mxu0 0
  %2970 = vmatmul.mubr.bf16.gmra.mrb[0].mxu0 %v2467
  %v2971 = vpop.f32.mrb[0].mxu0
  %v2972 = vadd.f32 0.0, %v2971
  %v2973 = vpop.f32.mrb[0].mxu0
  %v2974 = vpop.f32.mrb[0].mxu0
  %v2975 = vadd.f32 0.0, %v2974
  %v2976 = vpop.f32.mrb[0].mxu0
  %2977 = vmatprep.mubr.bf16.mxu0 0
  %2978 = vmatmul.mubr.bf16.gmra.mrb[0].mxu0 %v2468
  %v2979 = vpop.f32.mrb[0].mxu0
  %v2980 = vadd.f32 0.0, %v2979
  %v2981 = vpop.f32.mrb[0].mxu0
  %v2982 = vpop.f32.mrb[0].mxu0
  %v2983 = vadd.f32 0.0, %v2982
  %v2984 = vpop.f32.mrb[0].mxu0
  %2985 = vmatprep.mubr.bf16.mxu0 0
  %2986 = vmatmul.mubr.bf16.gmra.mrb[0].mxu0 %v2469
  %v2987 = vpop.f32.mrb[0].mxu0
  %v2988 = vadd.f32 0.0, %v2987
  %v2989 = vpop.f32.mrb[0].mxu0
  %v2990 = vpop.f32.mrb[0].mxu0
  %v2991 = vadd.f32 0.0, %v2990
  %v2992 = vpop.f32.mrb[0].mxu0
  %2993 = vdwg.mxu0
  %v2994 = vmul.f32 %v2932, 0.81
  %v2995 = vmul.f32 %v2935, 0.81
  %v2996 = vmul.f32 %v2940, 0.81
  %v2997 = vmul.f32 %v2943, 0.81
  %v2998 = vmul.f32 %v2948, 0.81
  %v2999 = vmul.f32 %v2951, 0.81
  %v3000 = vmul.f32 %v2956, 0.81
  %v3001 = vmul.f32 %v2959, 0.81
  %v3002 = vmul.f32 %v2964, 0.81
  %v3003 = vmul.f32 %v2967, 0.81
  %v3004 = vmul.f32 %v2972, 0.81
  %v3005 = vmul.f32 %v2975, 0.81
  %v3006 = vmul.f32 %v2980, 0.81
  %v3007 = vmul.f32 %v2983, 0.81
  %v3008 = vmul.f32 %v2988, 0.81
  %v3009 = vmul.f32 %v2991, 0.81
  %v3010 = vadd.f32 %v2994, %v2607
  %v3011 = vadd.f32 %v2995, %v2608
  %v3012 = vadd.f32 %v2996, %v2609
  %v3013 = vadd.f32 %v2997, %v2610
  %v3014 = vadd.f32 %v2998, %v2611
  %v3015 = vadd.f32 %v2999, %v2612
  %v3016 = vadd.f32 %v3000, %v2613
  %v3017 = vadd.f32 %v3001, %v2614
  %v3018 = vadd.f32 %v3002, %v2615
  %v3019 = vadd.f32 %v3003, %v2616
  %v3020 = vadd.f32 %v3004, %v2617
  %v3021 = vadd.f32 %v3005, %v2618
  %v3022 = vadd.f32 %v3006, %v2619
  %v3023 = vadd.f32 %v3007, %v2620
  %v3024 = vadd.f32 %v3008, %v2621
  %v3025 = vadd.f32 %v3009, %v2622
  %v3026 = vpack.c.bf16 %v3011, %v3010
  %v3027 = vpack.c.bf16 %v3013, %v3012
  %v3028 = vpack.c.bf16 %v3015, %v3014
  %v3029 = vpack.c.bf16 %v3017, %v3016
  %v3030 = vpack.c.bf16 %v3019, %v3018
  %v3031 = vpack.c.bf16 %v3021, %v3020
  %v3032 = vpack.c.bf16 %v3023, %v3022
  %v3033 = vpack.c.bf16 %v3025, %v3024
  %3034 = vmatprep.subr.bf16.mxu0 0
  %3035 = vmatpush1.bf16.msra.mxu0 %v3026
  %3036 = vmatprep.subr.bf16.mxu0 0
  %3037 = vmatpush1.bf16.msra.mxu0 %v3027
  %3038 = vmatprep.subr.bf16.mxu0 0
  %3039 = vmatpush1.bf16.msra.mxu0 %v3028
  %3040 = vmatprep.subr.bf16.mxu0 0
  %3041 = vmatpush1.bf16.msra.mxu0 %v3029
  %3042 = vmatprep.subr.bf16.mxu0 0
  %3043 = vmatpush1.bf16.msra.mxu0 %v3030
  %3044 = vmatprep.subr.bf16.mxu0 0
  %3045 = vmatpush1.bf16.msra.mxu0 %v3031
  %3046 = vmatprep.subr.bf16.mxu0 0
  %3047 = vmatpush1.bf16.msra.mxu0 %v3032
  %3048 = vmatprep.subr.bf16.mxu0 0
  %3049 = vmatpush1.bf16.msra.mxu0 %v3033
  %3050 = vmatprep.subr.bf16.mxu0 0
  %3051 = vmatpush1.bf16.msra.mxu0 0
  %3052 = vmatprep.subr.bf16.mxu0 0
  %3053 = vmatpush1.bf16.msra.mxu0 0
  %3054 = vmatprep.subr.bf16.mxu0 0
  %3055 = vmatpush1.bf16.msra.mxu0 0
  %3056 = vmatprep.subr.bf16.mxu0 0
  %3057 = vmatpush1.bf16.msra.mxu0 0
  %3058 = vmatprep.subr.bf16.mxu0 0
  %3059 = vmatpush1.bf16.msra.mxu0 0
  %3060 = vmatprep.subr.bf16.mxu0 0
  %3061 = vmatpush1.bf16.msra.mxu0 0
  %3062 = vmatprep.subr.bf16.mxu0 0
  %3063 = vmatpush1.bf16.msra.mxu0 0
  %3064 = vmatprep.subr.bf16.mxu0 0
  %3065 = vmatpush1.bf16.msra.mxu0 0
  %3066 = vmatprep.mubr.bf16.mxu0 0
  %3067 = vmatmul.mubr.bf16.gmra.mrb[0].mxu0 %v2462
  %v3068 = vpop.f32.mrb[0].mxu0
  %v3069 = vadd.f32 0.0, %v3068
  %v3070 = vpop.f32.mrb[0].mxu0
  %v3071 = vpop.f32.mrb[0].mxu0
  %v3072 = vadd.f32 0.0, %v3071
  %v3073 = vpop.f32.mrb[0].mxu0
  %3074 = vmatprep.mubr.bf16.mxu0 0
  %3075 = vmatmul.mubr.bf16.gmra.mrb[0].mxu0 %v2463
  %v3076 = vpop.f32.mrb[0].mxu0
  %v3077 = vadd.f32 0.0, %v3076
  %v3078 = vpop.f32.mrb[0].mxu0
  %v3079 = vpop.f32.mrb[0].mxu0
  %v3080 = vadd.f32 0.0, %v3079
  %v3081 = vpop.f32.mrb[0].mxu0
  %3082 = vmatprep.mubr.bf16.mxu0 0
  %3083 = vmatmul.mubr.bf16.gmra.mrb[0].mxu0 %v2464
  %v3084 = vpop.f32.mrb[0].mxu0
  %v3085 = vadd.f32 0.0, %v3084
  %v3086 = vpop.f32.mrb[0].mxu0
  %v3087 = vpop.f32.mrb[0].mxu0
  %v3088 = vadd.f32 0.0, %v3087
  %v3089 = vpop.f32.mrb[0].mxu0
  %3090 = vmatprep.mubr.bf16.mxu0 0
  %3091 = vmatmul.mubr.bf16.gmra.mrb[0].mxu0 %v2465
  %v3092 = vpop.f32.mrb[0].mxu0
  %v3093 = vadd.f32 0.0, %v3092
  %v3094 = vpop.f32.mrb[0].mxu0
  %v3095 = vpop.f32.mrb[0].mxu0
  %v3096 = vadd.f32 0.0, %v3095
  %v3097 = vpop.f32.mrb[0].mxu0
  %3098 = vmatprep.mubr.bf16.mxu0 0
  %3099 = vmatmul.mubr.bf16.gmra.mrb[0].mxu0 %v2466
  %v3100 = vpop.f32.mrb[0].mxu0
  %v3101 = vadd.f32 0.0, %v3100
  %v3102 = vpop.f32.mrb[0].mxu0
  %v3103 = vpop.f32.mrb[0].mxu0
  %v3104 = vadd.f32 0.0, %v3103
  %v3105 = vpop.f32.mrb[0].mxu0
  %3106 = vmatprep.mubr.bf16.mxu0 0
  %3107 = vmatmul.mubr.bf16.gmra.mrb[0].mxu0 %v2467
  %v3108 = vpop.f32.mrb[0].mxu0
  %v3109 = vadd.f32 0.0, %v3108
  %v3110 = vpop.f32.mrb[0].mxu0
  %v3111 = vpop.f32.mrb[0].mxu0
  %v3112 = vadd.f32 0.0, %v3111
  %v3113 = vpop.f32.mrb[0].mxu0
  %3114 = vmatprep.mubr.bf16.mxu0 0
  %3115 = vmatmul.mubr.bf16.gmra.mrb[0].mxu0 %v2468
  %v3116 = vpop.f32.mrb[0].mxu0
  %v3117 = vadd.f32 0.0, %v3116
  %v3118 = vpop.f32.mrb[0].mxu0
  %v3119 = vpop.f32.mrb[0].mxu0
  %v3120 = vadd.f32 0.0, %v3119
  %v3121 = vpop.f32.mrb[0].mxu0
  %3122 = vmatprep.mubr.bf16.mxu0 0
  %3123 = vmatmul.mubr.bf16.gmra.mrb[0].mxu0 %v2469
  %v3124 = vpop.f32.mrb[0].mxu0
  %v3125 = vadd.f32 0.0, %v3124
  %v3126 = vpop.f32.mrb[0].mxu0
  %v3127 = vpop.f32.mrb[0].mxu0
  %v3128 = vadd.f32 0.0, %v3127
  %v3129 = vpop.f32.mrb[0].mxu0
  %3130 = vdwg.mxu0
  %v3131 = vmul.f32 %v3069, 0.81
  %v3132 = vmul.f32 %v3072, 0.81
  %v3133 = vmul.f32 %v3077, 0.81
  %v3134 = vmul.f32 %v3080, 0.81
  %v3135 = vmul.f32 %v3085, 0.81
  %v3136 = vmul.f32 %v3088, 0.81
  %v3137 = vmul.f32 %v3093, 0.81
  %v3138 = vmul.f32 %v3096, 0.81
  %v3139 = vmul.f32 %v3101, 0.81
  %v3140 = vmul.f32 %v3104, 0.81
  %v3141 = vmul.f32 %v3109, 0.81
  %v3142 = vmul.f32 %v3112, 0.81
  %v3143 = vmul.f32 %v3117, 0.81
  %v3144 = vmul.f32 %v3120, 0.81
  %v3145 = vmul.f32 %v3125, 0.81
  %v3146 = vmul.f32 %v3128, 0.81
  %v3147 = vadd.f32 %v3131, %v2607
  %v3148 = vadd.f32 %v3132, %v2608
  %v3149 = vadd.f32 %v3133, %v2609
  %v3150 = vadd.f32 %v3134, %v2610
  %v3151 = vadd.f32 %v3135, %v2611
  %v3152 = vadd.f32 %v3136, %v2612
  %v3153 = vadd.f32 %v3137, %v2613
  %v3154 = vadd.f32 %v3138, %v2614
  %v3155 = vadd.f32 %v3139, %v2615
  %v3156 = vadd.f32 %v3140, %v2616
  %v3157 = vadd.f32 %v3141, %v2617
  %v3158 = vadd.f32 %v3142, %v2618
  %v3159 = vadd.f32 %v3143, %v2619
  %v3160 = vadd.f32 %v3144, %v2620
  %v3161 = vadd.f32 %v3145, %v2621
  %v3162 = vadd.f32 %v3146, %v2622
  %v3163 = vpack.c.bf16 %v3148, %v3147
  %v3164 = vpack.c.bf16 %v3150, %v3149
  %v3165 = vpack.c.bf16 %v3152, %v3151
  %v3166 = vpack.c.bf16 %v3154, %v3153
  %v3167 = vpack.c.bf16 %v3156, %v3155
  %v3168 = vpack.c.bf16 %v3158, %v3157
  %v3169 = vpack.c.bf16 %v3160, %v3159
  %v3170 = vpack.c.bf16 %v3162, %v3161
  %3171 = vmatprep.subr.bf16.mxu0 0
  %3172 = vmatpush1.bf16.msra.mxu0 %v3163
  %3173 = vmatprep.subr.bf16.mxu0 0
  %3174 = vmatpush1.bf16.msra.mxu0 %v3164
  %3175 = vmatprep.subr.bf16.mxu0 0
  %3176 = vmatpush1.bf16.msra.mxu0 %v3165
  %3177 = vmatprep.subr.bf16.mxu0 0
  %3178 = vmatpush1.bf16.msra.mxu0 %v3166
  %3179 = vmatprep.subr.bf16.mxu0 0
  %3180 = vmatpush1.bf16.msra.mxu0 %v3167
  %3181 = vmatprep.subr.bf16.mxu0 0
  %3182 = vmatpush1.bf16.msra.mxu0 %v3168
  %3183 = vmatprep.subr.bf16.mxu0 0
  %3184 = vmatpush1.bf16.msra.mxu0 %v3169
  %3185 = vmatprep.subr.bf16.mxu0 0
  %3186 = vmatpush1.bf16.msra.mxu0 %v3170
  %3187 = vmatprep.subr.bf16.mxu0 0
  %3188 = vmatpush1.bf16.msra.mxu0 0
  %3189 = vmatprep.subr.bf16.mxu0 0
  %3190 = vmatpush1.bf16.msra.mxu0 0
  %3191 = vmatprep.subr.bf16.mxu0 0
  %3192 = vmatpush1.bf16.msra.mxu0 0
  %3193 = vmatprep.subr.bf16.mxu0 0
  %3194 = vmatpush1.bf16.msra.mxu0 0
  %3195 = vmatprep.subr.bf16.mxu0 0
  %3196 = vmatpush1.bf16.msra.mxu0 0
  %3197 = vmatprep.subr.bf16.mxu0 0
  %3198 = vmatpush1.bf16.msra.mxu0 0
  %3199 = vmatprep.subr.bf16.mxu0 0
  %3200 = vmatpush1.bf16.msra.mxu0 0
  %3201 = vmatprep.subr.bf16.mxu0 0
  %3202 = vmatpush1.bf16.msra.mxu0 0
  %3203 = vmatprep.mubr.bf16.mxu0 0
  %3204 = vmatmul.mubr.bf16.gmra.mrb[0].mxu0 %v2462
  %v3205 = vpop.f32.mrb[0].mxu0
  %v3206 = vadd.f32 0.0, %v3205
  %v3207 = vpop.f32.mrb[0].mxu0
  %v3208 = vpop.f32.mrb[0].mxu0
  %v3209 = vadd.f32 0.0, %v3208
  %v3210 = vpop.f32.mrb[0].mxu0
  %3211 = vmatprep.mubr.bf16.mxu0 0
  %3212 = vmatmul.mubr.bf16.gmra.mrb[0].mxu0 %v2463
  %v3213 = vpop.f32.mrb[0].mxu0
  %v3214 = vadd.f32 0.0, %v3213
  %v3215 = vpop.f32.mrb[0].mxu0
  %v3216 = vpop.f32.mrb[0].mxu0
  %v3217 = vadd.f32 0.0, %v3216
  %v3218 = vpop.f32.mrb[0].mxu0
  %3219 = vmatprep.mubr.bf16.mxu0 0
  %3220 = vmatmul.mubr.bf16.gmra.mrb[0].mxu0 %v2464
  %v3221 = vpop.f32.mrb[0].mxu0
  %v3222 = vadd.f32 0.0, %v3221
  %v3223 = vpop.f32.mrb[0].mxu0
  %v3224 = vpop.f32.mrb[0].mxu0
  %v3225 = vadd.f32 0.0, %v3224
  %v3226 = vpop.f32.mrb[0].mxu0
  %3227 = vmatprep.mubr.bf16.mxu0 0
  %3228 = vmatmul.mubr.bf16.gmra.mrb[0].mxu0 %v2465
  %v3229 = vpop.f32.mrb[0].mxu0
  %v3230 = vadd.f32 0.0, %v3229
  %v3231 = vpop.f32.mrb[0].mxu0
  %v3232 = vpop.f32.mrb[0].mxu0
  %v3233 = vadd.f32 0.0, %v3232
  %v3234 = vpop.f32.mrb[0].mxu0
  %3235 = vmatprep.mubr.bf16.mxu0 0
  %3236 = vmatmul.mubr.bf16.gmra.mrb[0].mxu0 %v2466
  %v3237 = vpop.f32.mrb[0].mxu0
  %v3238 = vadd.f32 0.0, %v3237
  %v3239 = vpop.f32.mrb[0].mxu0
  %v3240 = vpop.f32.mrb[0].mxu0
  %v3241 = vadd.f32 0.0, %v3240
  %v3242 = vpop.f32.mrb[0].mxu0
  %3243 = vmatprep.mubr.bf16.mxu0 0
  %3244 = vmatmul.mubr.bf16.gmra.mrb[0].mxu0 %v2467
  %v3245 = vpop.f32.mrb[0].mxu0
  %v3246 = vadd.f32 0.0, %v3245
  %v3247 = vpop.f32.mrb[0].mxu0
  %v3248 = vpop.f32.mrb[0].mxu0
  %v3249 = vadd.f32 0.0, %v3248
  %v3250 = vpop.f32.mrb[0].mxu0
  %3251 = vmatprep.mubr.bf16.mxu0 0
  %3252 = vmatmul.mubr.bf16.gmra.mrb[0].mxu0 %v2468
  %v3253 = vpop.f32.mrb[0].mxu0
  %v3254 = vadd.f32 0.0, %v3253
  %v3255 = vpop.f32.mrb[0].mxu0
  %v3256 = vpop.f32.mrb[0].mxu0
  %v3257 = vadd.f32 0.0, %v3256
  %v3258 = vpop.f32.mrb[0].mxu0
  %3259 = vmatprep.mubr.bf16.mxu0 0
  %3260 = vmatmul.mubr.bf16.gmra.mrb[0].mxu0 %v2469
  %v3261 = vpop.f32.mrb[0].mxu0
  %v3262 = vadd.f32 0.0, %v3261
  %v3263 = vpop.f32.mrb[0].mxu0
  %v3264 = vpop.f32.mrb[0].mxu0
  %v3265 = vadd.f32 0.0, %v3264
  %v3266 = vpop.f32.mrb[0].mxu0
  %3267 = vdwg.mxu0
  %v3268 = vmul.f32 %v3206, 0.81
  %v3269 = vmul.f32 %v3209, 0.81
  %v3270 = vmul.f32 %v3214, 0.81
  %v3271 = vmul.f32 %v3217, 0.81
  %v3272 = vmul.f32 %v3222, 0.81
  %v3273 = vmul.f32 %v3225, 0.81
  %v3274 = vmul.f32 %v3230, 0.81
  %v3275 = vmul.f32 %v3233, 0.81
  %v3276 = vmul.f32 %v3238, 0.81
  %v3277 = vmul.f32 %v3241, 0.81
  %v3278 = vmul.f32 %v3246, 0.81
  %v3279 = vmul.f32 %v3249, 0.81
  %v3280 = vmul.f32 %v3254, 0.81
  %v3281 = vmul.f32 %v3257, 0.81
  %v3282 = vmul.f32 %v3262, 0.81
  %v3283 = vmul.f32 %v3265, 0.81
  %v3284 = vadd.f32 %v3268, %v2607
  %v3285 = vadd.f32 %v3269, %v2608
  %v3286 = vadd.f32 %v3270, %v2609
  %v3287 = vadd.f32 %v3271, %v2610
  %v3288 = vadd.f32 %v3272, %v2611
  %v3289 = vadd.f32 %v3273, %v2612
  %v3290 = vadd.f32 %v3274, %v2613
  %v3291 = vadd.f32 %v3275, %v2614
  %v3292 = vadd.f32 %v3276, %v2615
  %v3293 = vadd.f32 %v3277, %v2616
  %v3294 = vadd.f32 %v3278, %v2617
  %v3295 = vadd.f32 %v3279, %v2618
  %v3296 = vadd.f32 %v3280, %v2619
  %v3297 = vadd.f32 %v3281, %v2620
  %v3298 = vadd.f32 %v3282, %v2621
  %v3299 = vadd.f32 %v3283, %v2622
  %vm3300 = vcmp.lt.s32.totalorder %v617, 8
  %v3301 = vsel %vm3300, %v3284, -1e+30
  %v3302 = vsel %vm3300, %v3285, -1e+30
  %v3303 = vsel %vm3300, %v3286, -1e+30
  %v3304 = vsel %vm3300, %v3287, -1e+30
  %v3305 = vsel %vm3300, %v3288, -1e+30
  %v3306 = vsel %vm3300, %v3289, -1e+30
  %v3307 = vsel %vm3300, %v3290, -1e+30
  %v3308 = vsel %vm3300, %v3291, -1e+30
  %v3309 = vsel %vm3300, %v3292, -1e+30
  %v3310 = vsel %vm3300, %v3293, -1e+30
  %v3311 = vsel %vm3300, %v3294, -1e+30
  %v3312 = vsel %vm3300, %v3295, -1e+30
  %v3313 = vsel %vm3300, %v3296, -1e+30
  %v3314 = vsel %vm3300, %v3297, -1e+30
  %v3315 = vsel %vm3300, %v3298, -1e+30
  %v3316 = vsel %vm3300, %v3299, -1e+30
  %3317 = vmax.xlane.f32.xlu0 %v3301
  %v3318 = vpop.xlane.xlu0 %3317
  %3319 = vmax.xlane.f32.xlu0 %v3302
  %v3320 = vpop.xlane.xlu0 %3319
  %3321 = vmax.xlane.f32.xlu0 %v3303
  %v3322 = vpop.xlane.xlu0 %3321
  %3323 = vmax.xlane.f32.xlu0 %v3304
  %v3324 = vpop.xlane.xlu0 %3323
  %3325 = vmax.xlane.f32.xlu0 %v3305
  %v3326 = vpop.xlane.xlu0 %3325
  %3327 = vmax.xlane.f32.xlu0 %v3306
  %v3328 = vpop.xlane.xlu0 %3327
  %3329 = vmax.xlane.f32.xlu0 %v3307
  %v3330 = vpop.xlane.xlu0 %3329
  %3331 = vmax.xlane.f32.xlu0 %v3308
  %v3332 = vpop.xlane.xlu0 %3331
  %3333 = vmax.xlane.f32.xlu0 %v3309
  %v3334 = vpop.xlane.xlu0 %3333
  %3335 = vmax.xlane.f32.xlu0 %v3310
  %v3336 = vpop.xlane.xlu0 %3335
  %3337 = vmax.xlane.f32.xlu0 %v3311
  %v3338 = vpop.xlane.xlu0 %3337
  %3339 = vmax.xlane.f32.xlu0 %v3312
  %v3340 = vpop.xlane.xlu0 %3339
  %3341 = vmax.xlane.f32.xlu0 %v3313
  %v3342 = vpop.xlane.xlu0 %3341
  %3343 = vmax.xlane.f32.xlu0 %v3314
  %v3344 = vpop.xlane.xlu0 %3343
  %3345 = vmax.xlane.f32.xlu0 %v3315
  %v3346 = vpop.xlane.xlu0 %3345
  %3347 = vmax.xlane.f32.xlu0 %v3316
  %v3348 = vpop.xlane.xlu0 %3347
  %v3349 = vsub.f32 %v3301, %v3318
  %v3350 = vsub.f32 %v3302, %v3320
  %v3351 = vsub.f32 %v3303, %v3322
  %v3352 = vsub.f32 %v3304, %v3324
  %v3353 = vsub.f32 %v3305, %v3326
  %v3354 = vsub.f32 %v3306, %v3328
  %v3355 = vsub.f32 %v3307, %v3330
  %v3356 = vsub.f32 %v3308, %v3332
  %v3357 = vsub.f32 %v3309, %v3334
  %v3358 = vsub.f32 %v3310, %v3336
  %v3359 = vsub.f32 %v3311, %v3338
  %v3360 = vsub.f32 %v3312, %v3340
  %v3361 = vsub.f32 %v3313, %v3342
  %v3362 = vsub.f32 %v3314, %v3344
  %v3363 = vsub.f32 %v3315, %v3346
  %v3364 = vsub.f32 %v3316, %v3348
  %v3365 = vmul.f32 %v3349, 1.442695
  %v3366 = vpow.pop %v3365
  %v3367 = vmul.f32 %v3350, 1.442695
  %v3368 = vpow.pop %v3367
  %v3369 = vmul.f32 %v3351, 1.442695
  %v3370 = vpow.pop %v3369
  %v3371 = vmul.f32 %v3352, 1.442695
  %v3372 = vpow.pop %v3371
  %v3373 = vmul.f32 %v3353, 1.442695
  %v3374 = vpow.pop %v3373
  %v3375 = vmul.f32 %v3354, 1.442695
  %v3376 = vpow.pop %v3375
  %v3377 = vmul.f32 %v3355, 1.442695
  %v3378 = vpow.pop %v3377
  %v3379 = vmul.f32 %v3356, 1.442695
  %v3380 = vpow.pop %v3379
  %v3381 = vmul.f32 %v3357, 1.442695
  %v3382 = vpow.pop %v3381
  %v3383 = vmul.f32 %v3358, 1.442695
  %v3384 = vpow.pop %v3383
  %v3385 = vmul.f32 %v3359, 1.442695
  %v3386 = vpow.pop %v3385
  %v3387 = vmul.f32 %v3360, 1.442695
  %v3388 = vpow.pop %v3387
  %v3389 = vmul.f32 %v3361, 1.442695
  %v3390 = vpow.pop %v3389
  %v3391 = vmul.f32 %v3362, 1.442695
  %v3392 = vpow.pop %v3391
  %v3393 = vmul.f32 %v3363, 1.442695
  %v3394 = vpow.pop %v3393
  %v3395 = vmul.f32 %v3364, 1.442695
  %v3396 = vpow.pop %v3395
  %3397 = vadd.xlane.f32.xlu0 %v3366
  %v3398 = vpop.xlane.xlu0 %3397
  %3399 = vadd.xlane.f32.xlu0 %v3368
  %v3400 = vpop.xlane.xlu0 %3399
  %3401 = vadd.xlane.f32.xlu0 %v3370
  %v3402 = vpop.xlane.xlu0 %3401
  %3403 = vadd.xlane.f32.xlu0 %v3372
  %v3404 = vpop.xlane.xlu0 %3403
  %3405 = vadd.xlane.f32.xlu0 %v3374
  %v3406 = vpop.xlane.xlu0 %3405
  %3407 = vadd.xlane.f32.xlu0 %v3376
  %v3408 = vpop.xlane.xlu0 %3407
  %3409 = vadd.xlane.f32.xlu0 %v3378
  %v3410 = vpop.xlane.xlu0 %3409
  %3411 = vadd.xlane.f32.xlu0 %v3380
  %v3412 = vpop.xlane.xlu0 %3411
  %3413 = vadd.xlane.f32.xlu0 %v3382
  %v3414 = vpop.xlane.xlu0 %3413
  %3415 = vadd.xlane.f32.xlu0 %v3384
  %v3416 = vpop.xlane.xlu0 %3415
  %3417 = vadd.xlane.f32.xlu0 %v3386
  %v3418 = vpop.xlane.xlu0 %3417
  %3419 = vadd.xlane.f32.xlu0 %v3388
  %v3420 = vpop.xlane.xlu0 %3419
  %3421 = vadd.xlane.f32.xlu0 %v3390
  %v3422 = vpop.xlane.xlu0 %3421
  %3423 = vadd.xlane.f32.xlu0 %v3392
  %v3424 = vpop.xlane.xlu0 %3423
  %3425 = vadd.xlane.f32.xlu0 %v3394
  %v3426 = vpop.xlane.xlu0 %3425
  %3427 = vadd.xlane.f32.xlu0 %v3396
  %v3428 = vpop.xlane.xlu0 %3427
  %v3429 = vlog2.pop %v3398
  %v3430 = vmul.f32 %v3429, 0.6931472
  %v3431 = vlog2.pop %v3400
  %v3432 = vmul.f32 %v3431, 0.6931472
  %v3433 = vlog2.pop %v3402
  %v3434 = vmul.f32 %v3433, 0.6931472
  %v3435 = vlog2.pop %v3404
  %v3436 = vmul.f32 %v3435, 0.6931472
  %v3437 = vlog2.pop %v3406
  %v3438 = vmul.f32 %v3437, 0.6931472
  %v3439 = vlog2.pop %v3408
  %v3440 = vmul.f32 %v3439, 0.6931472
  %v3441 = vlog2.pop %v3410
  %v3442 = vmul.f32 %v3441, 0.6931472
  %v3443 = vlog2.pop %v3412
  %v3444 = vmul.f32 %v3443, 0.6931472
  %v3445 = vlog2.pop %v3414
  %v3446 = vmul.f32 %v3445, 0.6931472
  %v3447 = vlog2.pop %v3416
  %v3448 = vmul.f32 %v3447, 0.6931472
  %v3449 = vlog2.pop %v3418
  %v3450 = vmul.f32 %v3449, 0.6931472
  %v3451 = vlog2.pop %v3420
  %v3452 = vmul.f32 %v3451, 0.6931472
  %v3453 = vlog2.pop %v3422
  %v3454 = vmul.f32 %v3453, 0.6931472
  %v3455 = vlog2.pop %v3424
  %v3456 = vmul.f32 %v3455, 0.6931472
  %v3457 = vlog2.pop %v3426
  %v3458 = vmul.f32 %v3457, 0.6931472
  %v3459 = vlog2.pop %v3428
  %v3460 = vmul.f32 %v3459, 0.6931472
  %v3461 = vadd.f32 %v3430, %v3318
  %v3462 = vadd.f32 %v3432, %v3320
  %v3463 = vadd.f32 %v3434, %v3322
  %v3464 = vadd.f32 %v3436, %v3324
  %v3465 = vadd.f32 %v3438, %v3326
  %v3466 = vadd.f32 %v3440, %v3328
  %v3467 = vadd.f32 %v3442, %v3330
  %v3468 = vadd.f32 %v3444, %v3332
  %v3469 = vadd.f32 %v3446, %v3334
  %v3470 = vadd.f32 %v3448, %v3336
  %v3471 = vadd.f32 %v3450, %v3338
  %v3472 = vadd.f32 %v3452, %v3340
  %v3473 = vadd.f32 %v3454, %v3342
  %v3474 = vadd.f32 %v3456, %v3344
  %v3475 = vadd.f32 %v3458, %v3346
  %v3476 = vadd.f32 %v3460, %v3348
  %v3477 = vsub.f32 %v3284, %v3461
  %v3478 = vsub.f32 %v3285, %v3462
  %v3479 = vsub.f32 %v3286, %v3463
  %v3480 = vsub.f32 %v3287, %v3464
  %v3481 = vsub.f32 %v3288, %v3465
  %v3482 = vsub.f32 %v3289, %v3466
  %v3483 = vsub.f32 %v3290, %v3467
  %v3484 = vsub.f32 %v3291, %v3468
  %v3485 = vsub.f32 %v3292, %v3469
  %v3486 = vsub.f32 %v3293, %v3470
  %v3487 = vsub.f32 %v3294, %v3471
  %v3488 = vsub.f32 %v3295, %v3472
  %v3489 = vsub.f32 %v3296, %v3473
  %v3490 = vsub.f32 %v3297, %v3474
  %v3491 = vsub.f32 %v3298, %v3475
  %v3492 = vsub.f32 %v3299, %v3476
  %v3493 = vsel %vm3300, %v3477, 0.0
  %v3494 = vsel %vm3300, %v3478, 0.0
  %v3495 = vsel %vm3300, %v3479, 0.0
  %v3496 = vsel %vm3300, %v3480, 0.0
  %v3497 = vsel %vm3300, %v3481, 0.0
  %v3498 = vsel %vm3300, %v3482, 0.0
  %v3499 = vsel %vm3300, %v3483, 0.0
  %v3500 = vsel %vm3300, %v3484, 0.0
  %v3501 = vsel %vm3300, %v3485, 0.0
  %v3502 = vsel %vm3300, %v3486, 0.0
  %v3503 = vsel %vm3300, %v3487, 0.0
  %v3504 = vsel %vm3300, %v3488, 0.0
  %v3505 = vsel %vm3300, %v3489, 0.0
  %v3506 = vsel %vm3300, %v3490, 0.0
  %v3507 = vsel %vm3300, %v3491, 0.0
  %v3508 = vsel %vm3300, %v3492, 0.0
  %3509 = vst [vmem:[%s9] sm:$0xff] %v3493
  %3510 = vst [vmem:[%s9 + $0x8] sm:$0xff] %v3494
  %3511 = vst [vmem:[%s9 + $0x10] sm:$0xff] %v3495
  %3512 = vst [vmem:[%s9 + $0x18] sm:$0xff] %v3496
  %3513 = vst [vmem:[%s9 + $0x20] sm:$0xff] %v3497
  %3514 = vst [vmem:[%s9 + $0x28] sm:$0xff] %v3498
  %3515 = vst [vmem:[%s9 + $0x30] sm:$0xff] %v3499
  %3516 = vst [vmem:[%s9 + $0x38] sm:$0xff] %v3500
  %3517 = vst [vmem:[%s9 + $0x40] sm:$0xff] %v3501
  %3518 = vst [vmem:[%s9 + $0x48] sm:$0xff] %v3502
  %3519 = vst [vmem:[%s9 + $0x50] sm:$0xff] %v3503
  %3520 = vst [vmem:[%s9 + $0x58] sm:$0xff] %v3504
  %3521 = vst [vmem:[%s9 + $0x60] sm:$0xff] %v3505
  %3522 = vst [vmem:[%s9 + $0x68] sm:$0xff] %v3506
  %3523 = vst [vmem:[%s9 + $0x70] sm:$0xff] %v3507
  %3524 = vst [vmem:[%s9 + $0x78] sm:$0xff] %v3508
  %3525 = vst [vmem:[%s10] sm:$0xff] %v3284
  %3526 = vst [vmem:[%s10 + $0x8] sm:$0xff] %v3285
  %3527 = vst [vmem:[%s10 + $0x10] sm:$0xff] %v3286
  %3528 = vst [vmem:[%s10 + $0x18] sm:$0xff] %v3287
  %3529 = vst [vmem:[%s10 + $0x20] sm:$0xff] %v3288
  %3530 = vst [vmem:[%s10 + $0x28] sm:$0xff] %v3289
  %3531 = vst [vmem:[%s10 + $0x30] sm:$0xff] %v3290
  %3532 = vst [vmem:[%s10 + $0x38] sm:$0xff] %v3291
  %3533 = vst [vmem:[%s10 + $0x40] sm:$0xff] %v3292
  %3534 = vst [vmem:[%s10 + $0x48] sm:$0xff] %v3293
  %3535 = vst [vmem:[%s10 + $0x50] sm:$0xff] %v3294
  %3536 = vst [vmem:[%s10 + $0x58] sm:$0xff] %v3295
  %3537 = vst [vmem:[%s10 + $0x60] sm:$0xff] %v3296
  %3538 = vst [vmem:[%s10 + $0x68] sm:$0xff] %v3297
  %3539 = vst [vmem:[%s10 + $0x70] sm:$0xff] %v3298
  %3540 = vst [vmem:[%s10 + $0x78] sm:$0xff] %v3299
  // Predicated region
  $region38: #{forward.1} parent=0 // pred_check
    _
  $region39: #{forward.1} parent=0 // pred_check_branch
    %3542 = sbr.rel (0) target = $region41
  $region40: #{forward.1} parent=0 // pred_region
    _
  $region41: #{forward.1} parent=0 // pred_fallthru
    _
  // Predicated region
  $region42: #{forward.1} parent=0 // pred_check
    _
  $region43: #{forward.1} parent=0 // pred_check_branch
    %3544 = sbr.rel (0) target = $region45
  $region44: #{forward.1} parent=0 // pred_region
    _
  $region45: #{forward.1} parent=0 // pred_fallthru
    _
  // Predicated region
  $region46: #{forward.1} parent=0 // pred_check
    _
  $region47: #{forward.1} parent=0 // pred_check_branch
    %3546 = sbr.rel (0) target = $region49
  $region48: #{forward.1} parent=0 // pred_region
    _
  $region49: #{forward.1} parent=0 // pred_fallthru
    _
  // Predicated region
  $region50: #{forward.1} parent=0 // pred_check
    _
  $region51: #{forward.1} parent=0 // pred_check_branch
    %3548 = sbr.rel (0) target = $region53
  $region52: #{forward.1} parent=0 // pred_region
    _
  $region53: #{forward.1} parent=0 // pred_fallthru
    _

</llo_original>
